<compile_context>
chip_gen: v6e
topology: v6e:2x2x1
jax: 0.10.0
libtpu: 0.0.40
codegen_flags: <defaults>
</compile_context>

<pallas_src>
import functools

import jax
import jax.numpy as jnp
import numpy as np
from jax import lax
from jax.experimental import pallas as pl
from jax.experimental.pallas import tpu as pltpu


# ---------------------------------------------------------------------------
# helpers
# ---------------------------------------------------------------------------
@functools.lru_cache(maxsize=1)
def _vmem_limit_bytes():
    """~3/4 of physical VMEM (≈96 MiB on v5e/v6e, ≈48 MiB on v7x)."""
    try:
        cap = getattr(pltpu.get_tpu_info(), "vmem_capacity_bytes", 128 << 20)
    except Exception:
        cap = 64 << 20
    return int(min(cap * 3 // 4, 100 << 20))


def _pick_row_tile(H, W, cin, cout, budget_bytes=4 << 20):
    """Largest TH dividing H with TH*W % 8 == 0 whose working set fits the budget.

    Budget is deliberately a few MiB so double-buffered tiles stay far below
    v7x's 64 MiB VMEM while still amortizing the per-grid-step overhead."""
    per_row = 4 * ((W + 2) * cin        # input slab row
                   + 9 * W * cin        # im2col patch row
                   + 2 * W * cout)      # conv output row (double-buffered)
    cap = max(1, budget_bytes // max(per_row, 1))
    for th in range(min(H, cap), 0, -1):
        if H % th == 0 and (th * W) % 8 == 0:
            return th
    return H


def _pick_row_tile2(nrows, lanes, n_bufs, budget_bytes=8 << 20):
    """Row tile for the elementwise pass: divisor of nrows, multiple of 8 (or == nrows)."""
    cap = max(1, budget_bytes // max(4 * lanes * n_bufs, 1))
    for tr in range(min(nrows, cap), 0, -1):
        if nrows % tr == 0 and (tr % 8 == 0 or tr == nrows):
            return tr
    return nrows


# ---------------------------------------------------------------------------
# Pass 1: row-tiled conv3x3 + per-tile BN partial statistics
# ---------------------------------------------------------------------------
def _conv_stats_kernel(xm_ref, xh0_ref, xh1_ref, w_ref,
                       y_ref, psum_ref, psq_ref, *scratch,
                       th, width, cin, cout, use_im2col):
    # Reassemble the (TH+2, W+2, Cin) halo slab from the three row DMAs.
    x = jnp.concatenate([xm_ref[0], xh0_ref[0], xh1_ref[0]], axis=0)
    tm = th * width

    def tap(kh, kw):  # shifted (TM, Cin) view of the slab for one conv tap
        return x[kh:kh + th, kw:kw + width, :].reshape(tm, cin)

    if use_im2col:
        # Small Cin: fuse all 9 taps into one matmul with contraction K = 9*Cin.
        patch = jnp.concatenate(
            [tap(kh, kw) for kh in range(3) for kw in range(3)], axis=-1)
        acc = jnp.dot(patch, w_ref[...], preferred_element_type=jnp.float32)
    else:
        # Wide Cin: 9 accumulated MXU matmuls into a VMEM scratch accumulator.
        acc_ref = scratch[0]
        acc_ref[...] = jnp.zeros_like(acc_ref)
        for kh in range(3):
            for kw in range(3):
                t = kh * 3 + kw
                acc_ref[...] += jnp.dot(tap(kh, kw),
                                        w_ref[t * cin:(t + 1) * cin, :],
                                        preferred_element_type=jnp.float32)
        acc = acc_ref[...]

    y_ref[...] = acc
    # Per-tile partial sums for the global (N,H,W) batch-norm statistics.
    psum_ref[...] = jnp.sum(acc, axis=0, keepdims=True).reshape(1, 1, 1, cout)
    psq_ref[...] = jnp.sum(acc * acc, axis=0, keepdims=True).reshape(1, 1, 1, cout)


# ---------------------------------------------------------------------------
# Pass 2: lane-dense normalize + ReLU (+ fused residual add)
# ---------------------------------------------------------------------------
def _bn_relu_kernel(y_ref, scale_ref, shift_ref, o_ref):
    o_ref[...] = jnp.maximum(y_ref[...] * scale_ref[...] + shift_ref[...], 0.0)


def _bn_relu_add_kernel(y_ref, scale_ref, shift_ref, res_ref, o_ref):
    o_ref[...] = (jnp.maximum(y_ref[...] * scale_ref[...] + shift_ref[...], 0.0)
                  + res_ref[...])


# ---------------------------------------------------------------------------
# One CBR block (conv + batch-stat BN + ReLU [+ fused skip add])
# ---------------------------------------------------------------------------
def cbr_forward(x, w_hwio, gamma, beta, *, residual=None, row_tile=None,
                use_im2col=None):
    """x: (N,H,W,Cin) f32 NHWC.  w_hwio: (3,3,Cin,Cout).  residual: optional
    (N,H,W,Cout) added after the ReLU (fused skip-add)."""
    N, H, W, Cin = x.shape
    Cout = w_hwio.shape[-1]
    if use_im2col is None:
        use_im2col = Cin <= 128          # small contraction: one fused matmul
    w2d = w_hwio.reshape(9 * Cin, Cout)

    TH = _pick_row_tile(H, W, Cin, Cout) if row_tile is None else int(row_tile)
    assert H % TH == 0, f"row tile {TH} must divide H={H}"
    assert (TH * W) % 8 == 0, f"row tile * W must be a multiple of 8 ({TH}x{W})"
    n_rt = H // TH
    TM = TH * W

    # One zero-pad of the activation per block (the halo rows are then fetched
    # per tile through the index maps below -- no per-tile padding).
    xpad = jnp.pad(x, ((0, 0), (1, 1), (1, 1), (0, 0)))

    kern = functools.partial(_conv_stats_kernel, th=TH, width=W, cin=Cin,
                             cout=Cout, use_im2col=use_im2col)
    scratch = [] if use_im2col else [pltpu.VMEM((TM, Cout), jnp.float32)]

    flops = 2 * N * H * W * 9 * Cin * Cout
    bytes_accessed = 4 * (xpad.size + w2d.size + N * H * W * Cout
                          + 2 * N * n_rt * Cout)

    y2d, psum, psq = pl.pallas_call(
        kern,
        out_shape=(
            jax.ShapeDtypeStruct((N * H * W, Cout), jnp.float32),   # conv output
            jax.ShapeDtypeStruct((N, n_rt, 1, Cout), jnp.float32),  # per-tile sum
            jax.ShapeDtypeStruct((N, n_rt, 1, Cout), jnp.float32),  # per-tile sumsq
        ),
        grid_spec=pltpu.PrefetchScalarGridSpec(
            num_scalar_prefetch=0,
            grid=(N, n_rt),
            in_specs=[
                # TH-row body slab + two single-row halo slabs of the padded input.
                pl.BlockSpec((1, TH, W + 2, Cin), lambda n, r: (n, r, 0, 0)),
                pl.BlockSpec((1, 1, W + 2, Cin),
                             lambda n, r: (n, (r + 1) * TH, 0, 0)),
                pl.BlockSpec((1, 1, W + 2, Cin),
                             lambda n, r: (n, (r + 1) * TH + 1, 0, 0)),
                # Weights stay resident across the whole grid (constant index map).
                pl.BlockSpec((9 * Cin, Cout), lambda n, r: (0, 0)),
            ],
            out_specs=(
                pl.BlockSpec((TM, Cout), lambda n, r: (n * n_rt + r, 0)),
                pl.BlockSpec((1, 1, 1, Cout), lambda n, r: (n, r, 0, 0)),
                pl.BlockSpec((1, 1, 1, Cout), lambda n, r: (n, r, 0, 0)),
            ),
            scratch_shapes=scratch,
        ),
        compiler_params=pltpu.CompilerParams(
            dimension_semantics=("parallel", "parallel"),
            vmem_limit_bytes=_vmem_limit_bytes()),
        cost_estimate=pl.CostEstimate(flops=int(flops), transcendentals=0,
                                      bytes_accessed=int(bytes_accessed)),
    )(xpad, xpad, xpad, w2d)

    # Fold the batch statistics into a per-channel scale/shift (tiny (Cout,) glue).
    cnt = float(N * H * W)
    mean = jnp.sum(psum, axis=(0, 1, 2)) / cnt
    var = jnp.maximum(jnp.sum(psq, axis=(0, 1, 2)) / cnt - mean * mean, 0.0)
    scale = gamma * lax.rsqrt(var + 1e-5)
    shift = beta - mean * scale

    # Pass 2: lane-dense normalize + ReLU (+ fused skip add) on (N*H, W*Cout).
    NH, LC = N * H, W * Cout
    y2 = y2d.reshape(NH, LC)                       # free reshape (row-major)
    scale_t = jnp.tile(scale, W).reshape(1, LC)
    shift_t = jnp.tile(shift, W).reshape(1, LC)

    n_bufs = 6 if residual is None else 8
    TR = _pick_row_tile2(NH, LC, n_bufs)
    row_spec = pl.BlockSpec((TR, LC), lambda i: (i, 0))
    vec_spec = pl.BlockSpec((1, LC), lambda i: (0, 0))
    in_specs = [row_spec, vec_spec, vec_spec]
    args = [y2, scale_t, shift_t]
    kern2 = _bn_relu_kernel
    if residual is not None:
        in_specs.append(row_spec)
        args.append(residual.reshape(NH, LC))
        kern2 = _bn_relu_add_kernel

    read_bufs = 2 if residual is None else 3
    out2 = pl.pallas_call(
        kern2,
        out_shape=jax.ShapeDtypeStruct((NH, LC), jnp.float32),
        grid_spec=pltpu.PrefetchScalarGridSpec(
            num_scalar_prefetch=0,
            grid=(NH // TR,),
            in_specs=in_specs,
            out_specs=row_spec,
        ),
        compiler_params=pltpu.CompilerParams(
            dimension_semantics=("parallel",),
            vmem_limit_bytes=_vmem_limit_bytes()),
        cost_estimate=pl.CostEstimate(
            flops=int(4 * NH * LC), transcendentals=0,
            bytes_accessed=int(4 * (read_bufs * NH * LC + 2 * LC))),
        input_output_aliases={0: 0},   # write the result back over the conv buffer
    )(*args)
    return out2.reshape(N, H, W, Cout)


# ---------------------------------------------------------------------------
# NCBR module (plain-Python parameter container + Pallas forward)
# ---------------------------------------------------------------------------
class NCBR:
    def __init__(self, in_channels, out_channels, N, skip=False, skipcat=False,
                 key=None, row_tile=None, conv_im2col=None):
        assert N > 1
        self.skip = skip
        self.skipcat = skipcat
        self.row_tile = row_tile
        self.conv_im2col = conv_im2col
        channels = [in_channels] + [out_channels] * N
        if key is None:
            key = jax.random.PRNGKey(0)
        self.params = []
        for i in range(N):
            key, wkey = jax.random.split(key)
            cin, cout = channels[i], channels[i + 1]
            # Conv2d(cin, cout, 3, padding=1, bias=False): weight (cout, cin, 3, 3)
            w_oihw = (jax.random.normal(wkey, (cout, cin, 3, 3), jnp.float32)
                      * (1.0 / np.sqrt(cin * 9)))
            w_hwio = jnp.transpose(w_oihw, (2, 3, 1, 0))          # (3,3,cin,cout)
            gamma = jnp.ones((cout,), jnp.float32)
            beta = jnp.zeros((cout,), jnp.float32)
            self.params.append((w_hwio, gamma, beta))
        self._forward = jax.jit(self._forward_impl)

    def _forward_impl(self, x_nchw):
        # Public API matches PyTorch NCHW; kernels run in NHWC.
        x = jnp.transpose(x_nchw, (0, 2, 3, 1)).astype(jnp.float32)
        x1 = None
        last = len(self.params) - 1
        for i, (w, g, b) in enumerate(self.params):
            fuse_res = self.skip and not self.skipcat and i == last
            x = cbr_forward(x, w, g, b,
                            residual=x1 if fuse_res else None,
                            row_tile=self.row_tile,
                            use_im2col=self.conv_im2col)
            if i == 0:
                x1 = x
        if self.skip and self.skipcat:
            x = jnp.concatenate([x, x1], axis=-1)   # glue: channel concat
        return jnp.transpose(x, (0, 3, 1, 2))       # back to NCHW

    def __call__(self, x_nchw):
        return self._forward(x_nchw)


# ---------------------------------------------------------------------------
# Pure-JAX reference (for correctness check)
# ---------------------------------------------------------------------------
def ncbr_reference(model, x_nchw):
    x = jnp.transpose(x_nchw, (0, 2, 3, 1)).astype(jnp.float32)
    x1 = None
    for i, (w, g, b) in enumerate(model.params):
        y = lax.conv_general_dilated(
            x, w, window_strides=(1, 1), padding="SAME",
            dimension_numbers=("NHWC", "HWIO", "NHWC"))
        mean = jnp.mean(y, axis=(0, 1, 2), keepdims=True)
        var = jnp.mean((y - mean) ** 2, axis=(0, 1, 2), keepdims=True)
        y = (y - mean) * lax.rsqrt(var + 1e-5) * g + b
        x = jnp.maximum(y, 0.0)
        if i == 0:
            x1 = x
    if model.skip:
        x = jnp.concatenate([x, x1], -1) if model.skipcat else x + x1
    return jnp.transpose(x, (0, 3, 1, 2))


if __name__ == "__main__":
    key = jax.random.PRNGKey(0)
    kx, kp = jax.random.split(key)

    # 1) skip-add branch (residual fused into the last block's epilogue kernel)
    x = jax.random.normal(kx, (2, 4, 16, 16), jnp.float32)
    model = NCBR(in_channels=4, out_channels=8, N=3, skip=True, skipcat=False,
                 key=kp)
    out = jax.block_until_ready(model(x))
    ref = ncbr_reference(model, x)
    assert out.shape == ref.shape == (2, 8, 16, 16), out.shape
    np.testing.assert_allclose(np.asarray(out), np.asarray(ref),
                               rtol=1e-4, atol=1e-4)

    # 2) skipcat branch (channel concat stays as glue)
    model_cat = NCBR(in_channels=4, out_channels=8, N=2, skip=True,
                     skipcat=True, key=kp)
    out_cat = jax.block_until_ready(model_cat(x))
    ref_cat = ncbr_reference(model_cat, x)
    assert out_cat.shape == (2, 16, 16, 16), out_cat.shape
    np.testing.assert_allclose(np.asarray(out_cat), np.asarray(ref_cat),
                               rtol=1e-4, atol=1e-4)

    # 3) multi-row-tile path (halo DMAs + cross-tile BN stats) and the
    #    scratch-accumulator (split-tap) conv variant
    x_tall = jax.random.normal(kx, (1, 4, 32, 16), jnp.float32)
    model_t = NCBR(in_channels=4, out_channels=8, N=2, skip=False, key=kp,
                   row_tile=8, conv_im2col=False)
    out_t = jax.block_until_ready(model_t(x_tall))
    ref_t = ncbr_reference(model_t, x_tall)
    assert out_t.shape == (1, 8, 32, 16), out_t.shape
    np.testing.assert_allclose(np.asarray(out_t), np.asarray(ref_t),
                               rtol=1e-4, atol=1e-4)

    print("KERNEL_OK")
</pallas_src>

<mosaic_0001>
module attributes {stable_mosaic.version = 11 : i64} {
  func.func @_conv_stats_kernel(%arg0: i32, %arg1: i32, %arg2: memref<1x16x18x4xf32, #tpu.memory_space<vmem>>, %arg3: memref<1x1x18x4xf32, #tpu.memory_space<vmem>>, %arg4: memref<1x1x18x4xf32, #tpu.memory_space<vmem>>, %arg5: memref<36x8xf32, #tpu.memory_space<vmem>>, %arg6: memref<256x8xf32, #tpu.memory_space<vmem>>, %arg7: memref<1x1x1x8xf32, #tpu.memory_space<vmem>>, %arg8: memref<1x1x1x8xf32, #tpu.memory_space<vmem>>) attributes {dimension_semantics = [#tpu.dimension_semantics<parallel>, #tpu.dimension_semantics<parallel>], iteration_bounds = array<i64: 2, 1>, scalar_prefetch = 0 : i64, scratch_operands = 0 : i64, tpu.core_type = #tpu.core_type<tc>, window_params = [{transform_indices = @transform_0, window_bounds = array<i64: 1, 16, 18, 4>}, {transform_indices = @transform_1, window_bounds = array<i64: 1, 1, 18, 4>}, {transform_indices = @transform_2, window_bounds = array<i64: 1, 1, 18, 4>}, {pipeline_mode = #tpu.pipeline_mode<synchronous>, transform_indices = @transform_3, window_bounds = array<i64: 36, 8>}, {transform_indices = @transform_4, window_bounds = array<i64: 256, 8>}, {transform_indices = @transform_5, window_bounds = array<i64: 1, 1, 1, 8>}, {transform_indices = @transform_6, window_bounds = array<i64: 1, 1, 1, 8>}]} {
    %c0 = arith.constant 0 : index
    %c0_0 = arith.constant 0 : index
    %c0_1 = arith.constant 0 : index
    %c0_2 = arith.constant 0 : index
    %0 = vector.load %arg2[%c0, %c0_0, %c0_1, %c0_2] : memref<1x16x18x4xf32, #tpu.memory_space<vmem>>, vector<1x16x18x4xf32>
    %1 = vector.shape_cast %0 : vector<1x16x18x4xf32> to vector<16x18x4xf32>
    %c0_3 = arith.constant 0 : index
    %c0_4 = arith.constant 0 : index
    %c0_5 = arith.constant 0 : index
    %c0_6 = arith.constant 0 : index
    %2 = vector.load %arg3[%c0_3, %c0_4, %c0_5, %c0_6] : memref<1x1x18x4xf32, #tpu.memory_space<vmem>>, vector<1x1x18x4xf32>
    %3 = vector.shape_cast %2 : vector<1x1x18x4xf32> to vector<1x18x4xf32>
    %c0_7 = arith.constant 0 : index
    %c0_8 = arith.constant 0 : index
    %c0_9 = arith.constant 0 : index
    %c0_10 = arith.constant 0 : index
    %4 = vector.load %arg4[%c0_7, %c0_8, %c0_9, %c0_10] : memref<1x1x18x4xf32, #tpu.memory_space<vmem>>, vector<1x1x18x4xf32>
    %5 = vector.shape_cast %4 : vector<1x1x18x4xf32> to vector<1x18x4xf32>
    %6 = tpu.concatenate %1, %3, %5 in 0 : vector<16x18x4xf32>, vector<1x18x4xf32>, vector<1x18x4xf32> -> vector<18x18x4xf32>
    %7 = vector.extract_strided_slice %6 {offsets = [0, 0, 0], sizes = [16, 16, 4], strides = [1, 1, 1]} : vector<18x18x4xf32> to vector<16x16x4xf32>
    %8 = vector.shape_cast %7 : vector<16x16x4xf32> to vector<256x4xf32>
    %9 = vector.extract_strided_slice %6 {offsets = [0, 1, 0], sizes = [16, 16, 4], strides = [1, 1, 1]} : vector<18x18x4xf32> to vector<16x16x4xf32>
    %10 = vector.shape_cast %9 : vector<16x16x4xf32> to vector<256x4xf32>
    %11 = vector.extract_strided_slice %6 {offsets = [0, 2, 0], sizes = [16, 16, 4], strides = [1, 1, 1]} : vector<18x18x4xf32> to vector<16x16x4xf32>
    %12 = vector.shape_cast %11 : vector<16x16x4xf32> to vector<256x4xf32>
    %13 = vector.extract_strided_slice %6 {offsets = [1, 0, 0], sizes = [16, 16, 4], strides = [1, 1, 1]} : vector<18x18x4xf32> to vector<16x16x4xf32>
    %14 = vector.shape_cast %13 : vector<16x16x4xf32> to vector<256x4xf32>
    %15 = vector.extract_strided_slice %6 {offsets = [1, 1, 0], sizes = [16, 16, 4], strides = [1, 1, 1]} : vector<18x18x4xf32> to vector<16x16x4xf32>
    %16 = vector.shape_cast %15 : vector<16x16x4xf32> to vector<256x4xf32>
    %17 = vector.extract_strided_slice %6 {offsets = [1, 2, 0], sizes = [16, 16, 4], strides = [1, 1, 1]} : vector<18x18x4xf32> to vector<16x16x4xf32>
    %18 = vector.shape_cast %17 : vector<16x16x4xf32> to vector<256x4xf32>
    %19 = vector.extract_strided_slice %6 {offsets = [2, 0, 0], sizes = [16, 16, 4], strides = [1, 1, 1]} : vector<18x18x4xf32> to vector<16x16x4xf32>
    %20 = vector.shape_cast %19 : vector<16x16x4xf32> to vector<256x4xf32>
    %21 = vector.extract_strided_slice %6 {offsets = [2, 1, 0], sizes = [16, 16, 4], strides = [1, 1, 1]} : vector<18x18x4xf32> to vector<16x16x4xf32>
    %22 = vector.shape_cast %21 : vector<16x16x4xf32> to vector<256x4xf32>
    %23 = vector.extract_strided_slice %6 {offsets = [2, 2, 0], sizes = [16, 16, 4], strides = [1, 1, 1]} : vector<18x18x4xf32> to vector<16x16x4xf32>
    %24 = vector.shape_cast %23 : vector<16x16x4xf32> to vector<256x4xf32>
    %25 = tpu.concatenate %8, %10, %12, %14, %16, %18, %20, %22, %24 in 1 : vector<256x4xf32>, vector<256x4xf32>, vector<256x4xf32>, vector<256x4xf32>, vector<256x4xf32>, vector<256x4xf32>, vector<256x4xf32>, vector<256x4xf32>, vector<256x4xf32> -> vector<256x36xf32>
    %c0_11 = arith.constant 0 : index
    %c0_12 = arith.constant 0 : index
    %26 = vector.load %arg5[%c0_11, %c0_12] : memref<36x8xf32, #tpu.memory_space<vmem>>, vector<36x8xf32>
    %cst = arith.constant dense<0.000000e+00> : vector<256x8xf32>
    %27 = tpu.matmul %25, %26, %cst {dimension_numbers = #tpu.dot_dimension_numbers<[1], [0], [0], [1], [0, 0, 1, 1], [], []>} : vector<256x36xf32>, vector<36x8xf32>, vector<256x8xf32> -> vector<256x8xf32>
    %c0_13 = arith.constant 0 : index
    %c0_14 = arith.constant 0 : index
    %28 = vector.load %arg6[%c0_13, %c0_14] : memref<256x8xf32, #tpu.memory_space<vmem>>, vector<256x8xf32>
    tpu.vector_store %arg6[%c0_13, %c0_14], %27 {strides = array<i32>} : memref<256x8xf32, #tpu.memory_space<vmem>>, vector<256x8xf32>,
    %cst_15 = arith.constant dense<0.000000e+00> : vector<8xf32>
    %29 = vector.multi_reduction <add>, %27, %cst_15 [0] : vector<256x8xf32> to vector<8xf32>
    %30 = vector.shape_cast %29 : vector<8xf32> to vector<1x8xf32>
    %31 = vector.shape_cast %30 : vector<1x8xf32> to vector<1x1x1x8xf32>
    %c0_16 = arith.constant 0 : index
    %c0_17 = arith.constant 0 : index
    %c0_18 = arith.constant 0 : index
    %c0_19 = arith.constant 0 : index
    %32 = vector.load %arg7[%c0_16, %c0_17, %c0_18, %c0_19] : memref<1x1x1x8xf32, #tpu.memory_space<vmem>>, vector<1x1x1x8xf32>
    tpu.vector_store %arg7[%c0_16, %c0_17, %c0_18, %c0_19], %31 {strides = array<i32>} : memref<1x1x1x8xf32, #tpu.memory_space<vmem>>, vector<1x1x1x8xf32>,
    %33 = arith.mulf %27, %27 : vector<256x8xf32>
    %cst_20 = arith.constant dense<0.000000e+00> : vector<8xf32>
    %34 = vector.multi_reduction <add>, %33, %cst_20 [0] : vector<256x8xf32> to vector<8xf32>
    %35 = vector.shape_cast %34 : vector<8xf32> to vector<1x8xf32>
    %36 = vector.shape_cast %35 : vector<1x8xf32> to vector<1x1x1x8xf32>
    %c0_21 = arith.constant 0 : index
    %c0_22 = arith.constant 0 : index
    %c0_23 = arith.constant 0 : index
    %c0_24 = arith.constant 0 : index
    %37 = vector.load %arg8[%c0_21, %c0_22, %c0_23, %c0_24] : memref<1x1x1x8xf32, #tpu.memory_space<vmem>>, vector<1x1x1x8xf32>
    tpu.vector_store %arg8[%c0_21, %c0_22, %c0_23, %c0_24], %36 {strides = array<i32>} : memref<1x1x1x8xf32, #tpu.memory_space<vmem>>, vector<1x1x1x8xf32>,
    return
  }
  func.func @transform_0(%arg0: i32, %arg1: i32) -> (i32, i32, i32, i32) {
    %c0_i32 = arith.constant 0 : i32
    %c0_i32_0 = arith.constant 0 : i32
    %c0_i32_1 = arith.constant 0 : i32
    return %arg0, %arg1, %c0_i32, %c0_i32_0 : i32, i32, i32, i32
  }
  func.func @transform_1(%arg0: i32, %arg1: i32) -> (i32, i32, i32, i32) {
    %c1_i32 = arith.constant 1 : i32
    %0 = arith.addi %arg1, %c1_i32 : i32
    %c16_i32 = arith.constant 16 : i32
    %1 = arith.muli %0, %c16_i32 : i32
    %c0_i32 = arith.constant 0 : i32
    %c0_i32_0 = arith.constant 0 : i32
    %c0_i32_1 = arith.constant 0 : i32
    return %arg0, %1, %c0_i32, %c0_i32_0 : i32, i32, i32, i32
  }
  func.func @transform_2(%arg0: i32, %arg1: i32) -> (i32, i32, i32, i32) {
    %c1_i32 = arith.constant 1 : i32
    %0 = arith.addi %arg1, %c1_i32 : i32
    %c16_i32 = arith.constant 16 : i32
    %1 = arith.muli %0, %c16_i32 : i32
    %c1_i32_0 = arith.constant 1 : i32
    %2 = arith.addi %1, %c1_i32_0 : i32
    %c0_i32 = arith.constant 0 : i32
    %c0_i32_1 = arith.constant 0 : i32
    %c0_i32_2 = arith.constant 0 : i32
    return %arg0, %2, %c0_i32, %c0_i32_1 : i32, i32, i32, i32
  }
  func.func @transform_3(%arg0: i32, %arg1: i32) -> (i32, i32) {
    %c0_i32 = arith.constant 0 : i32
    %c0_i32_0 = arith.constant 0 : i32
    %c0_i32_1 = arith.constant 0 : i32
    return %c0_i32, %c0_i32_0 : i32, i32
  }
  func.func @transform_4(%arg0: i32, %arg1: i32) -> (i32, i32) {
    %c1_i32 = arith.constant 1 : i32
    %0 = arith.muli %arg0, %c1_i32 : i32
    %1 = arith.addi %0, %arg1 : i32
    %c0_i32 = arith.constant 0 : i32
    %c0_i32_0 = arith.constant 0 : i32
    return %1, %c0_i32 : i32, i32
  }
  func.func @transform_5(%arg0: i32, %arg1: i32) -> (i32, i32, i32, i32) {
    %c0_i32 = arith.constant 0 : i32
    %c0_i32_0 = arith.constant 0 : i32
    %c0_i32_1 = arith.constant 0 : i32
    return %arg0, %arg1, %c0_i32, %c0_i32_0 : i32, i32, i32, i32
  }
  func.func @transform_6(%arg0: i32, %arg1: i32) -> (i32, i32, i32, i32) {
    %c0_i32 = arith.constant 0 : i32
    %c0_i32_0 = arith.constant 0 : i32
    %c0_i32_1 = arith.constant 0 : i32
    return %arg0, %arg1, %c0_i32, %c0_i32_0 : i32, i32, i32, i32
  }
}

module attributes {stable_mosaic.version = 11 : i64} {
  func.func @_bn_relu_kernel(%arg0: i32, %arg1: memref<32x128xf32, #tpu.memory_space<vmem>>, %arg2: memref<1x128xf32, #tpu.memory_space<vmem>>, %arg3: memref<1x128xf32, #tpu.memory_space<vmem>>, %arg4: memref<32x128xf32, #tpu.memory_space<vmem>>) attributes {dimension_semantics = [#tpu.dimension_semantics<parallel>], iteration_bounds = array<i64: 1>, scalar_prefetch = 0 : i64, scratch_operands = 0 : i64, tpu.core_type = #tpu.core_type<tc>, window_params = [{transform_indices = @transform_0, window_bounds = array<i64: 32, 128>}, {pipeline_mode = #tpu.pipeline_mode<synchronous>, transform_indices = @transform_1, window_bounds = array<i64: 1, 128>}, {pipeline_mode = #tpu.pipeline_mode<synchronous>, transform_indices = @transform_2, window_bounds = array<i64: 1, 128>}, {transform_indices = @transform_3, window_bounds = array<i64: 32, 128>}]} {
    %c0 = arith.constant 0 : index
    %c0_0 = arith.constant 0 : index
    %0 = vector.load %arg1[%c0, %c0_0] : memref<32x128xf32, #tpu.memory_space<vmem>>, vector<32x128xf32>
    %c0_1 = arith.constant 0 : index
    %c0_2 = arith.constant 0 : index
    %1 = vector.load %arg2[%c0_1, %c0_2] : memref<1x128xf32, #tpu.memory_space<vmem>>, vector<1x128xf32>
    %2 = vector.broadcast %1 : vector<1x128xf32> to vector<32x128xf32>
    %3 = arith.mulf %0, %2 : vector<32x128xf32>
    %c0_3 = arith.constant 0 : index
    %c0_4 = arith.constant 0 : index
    %4 = vector.load %arg3[%c0_3, %c0_4] : memref<1x128xf32, #tpu.memory_space<vmem>>, vector<1x128xf32>
    %5 = vector.broadcast %4 : vector<1x128xf32> to vector<32x128xf32>
    %6 = arith.addf %3, %5 : vector<32x128xf32>
    %cst = arith.constant 0.000000e+00 : f32
    %7 = vector.broadcast %cst : f32 to vector<32x128xf32>
    %8 = arith.maximumf %6, %7 : vector<32x128xf32>
    %c0_5 = arith.constant 0 : index
    %c0_6 = arith.constant 0 : index
    %9 = vector.load %arg4[%c0_5, %c0_6] : memref<32x128xf32, #tpu.memory_space<vmem>>, vector<32x128xf32>
    tpu.vector_store %arg4[%c0_5, %c0_6], %8 {strides = array<i32>} : memref<32x128xf32, #tpu.memory_space<vmem>>, vector<32x128xf32>,
    return
  }
  func.func @transform_0(%arg0: i32) -> (i32, i32) {
    %c0_i32 = arith.constant 0 : i32
    %c0_i32_0 = arith.constant 0 : i32
    return %arg0, %c0_i32 : i32, i32
  }
  func.func @transform_1(%arg0: i32) -> (i32, i32) {
    %c0_i32 = arith.constant 0 : i32
    %c0_i32_0 = arith.constant 0 : i32
    %c0_i32_1 = arith.constant 0 : i32
    return %c0_i32, %c0_i32_0 : i32, i32
  }
  func.func @transform_2(%arg0: i32) -> (i32, i32) {
    %c0_i32 = arith.constant 0 : i32
    %c0_i32_0 = arith.constant 0 : i32
    %c0_i32_1 = arith.constant 0 : i32
    return %c0_i32, %c0_i32_0 : i32, i32
  }
  func.func @transform_3(%arg0: i32) -> (i32, i32) {
    %c0_i32 = arith.constant 0 : i32
    %c0_i32_0 = arith.constant 0 : i32
    return %arg0, %c0_i32 : i32, i32
  }
}

module attributes {stable_mosaic.version = 11 : i64} {
  func.func @_conv_stats_kernel(%arg0: i32, %arg1: i32, %arg2: memref<1x16x18x8xf32, #tpu.memory_space<vmem>>, %arg3: memref<1x1x18x8xf32, #tpu.memory_space<vmem>>, %arg4: memref<1x1x18x8xf32, #tpu.memory_space<vmem>>, %arg5: memref<72x8xf32, #tpu.memory_space<vmem>>, %arg6: memref<256x8xf32, #tpu.memory_space<vmem>>, %arg7: memref<1x1x1x8xf32, #tpu.memory_space<vmem>>, %arg8: memref<1x1x1x8xf32, #tpu.memory_space<vmem>>) attributes {dimension_semantics = [#tpu.dimension_semantics<parallel>, #tpu.dimension_semantics<parallel>], iteration_bounds = array<i64: 2, 1>, scalar_prefetch = 0 : i64, scratch_operands = 0 : i64, tpu.core_type = #tpu.core_type<tc>, window_params = [{transform_indices = @transform_0, window_bounds = array<i64: 1, 16, 18, 8>}, {transform_indices = @transform_1, window_bounds = array<i64: 1, 1, 18, 8>}, {transform_indices = @transform_2, window_bounds = array<i64: 1, 1, 18, 8>}, {pipeline_mode = #tpu.pipeline_mode<synchronous>, transform_indices = @transform_3, window_bounds = array<i64: 72, 8>}, {transform_indices = @transform_4, window_bounds = array<i64: 256, 8>}, {transform_indices = @transform_5, window_bounds = array<i64: 1, 1, 1, 8>}, {transform_indices = @transform_6, window_bounds = array<i64: 1, 1, 1, 8>}]} {
    %c0 = arith.constant 0 : index
    %c0_0 = arith.constant 0 : index
    %c0_1 = arith.constant 0 : index
    %c0_2 = arith.constant 0 : index
    %0 = vector.load %arg2[%c0, %c0_0, %c0_1, %c0_2] : memref<1x16x18x8xf32, #tpu.memory_space<vmem>>, vector<1x16x18x8xf32>
    %1 = vector.shape_cast %0 : vector<1x16x18x8xf32> to vector<16x18x8xf32>
    %c0_3 = arith.constant 0 : index
    %c0_4 = arith.constant 0 : index
    %c0_5 = arith.constant 0 : index
    %c0_6 = arith.constant 0 : index
    %2 = vector.load %arg3[%c0_3, %c0_4, %c0_5, %c0_6] : memref<1x1x18x8xf32, #tpu.memory_space<vmem>>, vector<1x1x18x8xf32>
    %3 = vector.shape_cast %2 : vector<1x1x18x8xf32> to vector<1x18x8xf32>
    %c0_7 = arith.constant 0 : index
    %c0_8 = arith.constant 0 : index
    %c0_9 = arith.constant 0 : index
    %c0_10 = arith.constant 0 : index
    %4 = vector.load %arg4[%c0_7, %c0_8, %c0_9, %c0_10] : memref<1x1x18x8xf32, #tpu.memory_space<vmem>>, vector<1x1x18x8xf32>
    %5 = vector.shape_cast %4 : vector<1x1x18x8xf32> to vector<1x18x8xf32>
    %6 = tpu.concatenate %1, %3, %5 in 0 : vector<16x18x8xf32>, vector<1x18x8xf32>, vector<1x18x8xf32> -> vector<18x18x8xf32>
    %7 = vector.extract_strided_slice %6 {offsets = [0, 0, 0], sizes = [16, 16, 8], strides = [1, 1, 1]} : vector<18x18x8xf32> to vector<16x16x8xf32>
    %8 = vector.shape_cast %7 : vector<16x16x8xf32> to vector<256x8xf32>
    %9 = vector.extract_strided_slice %6 {offsets = [0, 1, 0], sizes = [16, 16, 8], strides = [1, 1, 1]} : vector<18x18x8xf32> to vector<16x16x8xf32>
    %10 = vector.shape_cast %9 : vector<16x16x8xf32> to vector<256x8xf32>
    %11 = vector.extract_strided_slice %6 {offsets = [0, 2, 0], sizes = [16, 16, 8], strides = [1, 1, 1]} : vector<18x18x8xf32> to vector<16x16x8xf32>
    %12 = vector.shape_cast %11 : vector<16x16x8xf32> to vector<256x8xf32>
    %13 = vector.extract_strided_slice %6 {offsets = [1, 0, 0], sizes = [16, 16, 8], strides = [1, 1, 1]} : vector<18x18x8xf32> to vector<16x16x8xf32>
    %14 = vector.shape_cast %13 : vector<16x16x8xf32> to vector<256x8xf32>
    %15 = vector.extract_strided_slice %6 {offsets = [1, 1, 0], sizes = [16, 16, 8], strides = [1, 1, 1]} : vector<18x18x8xf32> to vector<16x16x8xf32>
    %16 = vector.shape_cast %15 : vector<16x16x8xf32> to vector<256x8xf32>
    %17 = vector.extract_strided_slice %6 {offsets = [1, 2, 0], sizes = [16, 16, 8], strides = [1, 1, 1]} : vector<18x18x8xf32> to vector<16x16x8xf32>
    %18 = vector.shape_cast %17 : vector<16x16x8xf32> to vector<256x8xf32>
    %19 = vector.extract_strided_slice %6 {offsets = [2, 0, 0], sizes = [16, 16, 8], strides = [1, 1, 1]} : vector<18x18x8xf32> to vector<16x16x8xf32>
    %20 = vector.shape_cast %19 : vector<16x16x8xf32> to vector<256x8xf32>
    %21 = vector.extract_strided_slice %6 {offsets = [2, 1, 0], sizes = [16, 16, 8], strides = [1, 1, 1]} : vector<18x18x8xf32> to vector<16x16x8xf32>
    %22 = vector.shape_cast %21 : vector<16x16x8xf32> to vector<256x8xf32>
    %23 = vector.extract_strided_slice %6 {offsets = [2, 2, 0], sizes = [16, 16, 8], strides = [1, 1, 1]} : vector<18x18x8xf32> to vector<16x16x8xf32>
    %24 = vector.shape_cast %23 : vector<16x16x8xf32> to vector<256x8xf32>
    %25 = tpu.concatenate %8, %10, %12, %14, %16, %18, %20, %22, %24 in 1 : vector<256x8xf32>, vector<256x8xf32>, vector<256x8xf32>, vector<256x8xf32>, vector<256x8xf32>, vector<256x8xf32>, vector<256x8xf32>, vector<256x8xf32>, vector<256x8xf32> -> vector<256x72xf32>
    %c0_11 = arith.constant 0 : index
    %c0_12 = arith.constant 0 : index
    %26 = vector.load %arg5[%c0_11, %c0_12] : memref<72x8xf32, #tpu.memory_space<vmem>>, vector<72x8xf32>
    %cst = arith.constant dense<0.000000e+00> : vector<256x8xf32>
    %27 = tpu.matmul %25, %26, %cst {dimension_numbers = #tpu.dot_dimension_numbers<[1], [0], [0], [1], [0, 0, 1, 1], [], []>} : vector<256x72xf32>, vector<72x8xf32>, vector<256x8xf32> -> vector<256x8xf32>
    %c0_13 = arith.constant 0 : index
    %c0_14 = arith.constant 0 : index
    %28 = vector.load %arg6[%c0_13, %c0_14] : memref<256x8xf32, #tpu.memory_space<vmem>>, vector<256x8xf32>
    tpu.vector_store %arg6[%c0_13, %c0_14], %27 {strides = array<i32>} : memref<256x8xf32, #tpu.memory_space<vmem>>, vector<256x8xf32>,
    %cst_15 = arith.constant dense<0.000000e+00> : vector<8xf32>
    %29 = vector.multi_reduction <add>, %27, %cst_15 [0] : vector<256x8xf32> to vector<8xf32>
    %30 = vector.shape_cast %29 : vector<8xf32> to vector<1x8xf32>
    %31 = vector.shape_cast %30 : vector<1x8xf32> to vector<1x1x1x8xf32>
    %c0_16 = arith.constant 0 : index
    %c0_17 = arith.constant 0 : index
    %c0_18 = arith.constant 0 : index
    %c0_19 = arith.constant 0 : index
    %32 = vector.load %arg7[%c0_16, %c0_17, %c0_18, %c0_19] : memref<1x1x1x8xf32, #tpu.memory_space<vmem>>, vector<1x1x1x8xf32>
    tpu.vector_store %arg7[%c0_16, %c0_17, %c0_18, %c0_19], %31 {strides = array<i32>} : memref<1x1x1x8xf32, #tpu.memory_space<vmem>>, vector<1x1x1x8xf32>,
    %33 = arith.mulf %27, %27 : vector<256x8xf32>
    %cst_20 = arith.constant dense<0.000000e+00> : vector<8xf32>
    %34 = vector.multi_reduction <add>, %33, %cst_20 [0] : vector<256x8xf32> to vector<8xf32>
    %35 = vector.shape_cast %34 : vector<8xf32> to vector<1x8xf32>
    %36 = vector.shape_cast %35 : vector<1x8xf32> to vector<1x1x1x8xf32>
    %c0_21 = arith.constant 0 : index
    %c0_22 = arith.constant 0 : index
    %c0_23 = arith.constant 0 : index
    %c0_24 = arith.constant 0 : index
    %37 = vector.load %arg8[%c0_21, %c0_22, %c0_23, %c0_24] : memref<1x1x1x8xf32, #tpu.memory_space<vmem>>, vector<1x1x1x8xf32>
    tpu.vector_store %arg8[%c0_21, %c0_22, %c0_23, %c0_24], %36 {strides = array<i32>} : memref<1x1x1x8xf32, #tpu.memory_space<vmem>>, vector<1x1x1x8xf32>,
    return
  }
  func.func @transform_0(%arg0: i32, %arg1: i32) -> (i32, i32, i32, i32) {
    %c0_i32 = arith.constant 0 : i32
    %c0_i32_0 = arith.constant 0 : i32
    %c0_i32_1 = arith.constant 0 : i32
    return %arg0, %arg1, %c0_i32, %c0_i32_0 : i32, i32, i32, i32
  }
  func.func @transform_1(%arg0: i32, %arg1: i32) -> (i32, i32, i32, i32) {
    %c1_i32 = arith.constant 1 : i32
    %0 = arith.addi %arg1, %c1_i32 : i32
    %c16_i32 = arith.constant 16 : i32
    %1 = arith.muli %0, %c16_i32 : i32
    %c0_i32 = arith.constant 0 : i32
    %c0_i32_0 = arith.constant 0 : i32
    %c0_i32_1 = arith.constant 0 : i32
    return %arg0, %1, %c0_i32, %c0_i32_0 : i32, i32, i32, i32
  }
  func.func @transform_2(%arg0: i32, %arg1: i32) -> (i32, i32, i32, i32) {
    %c1_i32 = arith.constant 1 : i32
    %0 = arith.addi %arg1, %c1_i32 : i32
    %c16_i32 = arith.constant 16 : i32
    %1 = arith.muli %0, %c16_i32 : i32
    %c1_i32_0 = arith.constant 1 : i32
    %2 = arith.addi %1, %c1_i32_0 : i32
    %c0_i32 = arith.constant 0 : i32
    %c0_i32_1 = arith.constant 0 : i32
    %c0_i32_2 = arith.constant 0 : i32
    return %arg0, %2, %c0_i32, %c0_i32_1 : i32, i32, i32, i32
  }
  func.func @transform_3(%arg0: i32, %arg1: i32) -> (i32, i32) {
    %c0_i32 = arith.constant 0 : i32
    %c0_i32_0 = arith.constant 0 : i32
    %c0_i32_1 = arith.constant 0 : i32
    return %c0_i32, %c0_i32_0 : i32, i32
  }
  func.func @transform_4(%arg0: i32, %arg1: i32) -> (i32, i32) {
    %c1_i32 = arith.constant 1 : i32
    %0 = arith.muli %arg0, %c1_i32 : i32
    %1 = arith.addi %0, %arg1 : i32
    %c0_i32 = arith.constant 0 : i32
    %c0_i32_0 = arith.constant 0 : i32
    return %1, %c0_i32 : i32, i32
  }
  func.func @transform_5(%arg0: i32, %arg1: i32) -> (i32, i32, i32, i32) {
    %c0_i32 = arith.constant 0 : i32
    %c0_i32_0 = arith.constant 0 : i32
    %c0_i32_1 = arith.constant 0 : i32
    return %arg0, %arg1, %c0_i32, %c0_i32_0 : i32, i32, i32, i32
  }
  func.func @transform_6(%arg0: i32, %arg1: i32) -> (i32, i32, i32, i32) {
    %c0_i32 = arith.constant 0 : i32
    %c0_i32_0 = arith.constant 0 : i32
    %c0_i32_1 = arith.constant 0 : i32
    return %arg0, %arg1, %c0_i32, %c0_i32_0 : i32, i32, i32, i32
  }
}

module attributes {stable_mosaic.version = 11 : i64} {
  func.func @_bn_relu_add_kernel(%arg0: i32, %arg1: memref<32x128xf32, #tpu.memory_space<vmem>>, %arg2: memref<1x128xf32, #tpu.memory_space<vmem>>, %arg3: memref<1x128xf32, #tpu.memory_space<vmem>>, %arg4: memref<32x128xf32, #tpu.memory_space<vmem>>, %arg5: memref<32x128xf32, #tpu.memory_space<vmem>>) attributes {dimension_semantics = [#tpu.dimension_semantics<parallel>], iteration_bounds = array<i64: 1>, scalar_prefetch = 0 : i64, scratch_operands = 0 : i64, tpu.core_type = #tpu.core_type<tc>, window_params = [{transform_indices = @transform_0, window_bounds = array<i64: 32, 128>}, {pipeline_mode = #tpu.pipeline_mode<synchronous>, transform_indices = @transform_1, window_bounds = array<i64: 1, 128>}, {pipeline_mode = #tpu.pipeline_mode<synchronous>, transform_indices = @transform_2, window_bounds = array<i64: 1, 128>}, {transform_indices = @transform_3, window_bounds = array<i64: 32, 128>}, {transform_indices = @transform_4, window_bounds = array<i64: 32, 128>}]} {
    %c0 = arith.constant 0 : index
    %c0_0 = arith.constant 0 : index
    %0 = vector.load %arg1[%c0, %c0_0] : memref<32x128xf32, #tpu.memory_space<vmem>>, vector<32x128xf32>
    %c0_1 = arith.constant 0 : index
    %c0_2 = arith.constant 0 : index
    %1 = vector.load %arg2[%c0_1, %c0_2] : memref<1x128xf32, #tpu.memory_space<vmem>>, vector<1x128xf32>
    %2 = vector.broadcast %1 : vector<1x128xf32> to vector<32x128xf32>
    %3 = arith.mulf %0, %2 : vector<32x128xf32>
    %c0_3 = arith.constant 0 : index
    %c0_4 = arith.constant 0 : index
    %4 = vector.load %arg3[%c0_3, %c0_4] : memref<1x128xf32, #tpu.memory_space<vmem>>, vector<1x128xf32>
    %5 = vector.broadcast %4 : vector<1x128xf32> to vector<32x128xf32>
    %6 = arith.addf %3, %5 : vector<32x128xf32>
    %cst = arith.constant 0.000000e+00 : f32
    %7 = vector.broadcast %cst : f32 to vector<32x128xf32>
    %8 = arith.maximumf %6, %7 : vector<32x128xf32>
    %c0_5 = arith.constant 0 : index
    %c0_6 = arith.constant 0 : index
    %9 = vector.load %arg4[%c0_5, %c0_6] : memref<32x128xf32, #tpu.memory_space<vmem>>, vector<32x128xf32>
    %10 = arith.addf %8, %9 : vector<32x128xf32>
    %c0_7 = arith.constant 0 : index
    %c0_8 = arith.constant 0 : index
    %11 = vector.load %arg5[%c0_7, %c0_8] : memref<32x128xf32, #tpu.memory_space<vmem>>, vector<32x128xf32>
    tpu.vector_store %arg5[%c0_7, %c0_8], %10 {strides = array<i32>} : memref<32x128xf32, #tpu.memory_space<vmem>>, vector<32x128xf32>,
    return
  }
  func.func @transform_0(%arg0: i32) -> (i32, i32) {
    %c0_i32 = arith.constant 0 : i32
    %c0_i32_0 = arith.constant 0 : i32
    return %arg0, %c0_i32 : i32, i32
  }
  func.func @transform_1(%arg0: i32) -> (i32, i32) {
    %c0_i32 = arith.constant 0 : i32
    %c0_i32_0 = arith.constant 0 : i32
    %c0_i32_1 = arith.constant 0 : i32
    return %c0_i32, %c0_i32_0 : i32, i32
  }
  func.func @transform_2(%arg0: i32) -> (i32, i32) {
    %c0_i32 = arith.constant 0 : i32
    %c0_i32_0 = arith.constant 0 : i32
    %c0_i32_1 = arith.constant 0 : i32
    return %c0_i32, %c0_i32_0 : i32, i32
  }
  func.func @transform_3(%arg0: i32) -> (i32, i32) {
    %c0_i32 = arith.constant 0 : i32
    %c0_i32_0 = arith.constant 0 : i32
    return %arg0, %c0_i32 : i32, i32
  }
  func.func @transform_4(%arg0: i32) -> (i32, i32) {
    %c0_i32 = arith.constant 0 : i32
    %c0_i32_0 = arith.constant 0 : i32
    return %arg0, %c0_i32 : i32, i32
  }
}

</mosaic_0001>

<llo_original>
// kernel: tile.38
$region0: #{tile.38}
  #allocation0 [shape = 's32[1]{0}', space=sflag, size = 0x4, scoped, tag = 'scoped memory for tile.38']
  %s0 = inlined_call_operand.vmem [shape: f32[8], index: 0, kind: input, shape index: {}]
  %s1 = inlined_call_operand.vmem [shape: f32[16,8], index: 1, kind: output, shape index: {}]
  // Predicated region
  $region2: #{tile.38} parent=0 // pred_check
    _
  $region3: #{tile.38} parent=0 // pred_check_branch
    %3 = sbr.rel (0) target = $region5
  $region4: #{tile.38} parent=0 // pred_region
    _
  $region5: #{tile.38} parent=0 // pred_fallthru
    _
  %v4 = vld [vmem:[%s0] ss:$0 sm:$0xff]
  %5 = vst [vmem:[%s1] sm:$0xff] %v4
  %s6 = scalar_lea.vmem %s1, 8
  %7 = vst [vmem:[%s6] sm:$0xff] %v4

// kernel: tile.39
$region0: #{tile.39}
  %s0 = inlined_call_operand.vmem [shape: f32[16,8], index: 0, kind: input, shape index: {}]
  %s1 = inlined_call_operand.vmem [shape: f32[1,128], index: 1, kind: output, shape index: {}]
  $region1: #{tile.39} parent=0
    #allocation0 [shape = 'u8[4096]{0}', space=vmem, size = 0x1000, scoped, tag = 'scoped mem for output reshape']
    %v2 = vld [vmem:[%s0] sm:$0x1]
    %vm3 = vcmask 64512
    %4 = vst.msk [vmem:[#allocation0] sm:$0x1] %vm3, %v2
    %s5 = scalar_lea.vmem %s0, 15
    %v6 = vld [vmem:[%s5] sm:$0x1]
    %7 = vrot.lane.b32.xlu0 %v6, 120
    %v8 = vpop.permute.xlu0 %7
    %vm9 = vcmask 1048512
    %10 = vst.msk [vmem:[#allocation0] sm:$0x1] %vm9, %v8
    %s11 = scalar_lea.vmem %s0, 14
    %v12 = vld [vmem:[%s11] sm:$0x1]
    %13 = vrot.lane.b32.xlu0 %v12, 112
    %v14 = vpop.permute.xlu0 %13
    %vm15 = vcmask 982912
    %16 = vst.msk [vmem:[#allocation0] sm:$0x1] %vm15, %v14
    %s17 = scalar_lea.vmem %s0, 13
    %v18 = vld [vmem:[%s17] sm:$0x1]
    %19 = vrot.lane.b32.xlu0 %v18, 104
    %v20 = vpop.permute.xlu0 %19
    %vm21 = vcmask 917312
    %22 = vst.msk [vmem:[#allocation0] sm:$0x1] %vm21, %v20
    %s23 = scalar_lea.vmem %s0, 12
    %v24 = vld [vmem:[%s23] sm:$0x1]
    %25 = vrot.lane.b32.xlu0 %v24, 96
    %v26 = vpop.permute.xlu0 %25
    %vm27 = vcmask 851712
    %28 = vst.msk [vmem:[#allocation0] sm:$0x1] %vm27, %v26
    %s29 = scalar_lea.vmem %s0, 11
    %v30 = vld [vmem:[%s29] sm:$0x1]
    %31 = vrot.lane.b32.xlu0 %v30, 88
    %v32 = vpop.permute.xlu0 %31
    %vm33 = vcmask 786112
    %34 = vst.msk [vmem:[#allocation0] sm:$0x1] %vm33, %v32
    %s35 = scalar_lea.vmem %s0, 10
    %v36 = vld [vmem:[%s35] sm:$0x1]
    %37 = vrot.lane.b32.xlu0 %v36, 80
    %v38 = vpop.permute.xlu0 %37
    %vm39 = vcmask 720512
    %40 = vst.msk [vmem:[#allocation0] sm:$0x1] %vm39, %v38
    %s41 = scalar_lea.vmem %s0, 9
    %v42 = vld [vmem:[%s41] sm:$0x1]
    %43 = vrot.lane.b32.xlu0 %v42, 72
    %v44 = vpop.permute.xlu0 %43
    %vm45 = vcmask 654912
    %46 = vst.msk [vmem:[#allocation0] sm:$0x1] %vm45, %v44
    %s47 = scalar_lea.vmem %s0, 8
    %v48 = vld [vmem:[%s47] sm:$0x1]
    %49 = vrot.lane.b32.xlu0 %v48, 64
    %v50 = vpop.permute.xlu0 %49
    %vm51 = vcmask 589312
    %52 = vst.msk [vmem:[#allocation0] sm:$0x1] %vm51, %v50
    %s53 = scalar_lea.vmem %s0, 7
    %v54 = vld [vmem:[%s53] sm:$0x1]
    %55 = vrot.lane.b32.xlu0 %v54, 56
    %v56 = vpop.permute.xlu0 %55
    %vm57 = vcmask 523712
    %58 = vst.msk [vmem:[#allocation0] sm:$0x1] %vm57, %v56
    %s59 = scalar_lea.vmem %s0, 6
    %v60 = vld [vmem:[%s59] sm:$0x1]
    %61 = vrot.lane.b32.xlu0 %v60, 48
    %v62 = vpop.permute.xlu0 %61
    %vm63 = vcmask 458112
    %64 = vst.msk [vmem:[#allocation0] sm:$0x1] %vm63, %v62
    %s65 = scalar_lea.vmem %s0, 5
    %v66 = vld [vmem:[%s65] sm:$0x1]
    %67 = vrot.lane.b32.xlu0 %v66, 40
    %v68 = vpop.permute.xlu0 %67
    %vm69 = vcmask 392512
    %70 = vst.msk [vmem:[#allocation0] sm:$0x1] %vm69, %v68
    %s71 = scalar_lea.vmem %s0, 4
    %v72 = vld [vmem:[%s71] sm:$0x1]
    %73 = vrot.lane.b32.xlu0 %v72, 32
    %v74 = vpop.permute.xlu0 %73
    %vm75 = vcmask 326912
    %76 = vst.msk [vmem:[#allocation0] sm:$0x1] %vm75, %v74
    %s77 = scalar_lea.vmem %s0, 3
    %v78 = vld [vmem:[%s77] sm:$0x1]
    %79 = vrot.lane.b32.xlu0 %v78, 24
    %v80 = vpop.permute.xlu0 %79
    %vm81 = vcmask 261312
    %82 = vst.msk [vmem:[#allocation0] sm:$0x1] %vm81, %v80
    %s83 = scalar_lea.vmem %s0, 2
    %v84 = vld [vmem:[%s83] sm:$0x1]
    %85 = vrot.lane.b32.xlu0 %v84, 16
    %v86 = vpop.permute.xlu0 %85
    %vm87 = vcmask 195712
    %88 = vst.msk [vmem:[#allocation0] sm:$0x1] %vm87, %v86
    %s89 = scalar_lea.vmem %s0, 1
    %v90 = vld [vmem:[%s89] sm:$0x1]
    %91 = vrot.lane.b32.xlu0 %v90, 8
    %v92 = vpop.permute.xlu0 %91
    %vm93 = vcmask 130112
    %94 = vst.msk [vmem:[#allocation0] sm:$0x1] %vm93, %v92
    %s96 = sshll.u32 1, 1
    %s97 = ssub.s32 %s96, 1
    %v99 = vld [vmem:[#allocation0] sm:%s97]
    %s100 = sshll.u32 1, 1
    %s101 = ssub.s32 %s100, 1
    %102 = vst [vmem:[%s1] sm:%s101] %v99

// kernel: _forward_impl.7
$region0: #{_forward_impl.7}
  #allocation0 [shape = 'u32[]', space=smem, size = 0x4, offset = 0x4, fixed_abs, tag = 'smem constant byte address 0x4 - core index']
  #allocation1 [shape = 'u32[144,128]{1,0:T(1,128)}', space=vmem, size = 0x12000, scoped, tag = 'internal scratch']
  %s0 = inlined_call_operand.vmem [shape: f32[32,128], index: 0, kind: input, shape index: {}, may-alias: {0,3}]
  %s1 = inlined_call_operand.vmem [shape: f32[1,128], index: 1, kind: input, shape index: {}]
  %s2 = inlined_call_operand.vmem [shape: f32[1,128], index: 2, kind: input, shape index: {}]
  %s3 = inlined_call_operand.vmem [shape: f32[32,128], index: 3, kind: output, shape index: {}, may-alias: {0,3}]
  %s4 = sld [smem:[#allocation0]]
  $region22: #{_forward_impl.7} parent=0
    _
  %s6 = ssub.s32 1, %s4
  %s7 = scalar_select 0, %s6, %s4
  // Predicated region
  $region2: #{_forward_impl.7} parent=0 // pred_check
    _
  $region3: #{_forward_impl.7} parent=0 // pred_check_branch
    %9 = sbr.rel (0) target = $region5
  $region4: #{_forward_impl.7} parent=0 // pred_region
    _
  $region5: #{_forward_impl.7} parent=0 // pred_fallthru
    _
  // Predicated region
  $region6: #{_forward_impl.7} parent=0 // pred_check
    _
  $region7: #{_forward_impl.7} parent=0 // pred_check_branch
    %11 = sbr.rel (0) target = $region9
  $region8: #{_forward_impl.7} parent=0 // pred_region
    _
  $region9: #{_forward_impl.7} parent=0 // pred_fallthru
    _
  // Predicated region
  $region10: #{_forward_impl.7} parent=0 // pred_check
    _
  $region11: #{_forward_impl.7} parent=0 // pred_check_branch
    %13 = sbr.rel (0) target = $region13
  $region12: #{_forward_impl.7} parent=0 // pred_region
    _
  $region13: #{_forward_impl.7} parent=0 // pred_fallthru
    _
  %v14 = vld [vmem:[%s0] sm:$0xff]
  %v15 = vld [vmem:[%s0 + $0x8] sm:$0xff]
  %v16 = vld [vmem:[%s0 + $0x10] sm:$0xff]
  %v17 = vld [vmem:[%s0 + $0x18] sm:$0xff]
  %v18 = vld [vmem:[%s1] sm:$0x1]
  %v20 = vlaneseq
  %v21 = vshrl.u32 %v20, 7
  %v22 = vsub.s32 0, %v21
  %v23 = vrot.slane %v18, %v22
  %v25 = vmul.f32 %v14, %v23
  %v26 = vmul.f32 %v15, %v23
  %v27 = vmul.f32 %v16, %v23
  %v28 = vmul.f32 %v17, %v23
  %v29 = vld [vmem:[%s2] sm:$0x1]
  %v31 = vlaneseq
  %v32 = vshrl.u32 %v31, 7
  %v33 = vsub.s32 0, %v32
  %v34 = vrot.slane %v29, %v33
  %v36 = vadd.f32 %v25, %v34
  %v37 = vadd.f32 %v26, %v34
  %v38 = vadd.f32 %v27, %v34
  %v39 = vadd.f32 %v28, %v34
  %v40 = vmax.f32 %v36, 0.0
  %v41 = vmax.f32 %v37, 0.0
  %v42 = vmax.f32 %v38, 0.0
  %v43 = vmax.f32 %v39, 0.0
  %44 = vst [vmem:[%s3] sm:$0xff] %v40
  %45 = vst [vmem:[%s3 + $0x8] sm:$0xff] %v41
  %46 = vst [vmem:[%s3 + $0x10] sm:$0xff] %v42
  %47 = vst [vmem:[%s3 + $0x18] sm:$0xff] %v43
  // Predicated region
  $region14: #{_forward_impl.7} parent=0 // pred_check
    _
  $region15: #{_forward_impl.7} parent=0 // pred_check_branch
    %49 = sbr.rel (0) target = $region17
  $region16: #{_forward_impl.7} parent=0 // pred_region
    _
  $region17: #{_forward_impl.7} parent=0 // pred_fallthru
    _
  // Predicated region
  $region18: #{_forward_impl.7} parent=0 // pred_check
    _
  $region19: #{_forward_impl.7} parent=0 // pred_check_branch
    %51 = sbr.rel (0) target = $region21
  $region20: #{_forward_impl.7} parent=0 // pred_region
    _
  $region21: #{_forward_impl.7} parent=0 // pred_fallthru
    _

// kernel: _forward_impl.11
$region0: #{_forward_impl.11}
  #allocation0 [shape = 'u32[]', space=smem, size = 0x4, offset = 0x4, fixed_abs, tag = 'smem constant byte address 0x4 - core index']
  #allocation1 [shape = 'u32[144,128]{1,0:T(1,128)}', space=vmem, size = 0x12000, scoped, tag = 'internal scratch']
  %s0 = inlined_call_operand.vmem [shape: f32[32,128], index: 0, kind: input, shape index: {}, may-alias: {0,4}]
  %s1 = inlined_call_operand.vmem [shape: f32[1,128], index: 1, kind: input, shape index: {}]
  %s2 = inlined_call_operand.vmem [shape: f32[1,128], index: 2, kind: input, shape index: {}]
  %s3 = inlined_call_operand.vmem [shape: f32[32,128], index: 3, kind: input, shape index: {}]
  %s4 = inlined_call_operand.vmem [shape: f32[32,128], index: 4, kind: output, shape index: {}, may-alias: {0,4}]
  %s5 = sld [smem:[#allocation0]]
  $region26: #{_forward_impl.11} parent=0
    _
  %s7 = ssub.s32 1, %s5
  %s8 = scalar_select 0, %s7, %s5
  // Predicated region
  $region2: #{_forward_impl.11} parent=0 // pred_check
    _
  $region3: #{_forward_impl.11} parent=0 // pred_check_branch
    %10 = sbr.rel (0) target = $region5
  $region4: #{_forward_impl.11} parent=0 // pred_region
    _
  $region5: #{_forward_impl.11} parent=0 // pred_fallthru
    _
  // Predicated region
  $region6: #{_forward_impl.11} parent=0 // pred_check
    _
  $region7: #{_forward_impl.11} parent=0 // pred_check_branch
    %12 = sbr.rel (0) target = $region9
  $region8: #{_forward_impl.11} parent=0 // pred_region
    _
  $region9: #{_forward_impl.11} parent=0 // pred_fallthru
    _
  // Predicated region
  $region10: #{_forward_impl.11} parent=0 // pred_check
    _
  $region11: #{_forward_impl.11} parent=0 // pred_check_branch
    %14 = sbr.rel (0) target = $region13
  $region12: #{_forward_impl.11} parent=0 // pred_region
    _
  $region13: #{_forward_impl.11} parent=0 // pred_fallthru
    _
  // Predicated region
  $region14: #{_forward_impl.11} parent=0 // pred_check
    _
  $region15: #{_forward_impl.11} parent=0 // pred_check_branch
    %16 = sbr.rel (0) target = $region17
  $region16: #{_forward_impl.11} parent=0 // pred_region
    _
  $region17: #{_forward_impl.11} parent=0 // pred_fallthru
    _
  %v17 = vld [vmem:[%s0] sm:$0xff]
  %v18 = vld [vmem:[%s0 + $0x8] sm:$0xff]
  %v19 = vld [vmem:[%s0 + $0x10] sm:$0xff]
  %v20 = vld [vmem:[%s0 + $0x18] sm:$0xff]
  %v21 = vld [vmem:[%s1] sm:$0x1]
  %v23 = vlaneseq
  %v24 = vshrl.u32 %v23, 7
  %v25 = vsub.s32 0, %v24
  %v26 = vrot.slane %v21, %v25
  %v28 = vmul.f32 %v17, %v26
  %v29 = vmul.f32 %v18, %v26
  %v30 = vmul.f32 %v19, %v26
  %v31 = vmul.f32 %v20, %v26
  %v32 = vld [vmem:[%s2] sm:$0x1]
  %v34 = vlaneseq
  %v35 = vshrl.u32 %v34, 7
  %v36 = vsub.s32 0, %v35
  %v37 = vrot.slane %v32, %v36
  %v39 = vadd.f32 %v28, %v37
  %v40 = vadd.f32 %v29, %v37
  %v41 = vadd.f32 %v30, %v37
  %v42 = vadd.f32 %v31, %v37
  %v43 = vmax.f32 %v39, 0.0
  %v44 = vmax.f32 %v40, 0.0
  %v45 = vmax.f32 %v41, 0.0
  %v46 = vmax.f32 %v42, 0.0
  %v47 = vld [vmem:[%s3] sm:$0xff]
  %v48 = vld [vmem:[%s3 + $0x8] sm:$0xff]
  %v49 = vld [vmem:[%s3 + $0x10] sm:$0xff]
  %v50 = vld [vmem:[%s3 + $0x18] sm:$0xff]
  %v51 = vadd.f32 %v43, %v47
  %v52 = vadd.f32 %v44, %v48
  %v53 = vadd.f32 %v45, %v49
  %v54 = vadd.f32 %v46, %v50
  %55 = vst [vmem:[%s4] sm:$0xff] %v51
  %56 = vst [vmem:[%s4 + $0x8] sm:$0xff] %v52
  %57 = vst [vmem:[%s4 + $0x10] sm:$0xff] %v53
  %58 = vst [vmem:[%s4 + $0x18] sm:$0xff] %v54
  // Predicated region
  $region18: #{_forward_impl.11} parent=0 // pred_check
    _
  $region19: #{_forward_impl.11} parent=0 // pred_check_branch
    %60 = sbr.rel (0) target = $region21
  $region20: #{_forward_impl.11} parent=0 // pred_region
    _
  $region21: #{_forward_impl.11} parent=0 // pred_fallthru
    _
  // Predicated region
  $region22: #{_forward_impl.11} parent=0 // pred_check
    _
  $region23: #{_forward_impl.11} parent=0 // pred_check_branch
    %62 = sbr.rel (0) target = $region25
  $region24: #{_forward_impl.11} parent=0 // pred_region
    _
  $region25: #{_forward_impl.11} parent=0 // pred_fallthru
    _

// kernel: _forward_impl.6
$region0: #{_forward_impl.6}
  #allocation0 [shape = 'u32[]', space=smem, size = 0x4, offset = 0x4, fixed_abs, tag = 'smem constant byte address 0x4 - core index']
  #allocation1 [shape = 'u32[144,128]{1,0:T(1,128)}', space=vmem, size = 0x12000, scoped, tag = 'internal scratch']
  %s0 = inlined_call_operand.vmem [shape: f32[2,18,18,4], index: 0, kind: input, shape index: {}, may-alias: {0,1,2}]
  %s1 = inlined_call_operand.vmem [shape: f32[2,18,18,4], index: 1, kind: input, shape index: {}, may-alias: {0,1,2}]
  %s2 = inlined_call_operand.vmem [shape: f32[2,18,18,4], index: 2, kind: input, shape index: {}, may-alias: {0,1,2}]
  %s3 = inlined_call_operand.vmem [shape: f32[36,8], index: 3, kind: input, shape index: {}]
  %s4 = inlined_call_operand.vmem [shape: f32[512,8], index: 4, kind: output, shape index: {0}]
  %s5 = inlined_call_operand.vmem [shape: f32[2,1,1,8], index: 5, kind: output, shape index: {1}]
  %s6 = inlined_call_operand.vmem [shape: f32[2,1,1,8], index: 6, kind: output, shape index: {2}]
  %7 = xla_tuple %s4, %s5, %s6
  %s8 = sld [smem:[#allocation0]]
  $region65: #{_forward_impl.6} parent=0
    _
  %s10 = ssub.s32 1, %s8
  %s11 = scalar_select 0, %s10, %s8
  loop: start=0, step=1, limit=4
  $region2: #{_forward_impl.6} parent=0 // loop_pre_header
    _
  $region3: #{_forward_impl.6} parent=0 // loop_header
    %s13 = sphi 0, %s17
    %p14 = scmp.ge.s32.totalorder %s13, 4
    %s20 = sphi 0, %s32
    %s21 = sphi 0, %s28
    %s22 = sphi 0, %s20
    %s23 = sphi 0, %s21
    %s24 = sphi 0, %s22
    %s25 = sphi 0, %s23
    %s37 = sphi 0, %s39
    %s40 = sphi 0, %s37
    %s41 = sphi 0, %s40
    %s57 = sphi 0, %s41
    %s69 = sphi 0, %s71
    %s72 = sphi 0, %s69
    %s73 = sphi 0, %s72
    %s89 = sphi 0, %s73
    %s103 = sphi 0, %s105
    %s106 = sphi 0, %s103
    %s107 = sphi 0, %s106
    %s123 = sphi 0, %s107
    %s127 = sphi 0, %s127
    %s129 = sphi 0, %s127
    %s130 = sphi 0, %s129
    %s144 = sphi 0, %s130
    %s152 = sphi 0, %s154
    %s155 = sphi 0, %s152
    %s156 = sphi 0, %s155
    %s172 = sphi 0, %s156
    %s180 = sphi 0, %s182
    %s183 = sphi 0, %s180
    %s184 = sphi 0, %s183
    %s200 = sphi 0, %s184
    %s208 = sphi 0, %s210
    %s211 = sphi 0, %s208
    %s212 = sphi 0, %s211
    %s228 = sphi 0, %s212
  $region4: #{_forward_impl.6} parent=0 // loop_header_branch
    %16 = sbr.rel (%p14) target = $region8
  $region5: #{_forward_impl.6} parent=0 // loop_body
    %s18 = ssub.s32 %s13, 1
    %s19 = ssub.s32 %s13, 2
    %s26 = sadd.s32 1, %s21
    %p27 = scmp.ge.s32.totalorder %s26, 1
    %s28 = scalar_select %p27, 0, %s26
    %s29 = sadd.s32 1, %s20
    %s30 = scalar_select %p27, %s29, %s20
    %p31 = scmp.ge.s32.totalorder %s30, 2
    %s32 = scalar_select %p31, 0, %s30
    %s33 = ssub.s32 %s20, %s32
    %s34 = ssub.s32 %s21, %s28
    %s35 = sor.u32 %s33, %s34
    %p36 = scmp.eq.s32.totalorder %s35, 0
    %s38 = sadd.s32 %s37, 1
    %s39 = scalar_select %p36, %s37, %s38
    %p42 = pneg %p36
    %p43 = scmp.eq.s32.totalorder %s13, 1
    %p44 = por %p42, %p43
    %p45 = scmp.ne.s32.totalorder %s37, %s40
    %p46 = scmp.eq.s32.totalorder %s13, 0
    %p47 = por %p45, %p46
    %p48 = scmp.ne.s32.totalorder %s37, %s40
    %p49 = scmp.eq.s32.totalorder %s18, 1
    %p50 = por %p48, %p49
    %p51 = scmp.ne.s32.totalorder %s40, %s41
    %p52 = scmp.eq.s32.totalorder %s18, 0
    %p53 = por %p51, %p52
    %p54 = scmp.ne.s32.totalorder %s40, %s41
    %p55 = scmp.eq.s32.totalorder %s19, 1
    %p56 = por %p54, %p55
    %p58 = scmp.ne.s32.totalorder %s41, %s57
    %p59 = scmp.eq.s32.totalorder %s19, 0
    %p60 = por %p58, %p59
    %s61 = sadd.s32 %s21, 1
    %s62 = smul.u32 %s61, 16
    %s63 = sadd.s32 %s28, 1
    %s64 = smul.u32 %s63, 16
    %s65 = ssub.s32 %s20, %s32
    %s66 = ssub.s32 %s62, %s64
    %s67 = sor.u32 %s65, %s66
    %p68 = scmp.eq.s32.totalorder %s67, 0
    %s70 = sadd.s32 %s69, 1
    %s71 = scalar_select %p68, %s69, %s70
    %p74 = pneg %p68
    %p75 = scmp.eq.s32.totalorder %s13, 1
    %p76 = por %p74, %p75
    %p77 = scmp.ne.s32.totalorder %s69, %s72
    %p78 = scmp.eq.s32.totalorder %s13, 0
    %p79 = por %p77, %p78
    %p80 = scmp.ne.s32.totalorder %s69, %s72
    %p81 = scmp.eq.s32.totalorder %s18, 1
    %p82 = por %p80, %p81
    %p83 = scmp.ne.s32.totalorder %s72, %s73
    %p84 = scmp.eq.s32.totalorder %s18, 0
    %p85 = por %p83, %p84
    %p86 = scmp.ne.s32.totalorder %s72, %s73
    %p87 = scmp.eq.s32.totalorder %s19, 1
    %p88 = por %p86, %p87
    %p90 = scmp.ne.s32.totalorder %s73, %s89
    %p91 = scmp.eq.s32.totalorder %s19, 0
    %p92 = por %p90, %p91
    %s93 = sadd.s32 %s21, 1
    %s94 = smul.u32 %s93, 16
    %s95 = sadd.s32 %s94, 1
    %s96 = sadd.s32 %s28, 1
    %s97 = smul.u32 %s96, 16
    %s98 = sadd.s32 %s97, 1
    %s99 = ssub.s32 %s20, %s32
    %s100 = ssub.s32 %s95, %s98
    %s101 = sor.u32 %s99, %s100
    %p102 = scmp.eq.s32.totalorder %s101, 0
    %s104 = sadd.s32 %s103, 1
    %s105 = scalar_select %p102, %s103, %s104
    %p108 = pneg %p102
    %p109 = scmp.eq.s32.totalorder %s13, 1
    %p110 = por %p108, %p109
    %p111 = scmp.ne.s32.totalorder %s103, %s106
    %p112 = scmp.eq.s32.totalorder %s13, 0
    %p113 = por %p111, %p112
    %p114 = scmp.ne.s32.totalorder %s103, %s106
    %p115 = scmp.eq.s32.totalorder %s18, 1
    %p116 = por %p114, %p115
    %p117 = scmp.ne.s32.totalorder %s106, %s107
    %p118 = scmp.eq.s32.totalorder %s18, 0
    %p119 = por %p117, %p118
    %p120 = scmp.ne.s32.totalorder %s106, %s107
    %p121 = scmp.eq.s32.totalorder %s19, 1
    %p122 = por %p120, %p121
    %p124 = scmp.ne.s32.totalorder %s107, %s123
    %p125 = scmp.eq.s32.totalorder %s19, 0
    %p126 = por %p124, %p125
    %s128 = sadd.s32 %s127, 1
    %p131 = scmp.eq.s32.totalorder %s13, 1
    %p132 = scmp.ne.s32.totalorder %s127, %s129
    %p133 = scmp.eq.s32.totalorder %s13, 0
    %p134 = por %p132, %p133
    %p135 = scmp.ne.s32.totalorder %s127, %s129
    %p136 = scmp.eq.s32.totalorder %s18, 1
    %p137 = por %p135, %p136
    %p138 = scmp.ne.s32.totalorder %s129, %s130
    %p139 = scmp.eq.s32.totalorder %s18, 0
    %p140 = por %p138, %p139
    %p141 = scmp.ne.s32.totalorder %s129, %s130
    %p142 = scmp.eq.s32.totalorder %s19, 1
    %p143 = por %p141, %p142
    %p145 = scmp.ne.s32.totalorder %s130, %s144
    %p146 = scmp.eq.s32.totalorder %s19, 0
    %p147 = por %p145, %p146
    %s148 = sadd.s32 %s20, %s21
    %s149 = sadd.s32 %s32, %s28
    %s150 = ssub.s32 %s148, %s149
    %p151 = scmp.eq.s32.totalorder %s150, 0
    %s153 = sadd.s32 %s152, 1
    %s154 = scalar_select %p151, %s152, %s153
    %p157 = pneg %p151
    %p158 = scmp.eq.s32.totalorder %s13, 1
    %p159 = por %p157, %p158
    %p160 = scmp.ne.s32.totalorder %s152, %s155
    %p161 = scmp.eq.s32.totalorder %s13, 0
    %p162 = por %p160, %p161
    %p163 = scmp.ne.s32.totalorder %s152, %s155
    %p164 = scmp.eq.s32.totalorder %s18, 1
    %p165 = por %p163, %p164
    %p166 = scmp.ne.s32.totalorder %s155, %s156
    %p167 = scmp.eq.s32.totalorder %s18, 0
    %p168 = por %p166, %p167
    %p169 = scmp.ne.s32.totalorder %s155, %s156
    %p170 = scmp.eq.s32.totalorder %s19, 1
    %p171 = por %p169, %p170
    %p173 = scmp.ne.s32.totalorder %s156, %s172
    %p174 = scmp.eq.s32.totalorder %s19, 0
    %p175 = por %p173, %p174
    %s176 = ssub.s32 %s20, %s32
    %s177 = ssub.s32 %s21, %s28
    %s178 = sor.u32 %s176, %s177
    %p179 = scmp.eq.s32.totalorder %s178, 0
    %s181 = sadd.s32 %s180, 1
    %s182 = scalar_select %p179, %s180, %s181
    %p185 = pneg %p179
    %p186 = scmp.eq.s32.totalorder %s13, 1
    %p187 = por %p185, %p186
    %p188 = scmp.ne.s32.totalorder %s180, %s183
    %p189 = scmp.eq.s32.totalorder %s13, 0
    %p190 = por %p188, %p189
    %p191 = scmp.ne.s32.totalorder %s180, %s183
    %p192 = scmp.eq.s32.totalorder %s18, 1
    %p193 = por %p191, %p192
    %p194 = scmp.ne.s32.totalorder %s183, %s184
    %p195 = scmp.eq.s32.totalorder %s18, 0
    %p196 = por %p194, %p195
    %p197 = scmp.ne.s32.totalorder %s183, %s184
    %p198 = scmp.eq.s32.totalorder %s19, 1
    %p199 = por %p197, %p198
    %p201 = scmp.ne.s32.totalorder %s184, %s200
    %p202 = scmp.eq.s32.totalorder %s19, 0
    %p203 = por %p201, %p202
    %s204 = ssub.s32 %s20, %s32
    %s205 = ssub.s32 %s21, %s28
    %s206 = sor.u32 %s204, %s205
    %p207 = scmp.eq.s32.totalorder %s206, 0
    %s209 = sadd.s32 %s208, 1
    %s210 = scalar_select %p207, %s208, %s209
    %p213 = pneg %p207
    %p214 = scmp.eq.s32.totalorder %s13, 1
    %p215 = por %p213, %p214
    %p216 = scmp.ne.s32.totalorder %s208, %s211
    %p217 = scmp.eq.s32.totalorder %s13, 0
    %p218 = por %p216, %p217
    %p219 = scmp.ne.s32.totalorder %s208, %s211
    %p220 = scmp.eq.s32.totalorder %s18, 1
    %p221 = por %p219, %p220
    %p222 = scmp.ne.s32.totalorder %s211, %s212
    %p223 = scmp.eq.s32.totalorder %s18, 0
    %p224 = por %p222, %p223
    %p225 = scmp.ne.s32.totalorder %s211, %s212
    %p226 = scmp.eq.s32.totalorder %s19, 1
    %p227 = por %p225, %p226
    %p229 = scmp.ne.s32.totalorder %s212, %s228
    %p230 = scmp.eq.s32.totalorder %s19, 0
    %p231 = por %p229, %p230
    %p232 = scmp.le.s32.totalorder 1, %s13
    %p233 = scmp.lt.s32.totalorder %s13, 3
    %p234 = pnand %p232, %p233
    %p235 = pneg %p234
    // Predicated region
    $region9: #{_forward_impl.6} parent=5 // pred_check
      _
    $region10: #{_forward_impl.6} parent=5 // pred_check_branch
      %237 = sbr.rel (%p234) target = $region12
    $region11: #{_forward_impl.6} parent=5 // pred_region
      %s238 = ssub.s32 %s13, 1
      // Predicated region
      $region13: #{_forward_impl.6} parent=11 // pred_check
        %p239 = pneg %p140
      $region14: #{_forward_impl.6} parent=11 // pred_check_branch
        %241 = sbr.rel (%p239) target = $region16
      $region15: #{_forward_impl.6} parent=11 // pred_region
        _
      $region16: #{_forward_impl.6} parent=11 // pred_fallthru
        _
    $region12: #{_forward_impl.6} parent=5 // pred_fallthru
      _
    %p242 = scmp.lt.s32.totalorder %s13, 2
    // Predicated region
    $region17: #{_forward_impl.6} parent=5 // pred_check
      %p243 = pneg %p242
    $region18: #{_forward_impl.6} parent=5 // pred_check_branch
      %245 = sbr.rel (%p243) target = $region20
    $region19: #{_forward_impl.6} parent=5 // pred_region
      // Predicated region
      $region21: #{_forward_impl.6} parent=19 // pred_check
        %p246 = pneg %p47
      $region22: #{_forward_impl.6} parent=19 // pred_check_branch
        %248 = sbr.rel (%p246) target = $region24
      $region23: #{_forward_impl.6} parent=19 // pred_region
        %s249 = smul.u32 16, %s21
        %s250 = ssub.s32 18, %s249
        %p251 = scmp.lt.s32.totalorder %s250, 16
        %s252 = scalar_select %p251, %s250, 16
        %s253 = smul.u32 128, %s252
        %s254 = smul.u32 %s253, 3
        %p255 = scmp.lt.s32.totalorder %s20, 1
        %s256 = scalar_select %p255, %s20, 1
        %p257 = scmp.lt.s32.totalorder %s249, 17
        %s258 = scalar_select %p257, %s249, 17
        %s259 = smul.addr %s258, 3
        %s260 = smul.addr %s256, 54
        %s261 = sadd.s32 %s259, %s260
        %s262 = smul.addr %s261, 8
        %s263 = scalar_lea.vmem %s0, %s262
        %s264 = smul.u32 16, %s21
        %s265 = ssub.s32 18, %s264
        %p266 = scmp.lt.s32.totalorder %s265, 16
        %s267 = scalar_select %p266, %s265, 16
        %s268 = smul.u32 128, %s267
        %s269 = smul.u32 %s268, 3
      $region24: #{_forward_impl.6} parent=19 // pred_fallthru
        _
      // Predicated region
      $region25: #{_forward_impl.6} parent=19 // pred_check
        %p270 = pneg %p79
      $region26: #{_forward_impl.6} parent=19 // pred_check_branch
        %272 = sbr.rel (%p270) target = $region28
      $region27: #{_forward_impl.6} parent=19 // pred_region
        %s273 = sadd.s32 %s21, 1
        %s274 = smul.u32 %s273, 16
        %p275 = scmp.lt.s32.totalorder %s20, 1
        %s276 = scalar_select %p275, %s20, 1
        %p277 = scmp.lt.s32.totalorder %s274, 17
        %s278 = scalar_select %p277, %s274, 17
        %s279 = smul.addr %s278, 3
        %s280 = smul.addr %s276, 54
        %s281 = sadd.s32 %s279, %s280
        %s282 = smul.addr %s281, 8
        %s283 = scalar_lea.vmem %s1, %s282
        %s284 = sadd.s32 %s21, 1
        %s285 = smul.u32 %s284, 16
      $region28: #{_forward_impl.6} parent=19 // pred_fallthru
        _
      // Predicated region
      $region29: #{_forward_impl.6} parent=19 // pred_check
        %p286 = pneg %p113
      $region30: #{_forward_impl.6} parent=19 // pred_check_branch
        %288 = sbr.rel (%p286) target = $region32
      $region31: #{_forward_impl.6} parent=19 // pred_region
        %s289 = sadd.s32 %s21, 1
        %s290 = smul.u32 %s289, 16
        %s291 = sadd.s32 %s290, 1
        %p292 = scmp.lt.s32.totalorder %s20, 1
        %s293 = scalar_select %p292, %s20, 1
        %p294 = scmp.lt.s32.totalorder %s291, 17
        %s295 = scalar_select %p294, %s291, 17
        %s296 = smul.addr %s295, 3
        %s297 = smul.addr %s293, 54
        %s298 = sadd.s32 %s296, %s297
        %s299 = smul.addr %s298, 8
        %s300 = scalar_lea.vmem %s2, %s299
        %s301 = sadd.s32 %s21, 1
        %s302 = smul.u32 %s301, 16
        %s303 = sadd.s32 %s302, 1
      $region32: #{_forward_impl.6} parent=19 // pred_fallthru
        _
    $region20: #{_forward_impl.6} parent=5 // pred_fallthru
      _
    %p304 = scmp.le.s32.totalorder 1, %s13
    %p305 = scmp.lt.s32.totalorder %s13, 3
    %p306 = pnand %p304, %p305
    %p307 = pneg %p306
    // Predicated region
    $region33: #{_forward_impl.6} parent=5 // pred_check
      _
    $region34: #{_forward_impl.6} parent=5 // pred_check_branch
      %309 = sbr.rel (%p306) target = $region36
    $region35: #{_forward_impl.6} parent=5 // pred_region
      %s310 = ssub.s32 %s13, 1
      %s311 = smul.u32 16, %s23
      %s312 = ssub.s32 18, %s311
      %p313 = scmp.lt.s32.totalorder %s312, 16
      %s314 = scalar_select %p313, %s312, 16
      %s315 = smul.u32 128, %s314
      %s316 = smul.u32 %s315, 3
      %p317 = scmp.lt.s32.totalorder %s22, 1
      %s318 = scalar_select %p317, %s22, 1
      %p319 = scmp.lt.s32.totalorder %s311, 17
      %s320 = scalar_select %p319, %s311, 17
      %s321 = smul.addr %s320, 3
      %s322 = smul.addr %s318, 54
      %s323 = sadd.s32 %s321, %s322
      %s324 = smul.addr %s323, 8
      %s325 = scalar_lea.vmem %s0, %s324
      %p326 = pneg %p53
      %p327 = pneg %p50
      %s328 = sadd.s32 %s23, 1
      %s329 = smul.u32 %s328, 16
      %p330 = scmp.lt.s32.totalorder %s22, 1
      %s331 = scalar_select %p330, %s22, 1
      %p332 = scmp.lt.s32.totalorder %s329, 17
      %s333 = scalar_select %p332, %s329, 17
      %s334 = smul.addr %s333, 3
      %s335 = smul.addr %s331, 54
      %s336 = sadd.s32 %s334, %s335
      %s337 = smul.addr %s336, 8
      %s338 = scalar_lea.vmem %s1, %s337
      %p339 = pneg %p85
      %p340 = pneg %p82
      %s341 = sadd.s32 %s23, 1
      %s342 = smul.u32 %s341, 16
      %s343 = sadd.s32 %s342, 1
      %p344 = scmp.lt.s32.totalorder %s22, 1
      %s345 = scalar_select %p344, %s22, 1
      %p346 = scmp.lt.s32.totalorder %s343, 17
      %s347 = scalar_select %p346, %s343, 17
      %s348 = smul.addr %s347, 3
      %s349 = smul.addr %s345, 54
      %s350 = sadd.s32 %s348, %s349
      %s351 = smul.addr %s350, 8
      %s352 = scalar_lea.vmem %s2, %s351
      %p353 = pneg %p119
      %p354 = pneg %p116
      %p355 = pneg %p140
      %p356 = pneg %p137
      %p357 = pneg %p168
      %p358 = pneg %p165
      %s359 = sadd.s32 %s22, %s23
      %s360 = smul.u32 32, %s359
      %p361 = scmp.lt.s32.totalorder %s360, 63
      %s362 = scalar_select %p361, %s360, 63
      %s363 = smul.addr %s362, 8
      %s364 = scalar_lea.vmem %s4, %s363
      %p365 = pneg %p196
      %p366 = pneg %p193
      %p367 = scmp.lt.s32.totalorder %s22, 1
      %s368 = scalar_select %p367, %s22, 1
      %p369 = scmp.lt.s32.totalorder %s23, 0
      %s370 = scalar_select %p369, %s23, 0
      %s371 = sadd.s32 %s370, %s368
      %s372 = scalar_lea.vmem %s5, %s371
      %p373 = pneg %p224
      %p374 = pneg %p221
      %p375 = scmp.lt.s32.totalorder %s22, 1
      %s376 = scalar_select %p375, %s22, 1
      %p377 = scmp.lt.s32.totalorder %s23, 0
      %s378 = scalar_select %p377, %s23, 0
      %s379 = sadd.s32 %s378, %s376
      %s380 = scalar_lea.vmem %s6, %s379
      %s381 = smul.u32 16, %s23
      %s382 = ssub.s32 18, %s381
      %p383 = scmp.lt.s32.totalorder %s382, 16
      %s384 = scalar_select %p383, %s382, 16
      %s385 = smul.u32 128, %s384
      %s386 = smul.u32 %s385, 3
      %p387 = scmp.lt.s32.totalorder %s22, 1
      %s388 = scalar_select %p387, %s22, 1
      %p389 = scmp.lt.s32.totalorder %s381, 17
      %s390 = scalar_select %p389, %s381, 17
      %s391 = smul.addr %s390, 3
      %s392 = smul.addr %s388, 54
      %s393 = sadd.s32 %s391, %s392
      %s394 = smul.addr %s393, 8
      %s395 = scalar_lea.vmem %s0, %s394
      %s396 = smul.u32 16, %s23
      %s397 = ssub.s32 18, %s396
      %p398 = scmp.lt.s32.totalorder %s397, 16
      %s399 = scalar_select %p398, %s397, 16
      %s400 = smul.u32 128, %s399
      %s401 = smul.u32 %s400, 3
      %s402 = sadd.s32 %s23, 1
      %s403 = smul.u32 %s402, 16
      %p404 = scmp.lt.s32.totalorder %s22, 1
      %s405 = scalar_select %p404, %s22, 1
      %p406 = scmp.lt.s32.totalorder %s403, 17
      %s407 = scalar_select %p406, %s403, 17
      %s408 = smul.addr %s407, 3
      %s409 = smul.addr %s405, 54
      %s410 = sadd.s32 %s408, %s409
      %s411 = smul.addr %s410, 8
      %s412 = scalar_lea.vmem %s1, %s411
      %s413 = sadd.s32 %s23, 1
      %s414 = smul.u32 %s413, 16
      %s415 = sadd.s32 %s23, 1
      %s416 = smul.u32 %s415, 16
      %s417 = sadd.s32 %s416, 1
      %p418 = scmp.lt.s32.totalorder %s22, 1
      %s419 = scalar_select %p418, %s22, 1
      %p420 = scmp.lt.s32.totalorder %s417, 17
      %s421 = scalar_select %p420, %s417, 17
      %s422 = smul.addr %s421, 3
      %s423 = smul.addr %s419, 54
      %s424 = sadd.s32 %s422, %s423
      %s425 = smul.addr %s424, 8
      %s426 = scalar_lea.vmem %s2, %s425
      %s427 = sadd.s32 %s23, 1
      %s428 = smul.u32 %s427, 16
      %s429 = sadd.s32 %s428, 1
      %s430 = sadd.s32 %s22, %s23
      %s431 = smul.u32 32, %s430
      %p432 = scmp.lt.s32.totalorder %s431, 63
      %s433 = scalar_select %p432, %s431, 63
      %s434 = smul.addr %s433, 8
      %s435 = scalar_lea.vmem %s4, %s434
      %s436 = sadd.s32 %s22, %s23
      %s437 = smul.u32 32, %s436
      %p438 = scmp.lt.s32.totalorder %s22, 1
      %s439 = scalar_select %p438, %s22, 1
      %p440 = scmp.lt.s32.totalorder %s23, 0
      %s441 = scalar_select %p440, %s23, 0
      %s442 = sadd.s32 %s441, %s439
      %s443 = scalar_lea.vmem %s5, %s442
      %p444 = scmp.lt.s32.totalorder %s22, 1
      %s445 = scalar_select %p444, %s22, 1
      %p446 = scmp.lt.s32.totalorder %s23, 0
      %s447 = scalar_select %p446, %s23, 0
      %s448 = sadd.s32 %s447, %s445
      %s449 = scalar_lea.vmem %s6, %s448
      %v450 = vld [vmem:[%s395] sm:$0xff]
      %v451 = vld [vmem:[%s395 + $0x8] sm:$0xff]
      %v452 = vld [vmem:[%s395 + $0x10] sm:$0x3]
      %v453 = vld [vmem:[%s395 + $0x18] sm:$0xff]
      %v454 = vld [vmem:[%s395 + $0x20] sm:$0xff]
      %v455 = vld [vmem:[%s395 + $0x28] sm:$0x3]
      %v456 = vld [vmem:[%s395 + $0x30] sm:$0xff]
      %v457 = vld [vmem:[%s395 + $0x38] sm:$0xff]
      %v458 = vld [vmem:[%s395 + $0x40] sm:$0x3]
      %v459 = vld [vmem:[%s395 + $0x48] sm:$0xff]
      %v460 = vld [vmem:[%s395 + $0x50] sm:$0xff]
      %v461 = vld [vmem:[%s395 + $0x58] sm:$0x3]
      %v462 = vld [vmem:[%s395 + $0x60] sm:$0xff]
      %v463 = vld [vmem:[%s395 + $0x68] sm:$0xff]
      %v464 = vld [vmem:[%s395 + $0x70] sm:$0x3]
      %v465 = vld [vmem:[%s395 + $0x78] sm:$0xff]
      %v466 = vld [vmem:[%s395 + $0x80] sm:$0xff]
      %v467 = vld [vmem:[%s395 + $0x88] sm:$0x3]
      %v468 = vld [vmem:[%s395 + $0x90] sm:$0xff]
      %v469 = vld [vmem:[%s395 + $0x98] sm:$0xff]
      %v470 = vld [vmem:[%s395 + $0xa0] sm:$0x3]
      %v471 = vld [vmem:[%s395 + $0xa8] sm:$0xff]
      %v472 = vld [vmem:[%s395 + $0xb0] sm:$0xff]
      %v473 = vld [vmem:[%s395 + $0xb8] sm:$0x3]
      %v474 = vld [vmem:[%s395 + $0xc0] sm:$0xff]
      %v475 = vld [vmem:[%s395 + $0xc8] sm:$0xff]
      %v476 = vld [vmem:[%s395 + $0xd0] sm:$0x3]
      %v477 = vld [vmem:[%s395 + $0xd8] sm:$0xff]
      %v478 = vld [vmem:[%s395 + $0xe0] sm:$0xff]
      %v479 = vld [vmem:[%s395 + $0xe8] sm:$0x3]
      %v480 = vld [vmem:[%s395 + $0xf0] sm:$0xff]
      %v481 = vld [vmem:[%s395 + $0xf8] sm:$0xff]
      %v482 = vld [vmem:[%s395 + $0x100] sm:$0x3]
      %v483 = vld [vmem:[%s395 + $0x108] sm:$0xff]
      %v484 = vld [vmem:[%s395 + $0x110] sm:$0xff]
      %v485 = vld [vmem:[%s395 + $0x118] sm:$0x3]
      %v486 = vld [vmem:[%s395 + $0x120] sm:$0xff]
      %v487 = vld [vmem:[%s395 + $0x128] sm:$0xff]
      %v488 = vld [vmem:[%s395 + $0x130] sm:$0x3]
      %v489 = vld [vmem:[%s395 + $0x138] sm:$0xff]
      %v490 = vld [vmem:[%s395 + $0x140] sm:$0xff]
      %v491 = vld [vmem:[%s395 + $0x148] sm:$0x3]
      %v492 = vld [vmem:[%s395 + $0x150] sm:$0xff]
      %v493 = vld [vmem:[%s395 + $0x158] sm:$0xff]
      %v494 = vld [vmem:[%s395 + $0x160] sm:$0x3]
      %v495 = vld [vmem:[%s395 + $0x168] sm:$0xff]
      %v496 = vld [vmem:[%s395 + $0x170] sm:$0xff]
      %v497 = vld [vmem:[%s395 + $0x178] sm:$0x3]
      %v498 = vld [vmem:[%s412] sm:$0xff]
      %v499 = vld [vmem:[%s412 + $0x8] sm:$0xff]
      %v500 = vld [vmem:[%s412 + $0x10] sm:$0x3]
      %v501 = vld [vmem:[%s426] sm:$0xff]
      %v502 = vld [vmem:[%s426 + $0x8] sm:$0xff]
      %v503 = vld [vmem:[%s426 + $0x10] sm:$0x3]
      %vm552 = vcmask 1046528
      %v553 = vrot.slane %v450, 1
      %v554 = vrot.slane %v451, 1
      %v555 = vsel %vm552, %v553, %v554
      %v556 = vrot.slane %v452, 1
      %v557 = vsel %vm552, %v554, %v556
      %v558 = vrot.slane %v453, 1
      %v559 = vrot.slane %v454, 1
      %v560 = vsel %vm552, %v558, %v559
      %v561 = vrot.slane %v455, 1
      %v562 = vsel %vm552, %v559, %v561
      %v563 = vrot.slane %v456, 1
      %v564 = vrot.slane %v457, 1
      %v565 = vsel %vm552, %v563, %v564
      %v566 = vrot.slane %v458, 1
      %v567 = vsel %vm552, %v564, %v566
      %v568 = vrot.slane %v459, 1
      %v569 = vrot.slane %v460, 1
      %v570 = vsel %vm552, %v568, %v569
      %v571 = vrot.slane %v461, 1
      %v572 = vsel %vm552, %v569, %v571
      %v573 = vrot.slane %v462, 1
      %v574 = vrot.slane %v463, 1
      %v575 = vsel %vm552, %v573, %v574
      %v576 = vrot.slane %v464, 1
      %v577 = vsel %vm552, %v574, %v576
      %v578 = vrot.slane %v465, 1
      %v579 = vrot.slane %v466, 1
      %v580 = vsel %vm552, %v578, %v579
      %v581 = vrot.slane %v467, 1
      %v582 = vsel %vm552, %v579, %v581
      %v583 = vrot.slane %v468, 1
      %v584 = vrot.slane %v469, 1
      %v585 = vsel %vm552, %v583, %v584
      %v586 = vrot.slane %v470, 1
      %v587 = vsel %vm552, %v584, %v586
      %v588 = vrot.slane %v471, 1
      %v589 = vrot.slane %v472, 1
      %v590 = vsel %vm552, %v588, %v589
      %v591 = vrot.slane %v473, 1
      %v592 = vsel %vm552, %v589, %v591
      %v593 = vrot.slane %v474, 1
      %v594 = vrot.slane %v475, 1
      %v595 = vsel %vm552, %v593, %v594
      %v596 = vrot.slane %v476, 1
      %v597 = vsel %vm552, %v594, %v596
      %v598 = vrot.slane %v477, 1
      %v599 = vrot.slane %v478, 1
      %v600 = vsel %vm552, %v598, %v599
      %v601 = vrot.slane %v479, 1
      %v602 = vsel %vm552, %v599, %v601
      %v603 = vrot.slane %v480, 1
      %v604 = vrot.slane %v481, 1
      %v605 = vsel %vm552, %v603, %v604
      %v606 = vrot.slane %v482, 1
      %v607 = vsel %vm552, %v604, %v606
      %v608 = vrot.slane %v483, 1
      %v609 = vrot.slane %v484, 1
      %v610 = vsel %vm552, %v608, %v609
      %v611 = vrot.slane %v485, 1
      %v612 = vsel %vm552, %v609, %v611
      %v613 = vrot.slane %v486, 1
      %v614 = vrot.slane %v487, 1
      %v615 = vsel %vm552, %v613, %v614
      %v616 = vrot.slane %v488, 1
      %v617 = vsel %vm552, %v614, %v616
      %v618 = vrot.slane %v489, 1
      %v619 = vrot.slane %v490, 1
      %v620 = vsel %vm552, %v618, %v619
      %v621 = vrot.slane %v491, 1
      %v622 = vsel %vm552, %v619, %v621
      %v623 = vrot.slane %v492, 1
      %v624 = vrot.slane %v493, 1
      %v625 = vsel %vm552, %v623, %v624
      %v626 = vrot.slane %v494, 1
      %v627 = vsel %vm552, %v624, %v626
      %v628 = vrot.slane %v495, 1
      %v629 = vrot.slane %v496, 1
      %v630 = vsel %vm552, %v628, %v629
      %v631 = vrot.slane %v497, 1
      %v632 = vsel %vm552, %v629, %v631
      %vm633 = vcmask 1045504
      %v634 = vrot.slane %v450, 2
      %v635 = vrot.slane %v451, 2
      %v636 = vsel %vm633, %v634, %v635
      %v637 = vrot.slane %v452, 2
      %v638 = vsel %vm633, %v635, %v637
      %v639 = vrot.slane %v453, 2
      %v640 = vrot.slane %v454, 2
      %v641 = vsel %vm633, %v639, %v640
      %v642 = vrot.slane %v455, 2
      %v643 = vsel %vm633, %v640, %v642
      %v644 = vrot.slane %v456, 2
      %v645 = vrot.slane %v457, 2
      %v646 = vsel %vm633, %v644, %v645
      %v647 = vrot.slane %v458, 2
      %v648 = vsel %vm633, %v645, %v647
      %v649 = vrot.slane %v459, 2
      %v650 = vrot.slane %v460, 2
      %v651 = vsel %vm633, %v649, %v650
      %v652 = vrot.slane %v461, 2
      %v653 = vsel %vm633, %v650, %v652
      %v654 = vrot.slane %v462, 2
      %v655 = vrot.slane %v463, 2
      %v656 = vsel %vm633, %v654, %v655
      %v657 = vrot.slane %v464, 2
      %v658 = vsel %vm633, %v655, %v657
      %v659 = vrot.slane %v465, 2
      %v660 = vrot.slane %v466, 2
      %v661 = vsel %vm633, %v659, %v660
      %v662 = vrot.slane %v467, 2
      %v663 = vsel %vm633, %v660, %v662
      %v664 = vrot.slane %v468, 2
      %v665 = vrot.slane %v469, 2
      %v666 = vsel %vm633, %v664, %v665
      %v667 = vrot.slane %v470, 2
      %v668 = vsel %vm633, %v665, %v667
      %v669 = vrot.slane %v471, 2
      %v670 = vrot.slane %v472, 2
      %v671 = vsel %vm633, %v669, %v670
      %v672 = vrot.slane %v473, 2
      %v673 = vsel %vm633, %v670, %v672
      %v674 = vrot.slane %v474, 2
      %v675 = vrot.slane %v475, 2
      %v676 = vsel %vm633, %v674, %v675
      %v677 = vrot.slane %v476, 2
      %v678 = vsel %vm633, %v675, %v677
      %v679 = vrot.slane %v477, 2
      %v680 = vrot.slane %v478, 2
      %v681 = vsel %vm633, %v679, %v680
      %v682 = vrot.slane %v479, 2
      %v683 = vsel %vm633, %v680, %v682
      %v684 = vrot.slane %v480, 2
      %v685 = vrot.slane %v481, 2
      %v686 = vsel %vm633, %v684, %v685
      %v687 = vrot.slane %v482, 2
      %v688 = vsel %vm633, %v685, %v687
      %v689 = vrot.slane %v483, 2
      %v690 = vrot.slane %v484, 2
      %v691 = vsel %vm633, %v689, %v690
      %v692 = vrot.slane %v485, 2
      %v693 = vsel %vm633, %v690, %v692
      %v694 = vrot.slane %v486, 2
      %v695 = vrot.slane %v487, 2
      %v696 = vsel %vm633, %v694, %v695
      %v697 = vrot.slane %v488, 2
      %v698 = vsel %vm633, %v695, %v697
      %v699 = vrot.slane %v489, 2
      %v700 = vrot.slane %v490, 2
      %v701 = vsel %vm633, %v699, %v700
      %v702 = vrot.slane %v491, 2
      %v703 = vsel %vm633, %v700, %v702
      %v704 = vrot.slane %v492, 2
      %v705 = vrot.slane %v493, 2
      %v706 = vsel %vm633, %v704, %v705
      %v707 = vrot.slane %v494, 2
      %v708 = vsel %vm633, %v705, %v707
      %v709 = vrot.slane %v495, 2
      %v710 = vrot.slane %v496, 2
      %v711 = vsel %vm633, %v709, %v710
      %v712 = vrot.slane %v497, 2
      %v713 = vsel %vm633, %v710, %v712
      %v717 = vrot.slane %v498, 1
      %v718 = vrot.slane %v499, 1
      %v719 = vsel %vm552, %v717, %v718
      %v720 = vrot.slane %v500, 1
      %v721 = vsel %vm552, %v718, %v720
      %v722 = vrot.slane %v498, 2
      %v723 = vrot.slane %v499, 2
      %v724 = vsel %vm633, %v722, %v723
      %v725 = vrot.slane %v500, 2
      %v726 = vsel %vm633, %v723, %v725
      %v730 = vrot.slane %v501, 1
      %v731 = vrot.slane %v502, 1
      %v732 = vsel %vm552, %v730, %v731
      %v733 = vrot.slane %v503, 1
      %v734 = vsel %vm552, %v731, %v733
      %v735 = vrot.slane %v501, 2
      %v736 = vrot.slane %v502, 2
      %v737 = vsel %vm633, %v735, %v736
      %v738 = vrot.slane %v503, 2
      %v739 = vsel %vm633, %v736, %v738
      %740 = vrot.lane.b32.xlu0 %v555, 4
      %v741 = vpop.permute.xlu0 %740
      %742 = vrot.lane.b32.xlu0 %v557, 4
      %v743 = vpop.permute.xlu0 %742
      %744 = vrot.lane.b32.xlu0 %v560, 4
      %v745 = vpop.permute.xlu0 %744
      %746 = vrot.lane.b32.xlu0 %v562, 4
      %v747 = vpop.permute.xlu0 %746
      %748 = vrot.lane.b32.xlu0 %v565, 4
      %v749 = vpop.permute.xlu0 %748
      %750 = vrot.lane.b32.xlu0 %v567, 4
      %v751 = vpop.permute.xlu0 %750
      %752 = vrot.lane.b32.xlu0 %v570, 4
      %v753 = vpop.permute.xlu0 %752
      %754 = vrot.lane.b32.xlu0 %v572, 4
      %v755 = vpop.permute.xlu0 %754
      %756 = vrot.lane.b32.xlu0 %v575, 4
      %v757 = vpop.permute.xlu0 %756
      %758 = vrot.lane.b32.xlu0 %v577, 4
      %v759 = vpop.permute.xlu0 %758
      %760 = vrot.lane.b32.xlu0 %v580, 4
      %v761 = vpop.permute.xlu0 %760
      %762 = vrot.lane.b32.xlu0 %v582, 4
      %v763 = vpop.permute.xlu0 %762
      %764 = vrot.lane.b32.xlu0 %v585, 4
      %v765 = vpop.permute.xlu0 %764
      %766 = vrot.lane.b32.xlu0 %v587, 4
      %v767 = vpop.permute.xlu0 %766
      %768 = vrot.lane.b32.xlu0 %v590, 4
      %v769 = vpop.permute.xlu0 %768
      %770 = vrot.lane.b32.xlu0 %v592, 4
      %v771 = vpop.permute.xlu0 %770
      %772 = vrot.lane.b32.xlu0 %v595, 4
      %v773 = vpop.permute.xlu0 %772
      %774 = vrot.lane.b32.xlu0 %v597, 4
      %v775 = vpop.permute.xlu0 %774
      %776 = vrot.lane.b32.xlu0 %v600, 4
      %v777 = vpop.permute.xlu0 %776
      %778 = vrot.lane.b32.xlu0 %v602, 4
      %v779 = vpop.permute.xlu0 %778
      %780 = vrot.lane.b32.xlu0 %v605, 4
      %v781 = vpop.permute.xlu0 %780
      %782 = vrot.lane.b32.xlu0 %v607, 4
      %v783 = vpop.permute.xlu0 %782
      %784 = vrot.lane.b32.xlu0 %v610, 4
      %v785 = vpop.permute.xlu0 %784
      %786 = vrot.lane.b32.xlu0 %v612, 4
      %v787 = vpop.permute.xlu0 %786
      %788 = vrot.lane.b32.xlu0 %v615, 4
      %v789 = vpop.permute.xlu0 %788
      %790 = vrot.lane.b32.xlu0 %v617, 4
      %v791 = vpop.permute.xlu0 %790
      %792 = vrot.lane.b32.xlu0 %v620, 4
      %v793 = vpop.permute.xlu0 %792
      %794 = vrot.lane.b32.xlu0 %v622, 4
      %v795 = vpop.permute.xlu0 %794
      %796 = vrot.lane.b32.xlu0 %v625, 4
      %v797 = vpop.permute.xlu0 %796
      %798 = vrot.lane.b32.xlu0 %v627, 4
      %v799 = vpop.permute.xlu0 %798
      %800 = vrot.lane.b32.xlu0 %v630, 4
      %v801 = vpop.permute.xlu0 %800
      %802 = vrot.lane.b32.xlu0 %v632, 4
      %v803 = vpop.permute.xlu0 %802
      %836 = vrot.lane.b32.xlu0 %v636, 8
      %v837 = vpop.permute.xlu0 %836
      %838 = vrot.lane.b32.xlu0 %v638, 8
      %v839 = vpop.permute.xlu0 %838
      %840 = vrot.lane.b32.xlu0 %v641, 8
      %v841 = vpop.permute.xlu0 %840
      %842 = vrot.lane.b32.xlu0 %v643, 8
      %v843 = vpop.permute.xlu0 %842
      %844 = vrot.lane.b32.xlu0 %v646, 8
      %v845 = vpop.permute.xlu0 %844
      %846 = vrot.lane.b32.xlu0 %v648, 8
      %v847 = vpop.permute.xlu0 %846
      %848 = vrot.lane.b32.xlu0 %v651, 8
      %v849 = vpop.permute.xlu0 %848
      %850 = vrot.lane.b32.xlu0 %v653, 8
      %v851 = vpop.permute.xlu0 %850
      %852 = vrot.lane.b32.xlu0 %v656, 8
      %v853 = vpop.permute.xlu0 %852
      %854 = vrot.lane.b32.xlu0 %v658, 8
      %v855 = vpop.permute.xlu0 %854
      %856 = vrot.lane.b32.xlu0 %v661, 8
      %v857 = vpop.permute.xlu0 %856
      %858 = vrot.lane.b32.xlu0 %v663, 8
      %v859 = vpop.permute.xlu0 %858
      %860 = vrot.lane.b32.xlu0 %v666, 8
      %v861 = vpop.permute.xlu0 %860
      %862 = vrot.lane.b32.xlu0 %v668, 8
      %v863 = vpop.permute.xlu0 %862
      %864 = vrot.lane.b32.xlu0 %v671, 8
      %v865 = vpop.permute.xlu0 %864
      %866 = vrot.lane.b32.xlu0 %v673, 8
      %v867 = vpop.permute.xlu0 %866
      %868 = vrot.lane.b32.xlu0 %v676, 8
      %v869 = vpop.permute.xlu0 %868
      %870 = vrot.lane.b32.xlu0 %v678, 8
      %v871 = vpop.permute.xlu0 %870
      %872 = vrot.lane.b32.xlu0 %v681, 8
      %v873 = vpop.permute.xlu0 %872
      %874 = vrot.lane.b32.xlu0 %v683, 8
      %v875 = vpop.permute.xlu0 %874
      %876 = vrot.lane.b32.xlu0 %v686, 8
      %v877 = vpop.permute.xlu0 %876
      %878 = vrot.lane.b32.xlu0 %v688, 8
      %v879 = vpop.permute.xlu0 %878
      %880 = vrot.lane.b32.xlu0 %v691, 8
      %v881 = vpop.permute.xlu0 %880
      %882 = vrot.lane.b32.xlu0 %v693, 8
      %v883 = vpop.permute.xlu0 %882
      %884 = vrot.lane.b32.xlu0 %v696, 8
      %v885 = vpop.permute.xlu0 %884
      %886 = vrot.lane.b32.xlu0 %v698, 8
      %v887 = vpop.permute.xlu0 %886
      %888 = vrot.lane.b32.xlu0 %v701, 8
      %v889 = vpop.permute.xlu0 %888
      %890 = vrot.lane.b32.xlu0 %v703, 8
      %v891 = vpop.permute.xlu0 %890
      %892 = vrot.lane.b32.xlu0 %v706, 8
      %v893 = vpop.permute.xlu0 %892
      %894 = vrot.lane.b32.xlu0 %v708, 8
      %v895 = vpop.permute.xlu0 %894
      %896 = vrot.lane.b32.xlu0 %v711, 8
      %v897 = vpop.permute.xlu0 %896
      %898 = vrot.lane.b32.xlu0 %v713, 8
      %v899 = vpop.permute.xlu0 %898
      %932 = vrot.lane.b32.xlu0 %v453, 12
      %v933 = vpop.permute.xlu0 %932
      %934 = vrot.lane.b32.xlu0 %v454, 12
      %v935 = vpop.permute.xlu0 %934
      %936 = vrot.lane.b32.xlu0 %v456, 12
      %v937 = vpop.permute.xlu0 %936
      %938 = vrot.lane.b32.xlu0 %v457, 12
      %v939 = vpop.permute.xlu0 %938
      %940 = vrot.lane.b32.xlu0 %v459, 12
      %v941 = vpop.permute.xlu0 %940
      %942 = vrot.lane.b32.xlu0 %v460, 12
      %v943 = vpop.permute.xlu0 %942
      %944 = vrot.lane.b32.xlu0 %v462, 12
      %v945 = vpop.permute.xlu0 %944
      %946 = vrot.lane.b32.xlu0 %v463, 12
      %v947 = vpop.permute.xlu0 %946
      %948 = vrot.lane.b32.xlu0 %v465, 12
      %v949 = vpop.permute.xlu0 %948
      %950 = vrot.lane.b32.xlu0 %v466, 12
      %v951 = vpop.permute.xlu0 %950
      %952 = vrot.lane.b32.xlu0 %v468, 12
      %v953 = vpop.permute.xlu0 %952
      %954 = vrot.lane.b32.xlu0 %v469, 12
      %v955 = vpop.permute.xlu0 %954
      %956 = vrot.lane.b32.xlu0 %v471, 12
      %v957 = vpop.permute.xlu0 %956
      %958 = vrot.lane.b32.xlu0 %v472, 12
      %v959 = vpop.permute.xlu0 %958
      %960 = vrot.lane.b32.xlu0 %v474, 12
      %v961 = vpop.permute.xlu0 %960
      %962 = vrot.lane.b32.xlu0 %v475, 12
      %v963 = vpop.permute.xlu0 %962
      %964 = vrot.lane.b32.xlu0 %v477, 12
      %v965 = vpop.permute.xlu0 %964
      %966 = vrot.lane.b32.xlu0 %v478, 12
      %v967 = vpop.permute.xlu0 %966
      %968 = vrot.lane.b32.xlu0 %v480, 12
      %v969 = vpop.permute.xlu0 %968
      %970 = vrot.lane.b32.xlu0 %v481, 12
      %v971 = vpop.permute.xlu0 %970
      %972 = vrot.lane.b32.xlu0 %v483, 12
      %v973 = vpop.permute.xlu0 %972
      %974 = vrot.lane.b32.xlu0 %v484, 12
      %v975 = vpop.permute.xlu0 %974
      %976 = vrot.lane.b32.xlu0 %v486, 12
      %v977 = vpop.permute.xlu0 %976
      %978 = vrot.lane.b32.xlu0 %v487, 12
      %v979 = vpop.permute.xlu0 %978
      %980 = vrot.lane.b32.xlu0 %v489, 12
      %v981 = vpop.permute.xlu0 %980
      %982 = vrot.lane.b32.xlu0 %v490, 12
      %v983 = vpop.permute.xlu0 %982
      %984 = vrot.lane.b32.xlu0 %v492, 12
      %v985 = vpop.permute.xlu0 %984
      %986 = vrot.lane.b32.xlu0 %v493, 12
      %v987 = vpop.permute.xlu0 %986
      %988 = vrot.lane.b32.xlu0 %v495, 12
      %v989 = vpop.permute.xlu0 %988
      %990 = vrot.lane.b32.xlu0 %v496, 12
      %v991 = vpop.permute.xlu0 %990
      %992 = vrot.lane.b32.xlu0 %v498, 12
      %v993 = vpop.permute.xlu0 %992
      %994 = vrot.lane.b32.xlu0 %v499, 12
      %v995 = vpop.permute.xlu0 %994
      %1028 = vrot.lane.b32.xlu0 %v560, 16
      %v1029 = vpop.permute.xlu0 %1028
      %1030 = vrot.lane.b32.xlu0 %v562, 16
      %v1031 = vpop.permute.xlu0 %1030
      %1032 = vrot.lane.b32.xlu0 %v565, 16
      %v1033 = vpop.permute.xlu0 %1032
      %1034 = vrot.lane.b32.xlu0 %v567, 16
      %v1035 = vpop.permute.xlu0 %1034
      %1036 = vrot.lane.b32.xlu0 %v570, 16
      %v1037 = vpop.permute.xlu0 %1036
      %1038 = vrot.lane.b32.xlu0 %v572, 16
      %v1039 = vpop.permute.xlu0 %1038
      %1040 = vrot.lane.b32.xlu0 %v575, 16
      %v1041 = vpop.permute.xlu0 %1040
      %1042 = vrot.lane.b32.xlu0 %v577, 16
      %v1043 = vpop.permute.xlu0 %1042
      %1044 = vrot.lane.b32.xlu0 %v580, 16
      %v1045 = vpop.permute.xlu0 %1044
      %1046 = vrot.lane.b32.xlu0 %v582, 16
      %v1047 = vpop.permute.xlu0 %1046
      %1048 = vrot.lane.b32.xlu0 %v585, 16
      %v1049 = vpop.permute.xlu0 %1048
      %1050 = vrot.lane.b32.xlu0 %v587, 16
      %v1051 = vpop.permute.xlu0 %1050
      %1052 = vrot.lane.b32.xlu0 %v590, 16
      %v1053 = vpop.permute.xlu0 %1052
      %1054 = vrot.lane.b32.xlu0 %v592, 16
      %v1055 = vpop.permute.xlu0 %1054
      %1056 = vrot.lane.b32.xlu0 %v595, 16
      %v1057 = vpop.permute.xlu0 %1056
      %1058 = vrot.lane.b32.xlu0 %v597, 16
      %v1059 = vpop.permute.xlu0 %1058
      %1060 = vrot.lane.b32.xlu0 %v600, 16
      %v1061 = vpop.permute.xlu0 %1060
      %1062 = vrot.lane.b32.xlu0 %v602, 16
      %v1063 = vpop.permute.xlu0 %1062
      %1064 = vrot.lane.b32.xlu0 %v605, 16
      %v1065 = vpop.permute.xlu0 %1064
      %1066 = vrot.lane.b32.xlu0 %v607, 16
      %v1067 = vpop.permute.xlu0 %1066
      %1068 = vrot.lane.b32.xlu0 %v610, 16
      %v1069 = vpop.permute.xlu0 %1068
      %1070 = vrot.lane.b32.xlu0 %v612, 16
      %v1071 = vpop.permute.xlu0 %1070
      %1072 = vrot.lane.b32.xlu0 %v615, 16
      %v1073 = vpop.permute.xlu0 %1072
      %1074 = vrot.lane.b32.xlu0 %v617, 16
      %v1075 = vpop.permute.xlu0 %1074
      %1076 = vrot.lane.b32.xlu0 %v620, 16
      %v1077 = vpop.permute.xlu0 %1076
      %1078 = vrot.lane.b32.xlu0 %v622, 16
      %v1079 = vpop.permute.xlu0 %1078
      %1080 = vrot.lane.b32.xlu0 %v625, 16
      %v1081 = vpop.permute.xlu0 %1080
      %1082 = vrot.lane.b32.xlu0 %v627, 16
      %v1083 = vpop.permute.xlu0 %1082
      %1084 = vrot.lane.b32.xlu0 %v630, 16
      %v1085 = vpop.permute.xlu0 %1084
      %1086 = vrot.lane.b32.xlu0 %v632, 16
      %v1087 = vpop.permute.xlu0 %1086
      %1088 = vrot.lane.b32.xlu0 %v719, 16
      %v1089 = vpop.permute.xlu0 %1088
      %1090 = vrot.lane.b32.xlu0 %v721, 16
      %v1091 = vpop.permute.xlu0 %1090
      %1124 = vrot.lane.b32.xlu0 %v641, 20
      %v1125 = vpop.permute.xlu0 %1124
      %1126 = vrot.lane.b32.xlu0 %v643, 20
      %v1127 = vpop.permute.xlu0 %1126
      %1128 = vrot.lane.b32.xlu0 %v646, 20
      %v1129 = vpop.permute.xlu0 %1128
      %1130 = vrot.lane.b32.xlu0 %v648, 20
      %v1131 = vpop.permute.xlu0 %1130
      %1132 = vrot.lane.b32.xlu0 %v651, 20
      %v1133 = vpop.permute.xlu0 %1132
      %1134 = vrot.lane.b32.xlu0 %v653, 20
      %v1135 = vpop.permute.xlu0 %1134
      %1136 = vrot.lane.b32.xlu0 %v656, 20
      %v1137 = vpop.permute.xlu0 %1136
      %1138 = vrot.lane.b32.xlu0 %v658, 20
      %v1139 = vpop.permute.xlu0 %1138
      %1140 = vrot.lane.b32.xlu0 %v661, 20
      %v1141 = vpop.permute.xlu0 %1140
      %1142 = vrot.lane.b32.xlu0 %v663, 20
      %v1143 = vpop.permute.xlu0 %1142
      %1144 = vrot.lane.b32.xlu0 %v666, 20
      %v1145 = vpop.permute.xlu0 %1144
      %1146 = vrot.lane.b32.xlu0 %v668, 20
      %v1147 = vpop.permute.xlu0 %1146
      %1148 = vrot.lane.b32.xlu0 %v671, 20
      %v1149 = vpop.permute.xlu0 %1148
      %1150 = vrot.lane.b32.xlu0 %v673, 20
      %v1151 = vpop.permute.xlu0 %1150
      %1152 = vrot.lane.b32.xlu0 %v676, 20
      %v1153 = vpop.permute.xlu0 %1152
      %1154 = vrot.lane.b32.xlu0 %v678, 20
      %v1155 = vpop.permute.xlu0 %1154
      %1156 = vrot.lane.b32.xlu0 %v681, 20
      %v1157 = vpop.permute.xlu0 %1156
      %1158 = vrot.lane.b32.xlu0 %v683, 20
      %v1159 = vpop.permute.xlu0 %1158
      %1160 = vrot.lane.b32.xlu0 %v686, 20
      %v1161 = vpop.permute.xlu0 %1160
      %1162 = vrot.lane.b32.xlu0 %v688, 20
      %v1163 = vpop.permute.xlu0 %1162
      %1164 = vrot.lane.b32.xlu0 %v691, 20
      %v1165 = vpop.permute.xlu0 %1164
      %1166 = vrot.lane.b32.xlu0 %v693, 20
      %v1167 = vpop.permute.xlu0 %1166
      %1168 = vrot.lane.b32.xlu0 %v696, 20
      %v1169 = vpop.permute.xlu0 %1168
      %1170 = vrot.lane.b32.xlu0 %v698, 20
      %v1171 = vpop.permute.xlu0 %1170
      %1172 = vrot.lane.b32.xlu0 %v701, 20
      %v1173 = vpop.permute.xlu0 %1172
      %1174 = vrot.lane.b32.xlu0 %v703, 20
      %v1175 = vpop.permute.xlu0 %1174
      %1176 = vrot.lane.b32.xlu0 %v706, 20
      %v1177 = vpop.permute.xlu0 %1176
      %1178 = vrot.lane.b32.xlu0 %v708, 20
      %v1179 = vpop.permute.xlu0 %1178
      %1180 = vrot.lane.b32.xlu0 %v711, 20
      %v1181 = vpop.permute.xlu0 %1180
      %1182 = vrot.lane.b32.xlu0 %v713, 20
      %v1183 = vpop.permute.xlu0 %1182
      %1184 = vrot.lane.b32.xlu0 %v724, 20
      %v1185 = vpop.permute.xlu0 %1184
      %1186 = vrot.lane.b32.xlu0 %v726, 20
      %v1187 = vpop.permute.xlu0 %1186
      %1220 = vrot.lane.b32.xlu0 %v456, 24
      %v1221 = vpop.permute.xlu0 %1220
      %1222 = vrot.lane.b32.xlu0 %v457, 24
      %v1223 = vpop.permute.xlu0 %1222
      %1224 = vrot.lane.b32.xlu0 %v459, 24
      %v1225 = vpop.permute.xlu0 %1224
      %1226 = vrot.lane.b32.xlu0 %v460, 24
      %v1227 = vpop.permute.xlu0 %1226
      %1228 = vrot.lane.b32.xlu0 %v462, 24
      %v1229 = vpop.permute.xlu0 %1228
      %1230 = vrot.lane.b32.xlu0 %v463, 24
      %v1231 = vpop.permute.xlu0 %1230
      %1232 = vrot.lane.b32.xlu0 %v465, 24
      %v1233 = vpop.permute.xlu0 %1232
      %1234 = vrot.lane.b32.xlu0 %v466, 24
      %v1235 = vpop.permute.xlu0 %1234
      %1236 = vrot.lane.b32.xlu0 %v468, 24
      %v1237 = vpop.permute.xlu0 %1236
      %1238 = vrot.lane.b32.xlu0 %v469, 24
      %v1239 = vpop.permute.xlu0 %1238
      %1240 = vrot.lane.b32.xlu0 %v471, 24
      %v1241 = vpop.permute.xlu0 %1240
      %1242 = vrot.lane.b32.xlu0 %v472, 24
      %v1243 = vpop.permute.xlu0 %1242
      %1244 = vrot.lane.b32.xlu0 %v474, 24
      %v1245 = vpop.permute.xlu0 %1244
      %1246 = vrot.lane.b32.xlu0 %v475, 24
      %v1247 = vpop.permute.xlu0 %1246
      %1248 = vrot.lane.b32.xlu0 %v477, 24
      %v1249 = vpop.permute.xlu0 %1248
      %1250 = vrot.lane.b32.xlu0 %v478, 24
      %v1251 = vpop.permute.xlu0 %1250
      %1252 = vrot.lane.b32.xlu0 %v480, 24
      %v1253 = vpop.permute.xlu0 %1252
      %1254 = vrot.lane.b32.xlu0 %v481, 24
      %v1255 = vpop.permute.xlu0 %1254
      %1256 = vrot.lane.b32.xlu0 %v483, 24
      %v1257 = vpop.permute.xlu0 %1256
      %1258 = vrot.lane.b32.xlu0 %v484, 24
      %v1259 = vpop.permute.xlu0 %1258
      %1260 = vrot.lane.b32.xlu0 %v486, 24
      %v1261 = vpop.permute.xlu0 %1260
      %1262 = vrot.lane.b32.xlu0 %v487, 24
      %v1263 = vpop.permute.xlu0 %1262
      %1264 = vrot.lane.b32.xlu0 %v489, 24
      %v1265 = vpop.permute.xlu0 %1264
      %1266 = vrot.lane.b32.xlu0 %v490, 24
      %v1267 = vpop.permute.xlu0 %1266
      %1268 = vrot.lane.b32.xlu0 %v492, 24
      %v1269 = vpop.permute.xlu0 %1268
      %1270 = vrot.lane.b32.xlu0 %v493, 24
      %v1271 = vpop.permute.xlu0 %1270
      %1272 = vrot.lane.b32.xlu0 %v495, 24
      %v1273 = vpop.permute.xlu0 %1272
      %1274 = vrot.lane.b32.xlu0 %v496, 24
      %v1275 = vpop.permute.xlu0 %1274
      %1276 = vrot.lane.b32.xlu0 %v498, 24
      %v1277 = vpop.permute.xlu0 %1276
      %1278 = vrot.lane.b32.xlu0 %v499, 24
      %v1279 = vpop.permute.xlu0 %1278
      %1280 = vrot.lane.b32.xlu0 %v501, 24
      %v1281 = vpop.permute.xlu0 %1280
      %1282 = vrot.lane.b32.xlu0 %v502, 24
      %v1283 = vpop.permute.xlu0 %1282
      %1316 = vrot.lane.b32.xlu0 %v565, 28
      %v1317 = vpop.permute.xlu0 %1316
      %1318 = vrot.lane.b32.xlu0 %v567, 28
      %v1319 = vpop.permute.xlu0 %1318
      %1320 = vrot.lane.b32.xlu0 %v570, 28
      %v1321 = vpop.permute.xlu0 %1320
      %1322 = vrot.lane.b32.xlu0 %v572, 28
      %v1323 = vpop.permute.xlu0 %1322
      %1324 = vrot.lane.b32.xlu0 %v575, 28
      %v1325 = vpop.permute.xlu0 %1324
      %1326 = vrot.lane.b32.xlu0 %v577, 28
      %v1327 = vpop.permute.xlu0 %1326
      %1328 = vrot.lane.b32.xlu0 %v580, 28
      %v1329 = vpop.permute.xlu0 %1328
      %1330 = vrot.lane.b32.xlu0 %v582, 28
      %v1331 = vpop.permute.xlu0 %1330
      %1332 = vrot.lane.b32.xlu0 %v585, 28
      %v1333 = vpop.permute.xlu0 %1332
      %1334 = vrot.lane.b32.xlu0 %v587, 28
      %v1335 = vpop.permute.xlu0 %1334
      %1336 = vrot.lane.b32.xlu0 %v590, 28
      %v1337 = vpop.permute.xlu0 %1336
      %1338 = vrot.lane.b32.xlu0 %v592, 28
      %v1339 = vpop.permute.xlu0 %1338
      %1340 = vrot.lane.b32.xlu0 %v595, 28
      %v1341 = vpop.permute.xlu0 %1340
      %1342 = vrot.lane.b32.xlu0 %v597, 28
      %v1343 = vpop.permute.xlu0 %1342
      %1344 = vrot.lane.b32.xlu0 %v600, 28
      %v1345 = vpop.permute.xlu0 %1344
      %1346 = vrot.lane.b32.xlu0 %v602, 28
      %v1347 = vpop.permute.xlu0 %1346
      %1348 = vrot.lane.b32.xlu0 %v605, 28
      %v1349 = vpop.permute.xlu0 %1348
      %1350 = vrot.lane.b32.xlu0 %v607, 28
      %v1351 = vpop.permute.xlu0 %1350
      %1352 = vrot.lane.b32.xlu0 %v610, 28
      %v1353 = vpop.permute.xlu0 %1352
      %1354 = vrot.lane.b32.xlu0 %v612, 28
      %v1355 = vpop.permute.xlu0 %1354
      %1356 = vrot.lane.b32.xlu0 %v615, 28
      %v1357 = vpop.permute.xlu0 %1356
      %1358 = vrot.lane.b32.xlu0 %v617, 28
      %v1359 = vpop.permute.xlu0 %1358
      %1360 = vrot.lane.b32.xlu0 %v620, 28
      %v1361 = vpop.permute.xlu0 %1360
      %1362 = vrot.lane.b32.xlu0 %v622, 28
      %v1363 = vpop.permute.xlu0 %1362
      %1364 = vrot.lane.b32.xlu0 %v625, 28
      %v1365 = vpop.permute.xlu0 %1364
      %1366 = vrot.lane.b32.xlu0 %v627, 28
      %v1367 = vpop.permute.xlu0 %1366
      %1368 = vrot.lane.b32.xlu0 %v630, 28
      %v1369 = vpop.permute.xlu0 %1368
      %1370 = vrot.lane.b32.xlu0 %v632, 28
      %v1371 = vpop.permute.xlu0 %1370
      %1372 = vrot.lane.b32.xlu0 %v719, 28
      %v1373 = vpop.permute.xlu0 %1372
      %1374 = vrot.lane.b32.xlu0 %v721, 28
      %v1375 = vpop.permute.xlu0 %1374
      %1376 = vrot.lane.b32.xlu0 %v732, 28
      %v1377 = vpop.permute.xlu0 %1376
      %1378 = vrot.lane.b32.xlu0 %v734, 28
      %v1379 = vpop.permute.xlu0 %1378
      %1412 = vrot.lane.b32.xlu0 %v646, 32
      %v1413 = vpop.permute.xlu0 %1412
      %1414 = vrot.lane.b32.xlu0 %v648, 32
      %v1415 = vpop.permute.xlu0 %1414
      %1416 = vrot.lane.b32.xlu0 %v651, 32
      %v1417 = vpop.permute.xlu0 %1416
      %1418 = vrot.lane.b32.xlu0 %v653, 32
      %v1419 = vpop.permute.xlu0 %1418
      %1420 = vrot.lane.b32.xlu0 %v656, 32
      %v1421 = vpop.permute.xlu0 %1420
      %1422 = vrot.lane.b32.xlu0 %v658, 32
      %v1423 = vpop.permute.xlu0 %1422
      %1424 = vrot.lane.b32.xlu0 %v661, 32
      %v1425 = vpop.permute.xlu0 %1424
      %1426 = vrot.lane.b32.xlu0 %v663, 32
      %v1427 = vpop.permute.xlu0 %1426
      %1428 = vrot.lane.b32.xlu0 %v666, 32
      %v1429 = vpop.permute.xlu0 %1428
      %1430 = vrot.lane.b32.xlu0 %v668, 32
      %v1431 = vpop.permute.xlu0 %1430
      %1432 = vrot.lane.b32.xlu0 %v671, 32
      %v1433 = vpop.permute.xlu0 %1432
      %1434 = vrot.lane.b32.xlu0 %v673, 32
      %v1435 = vpop.permute.xlu0 %1434
      %1436 = vrot.lane.b32.xlu0 %v676, 32
      %v1437 = vpop.permute.xlu0 %1436
      %1438 = vrot.lane.b32.xlu0 %v678, 32
      %v1439 = vpop.permute.xlu0 %1438
      %1440 = vrot.lane.b32.xlu0 %v681, 32
      %v1441 = vpop.permute.xlu0 %1440
      %1442 = vrot.lane.b32.xlu0 %v683, 32
      %v1443 = vpop.permute.xlu0 %1442
      %1444 = vrot.lane.b32.xlu0 %v686, 32
      %v1445 = vpop.permute.xlu0 %1444
      %1446 = vrot.lane.b32.xlu0 %v688, 32
      %v1447 = vpop.permute.xlu0 %1446
      %1448 = vrot.lane.b32.xlu0 %v691, 32
      %v1449 = vpop.permute.xlu0 %1448
      %1450 = vrot.lane.b32.xlu0 %v693, 32
      %v1451 = vpop.permute.xlu0 %1450
      %1452 = vrot.lane.b32.xlu0 %v696, 32
      %v1453 = vpop.permute.xlu0 %1452
      %1454 = vrot.lane.b32.xlu0 %v698, 32
      %v1455 = vpop.permute.xlu0 %1454
      %1456 = vrot.lane.b32.xlu0 %v701, 32
      %v1457 = vpop.permute.xlu0 %1456
      %1458 = vrot.lane.b32.xlu0 %v703, 32
      %v1459 = vpop.permute.xlu0 %1458
      %1460 = vrot.lane.b32.xlu0 %v706, 32
      %v1461 = vpop.permute.xlu0 %1460
      %1462 = vrot.lane.b32.xlu0 %v708, 32
      %v1463 = vpop.permute.xlu0 %1462
      %1464 = vrot.lane.b32.xlu0 %v711, 32
      %v1465 = vpop.permute.xlu0 %1464
      %1466 = vrot.lane.b32.xlu0 %v713, 32
      %v1467 = vpop.permute.xlu0 %1466
      %1468 = vrot.lane.b32.xlu0 %v724, 32
      %v1469 = vpop.permute.xlu0 %1468
      %1470 = vrot.lane.b32.xlu0 %v726, 32
      %v1471 = vpop.permute.xlu0 %1470
      %1472 = vrot.lane.b32.xlu0 %v737, 32
      %v1473 = vpop.permute.xlu0 %1472
      %1474 = vrot.lane.b32.xlu0 %v739, 32
      %v1475 = vpop.permute.xlu0 %1474
      %vm1508 = vcmask 31744
      %v1509 = vsel %vm1508, %v450, %v741
      %v1510 = vsel %vm1508, %v451, %v743
      %v1511 = vsel %vm1508, %v453, %v745
      %v1512 = vsel %vm1508, %v454, %v747
      %v1513 = vsel %vm1508, %v456, %v749
      %v1514 = vsel %vm1508, %v457, %v751
      %v1515 = vsel %vm1508, %v459, %v753
      %v1516 = vsel %vm1508, %v460, %v755
      %v1517 = vsel %vm1508, %v462, %v757
      %v1518 = vsel %vm1508, %v463, %v759
      %v1519 = vsel %vm1508, %v465, %v761
      %v1520 = vsel %vm1508, %v466, %v763
      %v1521 = vsel %vm1508, %v468, %v765
      %v1522 = vsel %vm1508, %v469, %v767
      %v1523 = vsel %vm1508, %v471, %v769
      %v1524 = vsel %vm1508, %v472, %v771
      %v1525 = vsel %vm1508, %v474, %v773
      %v1526 = vsel %vm1508, %v475, %v775
      %v1527 = vsel %vm1508, %v477, %v777
      %v1528 = vsel %vm1508, %v478, %v779
      %v1529 = vsel %vm1508, %v480, %v781
      %v1530 = vsel %vm1508, %v481, %v783
      %v1531 = vsel %vm1508, %v483, %v785
      %v1532 = vsel %vm1508, %v484, %v787
      %v1533 = vsel %vm1508, %v486, %v789
      %v1534 = vsel %vm1508, %v487, %v791
      %v1535 = vsel %vm1508, %v489, %v793
      %v1536 = vsel %vm1508, %v490, %v795
      %v1537 = vsel %vm1508, %v492, %v797
      %v1538 = vsel %vm1508, %v493, %v799
      %v1539 = vsel %vm1508, %v495, %v801
      %v1540 = vsel %vm1508, %v496, %v803
      %vm1541 = vcmask 64512
      %v1542 = vsel %vm1541, %v1509, %v837
      %v1543 = vsel %vm1541, %v1510, %v839
      %v1544 = vsel %vm1541, %v1511, %v841
      %v1545 = vsel %vm1541, %v1512, %v843
      %v1546 = vsel %vm1541, %v1513, %v845
      %v1547 = vsel %vm1541, %v1514, %v847
      %v1548 = vsel %vm1541, %v1515, %v849
      %v1549 = vsel %vm1541, %v1516, %v851
      %v1550 = vsel %vm1541, %v1517, %v853
      %v1551 = vsel %vm1541, %v1518, %v855
      %v1552 = vsel %vm1541, %v1519, %v857
      %v1553 = vsel %vm1541, %v1520, %v859
      %v1554 = vsel %vm1541, %v1521, %v861
      %v1555 = vsel %vm1541, %v1522, %v863
      %v1556 = vsel %vm1541, %v1523, %v865
      %v1557 = vsel %vm1541, %v1524, %v867
      %v1558 = vsel %vm1541, %v1525, %v869
      %v1559 = vsel %vm1541, %v1526, %v871
      %v1560 = vsel %vm1541, %v1527, %v873
      %v1561 = vsel %vm1541, %v1528, %v875
      %v1562 = vsel %vm1541, %v1529, %v877
      %v1563 = vsel %vm1541, %v1530, %v879
      %v1564 = vsel %vm1541, %v1531, %v881
      %v1565 = vsel %vm1541, %v1532, %v883
      %v1566 = vsel %vm1541, %v1533, %v885
      %v1567 = vsel %vm1541, %v1534, %v887
      %v1568 = vsel %vm1541, %v1535, %v889
      %v1569 = vsel %vm1541, %v1536, %v891
      %v1570 = vsel %vm1541, %v1537, %v893
      %v1571 = vsel %vm1541, %v1538, %v895
      %v1572 = vsel %vm1541, %v1539, %v897
      %v1573 = vsel %vm1541, %v1540, %v899
      %vm1574 = vcmask 97280
      %v1575 = vsel %vm1574, %v1542, %v933
      %v1576 = vsel %vm1574, %v1543, %v935
      %v1577 = vsel %vm1574, %v1544, %v937
      %v1578 = vsel %vm1574, %v1545, %v939
      %v1579 = vsel %vm1574, %v1546, %v941
      %v1580 = vsel %vm1574, %v1547, %v943
      %v1581 = vsel %vm1574, %v1548, %v945
      %v1582 = vsel %vm1574, %v1549, %v947
      %v1583 = vsel %vm1574, %v1550, %v949
      %v1584 = vsel %vm1574, %v1551, %v951
      %v1585 = vsel %vm1574, %v1552, %v953
      %v1586 = vsel %vm1574, %v1553, %v955
      %v1587 = vsel %vm1574, %v1554, %v957
      %v1588 = vsel %vm1574, %v1555, %v959
      %v1589 = vsel %vm1574, %v1556, %v961
      %v1590 = vsel %vm1574, %v1557, %v963
      %v1591 = vsel %vm1574, %v1558, %v965
      %v1592 = vsel %vm1574, %v1559, %v967
      %v1593 = vsel %vm1574, %v1560, %v969
      %v1594 = vsel %vm1574, %v1561, %v971
      %v1595 = vsel %vm1574, %v1562, %v973
      %v1596 = vsel %vm1574, %v1563, %v975
      %v1597 = vsel %vm1574, %v1564, %v977
      %v1598 = vsel %vm1574, %v1565, %v979
      %v1599 = vsel %vm1574, %v1566, %v981
      %v1600 = vsel %vm1574, %v1567, %v983
      %v1601 = vsel %vm1574, %v1568, %v985
      %v1602 = vsel %vm1574, %v1569, %v987
      %v1603 = vsel %vm1574, %v1570, %v989
      %v1604 = vsel %vm1574, %v1571, %v991
      %v1605 = vsel %vm1574, %v1572, %v993
      %v1606 = vsel %vm1574, %v1573, %v995
      %vm1607 = vcmask 130048
      %v1608 = vsel %vm1607, %v1575, %v1029
      %v1609 = vsel %vm1607, %v1576, %v1031
      %v1610 = vsel %vm1607, %v1577, %v1033
      %v1611 = vsel %vm1607, %v1578, %v1035
      %v1612 = vsel %vm1607, %v1579, %v1037
      %v1613 = vsel %vm1607, %v1580, %v1039
      %v1614 = vsel %vm1607, %v1581, %v1041
      %v1615 = vsel %vm1607, %v1582, %v1043
      %v1616 = vsel %vm1607, %v1583, %v1045
      %v1617 = vsel %vm1607, %v1584, %v1047
      %v1618 = vsel %vm1607, %v1585, %v1049
      %v1619 = vsel %vm1607, %v1586, %v1051
      %v1620 = vsel %vm1607, %v1587, %v1053
      %v1621 = vsel %vm1607, %v1588, %v1055
      %v1622 = vsel %vm1607, %v1589, %v1057
      %v1623 = vsel %vm1607, %v1590, %v1059
      %v1624 = vsel %vm1607, %v1591, %v1061
      %v1625 = vsel %vm1607, %v1592, %v1063
      %v1626 = vsel %vm1607, %v1593, %v1065
      %v1627 = vsel %vm1607, %v1594, %v1067
      %v1628 = vsel %vm1607, %v1595, %v1069
      %v1629 = vsel %vm1607, %v1596, %v1071
      %v1630 = vsel %vm1607, %v1597, %v1073
      %v1631 = vsel %vm1607, %v1598, %v1075
      %v1632 = vsel %vm1607, %v1599, %v1077
      %v1633 = vsel %vm1607, %v1600, %v1079
      %v1634 = vsel %vm1607, %v1601, %v1081
      %v1635 = vsel %vm1607, %v1602, %v1083
      %v1636 = vsel %vm1607, %v1603, %v1085
      %v1637 = vsel %vm1607, %v1604, %v1087
      %v1638 = vsel %vm1607, %v1605, %v1089
      %v1639 = vsel %vm1607, %v1606, %v1091
      %vm1640 = vcmask 162816
      %v1641 = vsel %vm1640, %v1608, %v1125
      %v1642 = vsel %vm1640, %v1609, %v1127
      %v1643 = vsel %vm1640, %v1610, %v1129
      %v1644 = vsel %vm1640, %v1611, %v1131
      %v1645 = vsel %vm1640, %v1612, %v1133
      %v1646 = vsel %vm1640, %v1613, %v1135
      %v1647 = vsel %vm1640, %v1614, %v1137
      %v1648 = vsel %vm1640, %v1615, %v1139
      %v1649 = vsel %vm1640, %v1616, %v1141
      %v1650 = vsel %vm1640, %v1617, %v1143
      %v1651 = vsel %vm1640, %v1618, %v1145
      %v1652 = vsel %vm1640, %v1619, %v1147
      %v1653 = vsel %vm1640, %v1620, %v1149
      %v1654 = vsel %vm1640, %v1621, %v1151
      %v1655 = vsel %vm1640, %v1622, %v1153
      %v1656 = vsel %vm1640, %v1623, %v1155
      %v1657 = vsel %vm1640, %v1624, %v1157
      %v1658 = vsel %vm1640, %v1625, %v1159
      %v1659 = vsel %vm1640, %v1626, %v1161
      %v1660 = vsel %vm1640, %v1627, %v1163
      %v1661 = vsel %vm1640, %v1628, %v1165
      %v1662 = vsel %vm1640, %v1629, %v1167
      %v1663 = vsel %vm1640, %v1630, %v1169
      %v1664 = vsel %vm1640, %v1631, %v1171
      %v1665 = vsel %vm1640, %v1632, %v1173
      %v1666 = vsel %vm1640, %v1633, %v1175
      %v1667 = vsel %vm1640, %v1634, %v1177
      %v1668 = vsel %vm1640, %v1635, %v1179
      %v1669 = vsel %vm1640, %v1636, %v1181
      %v1670 = vsel %vm1640, %v1637, %v1183
      %v1671 = vsel %vm1640, %v1638, %v1185
      %v1672 = vsel %vm1640, %v1639, %v1187
      %vm1673 = vcmask 195584
      %v1674 = vsel %vm1673, %v1641, %v1221
      %v1675 = vsel %vm1673, %v1642, %v1223
      %v1676 = vsel %vm1673, %v1643, %v1225
      %v1677 = vsel %vm1673, %v1644, %v1227
      %v1678 = vsel %vm1673, %v1645, %v1229
      %v1679 = vsel %vm1673, %v1646, %v1231
      %v1680 = vsel %vm1673, %v1647, %v1233
      %v1681 = vsel %vm1673, %v1648, %v1235
      %v1682 = vsel %vm1673, %v1649, %v1237
      %v1683 = vsel %vm1673, %v1650, %v1239
      %v1684 = vsel %vm1673, %v1651, %v1241
      %v1685 = vsel %vm1673, %v1652, %v1243
      %v1686 = vsel %vm1673, %v1653, %v1245
      %v1687 = vsel %vm1673, %v1654, %v1247
      %v1688 = vsel %vm1673, %v1655, %v1249
      %v1689 = vsel %vm1673, %v1656, %v1251
      %v1690 = vsel %vm1673, %v1657, %v1253
      %v1691 = vsel %vm1673, %v1658, %v1255
      %v1692 = vsel %vm1673, %v1659, %v1257
      %v1693 = vsel %vm1673, %v1660, %v1259
      %v1694 = vsel %vm1673, %v1661, %v1261
      %v1695 = vsel %vm1673, %v1662, %v1263
      %v1696 = vsel %vm1673, %v1663, %v1265
      %v1697 = vsel %vm1673, %v1664, %v1267
      %v1698 = vsel %vm1673, %v1665, %v1269
      %v1699 = vsel %vm1673, %v1666, %v1271
      %v1700 = vsel %vm1673, %v1667, %v1273
      %v1701 = vsel %vm1673, %v1668, %v1275
      %v1702 = vsel %vm1673, %v1669, %v1277
      %v1703 = vsel %vm1673, %v1670, %v1279
      %v1704 = vsel %vm1673, %v1671, %v1281
      %v1705 = vsel %vm1673, %v1672, %v1283
      %vm1706 = vcmask 228352
      %v1707 = vsel %vm1706, %v1674, %v1317
      %v1708 = vsel %vm1706, %v1675, %v1319
      %v1709 = vsel %vm1706, %v1676, %v1321
      %v1710 = vsel %vm1706, %v1677, %v1323
      %v1711 = vsel %vm1706, %v1678, %v1325
      %v1712 = vsel %vm1706, %v1679, %v1327
      %v1713 = vsel %vm1706, %v1680, %v1329
      %v1714 = vsel %vm1706, %v1681, %v1331
      %v1715 = vsel %vm1706, %v1682, %v1333
      %v1716 = vsel %vm1706, %v1683, %v1335
      %v1717 = vsel %vm1706, %v1684, %v1337
      %v1718 = vsel %vm1706, %v1685, %v1339
      %v1719 = vsel %vm1706, %v1686, %v1341
      %v1720 = vsel %vm1706, %v1687, %v1343
      %v1721 = vsel %vm1706, %v1688, %v1345
      %v1722 = vsel %vm1706, %v1689, %v1347
      %v1723 = vsel %vm1706, %v1690, %v1349
      %v1724 = vsel %vm1706, %v1691, %v1351
      %v1725 = vsel %vm1706, %v1692, %v1353
      %v1726 = vsel %vm1706, %v1693, %v1355
      %v1727 = vsel %vm1706, %v1694, %v1357
      %v1728 = vsel %vm1706, %v1695, %v1359
      %v1729 = vsel %vm1706, %v1696, %v1361
      %v1730 = vsel %vm1706, %v1697, %v1363
      %v1731 = vsel %vm1706, %v1698, %v1365
      %v1732 = vsel %vm1706, %v1699, %v1367
      %v1733 = vsel %vm1706, %v1700, %v1369
      %v1734 = vsel %vm1706, %v1701, %v1371
      %v1735 = vsel %vm1706, %v1702, %v1373
      %v1736 = vsel %vm1706, %v1703, %v1375
      %v1737 = vsel %vm1706, %v1704, %v1377
      %v1738 = vsel %vm1706, %v1705, %v1379
      %vm1739 = vcmask 261120
      %v1740 = vsel %vm1739, %v1707, %v1413
      %v1741 = vsel %vm1739, %v1708, %v1415
      %v1742 = vsel %vm1739, %v1709, %v1417
      %v1743 = vsel %vm1739, %v1710, %v1419
      %v1744 = vsel %vm1739, %v1711, %v1421
      %v1745 = vsel %vm1739, %v1712, %v1423
      %v1746 = vsel %vm1739, %v1713, %v1425
      %v1747 = vsel %vm1739, %v1714, %v1427
      %v1748 = vsel %vm1739, %v1715, %v1429
      %v1749 = vsel %vm1739, %v1716, %v1431
      %v1750 = vsel %vm1739, %v1717, %v1433
      %v1751 = vsel %vm1739, %v1718, %v1435
      %v1752 = vsel %vm1739, %v1719, %v1437
      %v1753 = vsel %vm1739, %v1720, %v1439
      %v1754 = vsel %vm1739, %v1721, %v1441
      %v1755 = vsel %vm1739, %v1722, %v1443
      %v1756 = vsel %vm1739, %v1723, %v1445
      %v1757 = vsel %vm1739, %v1724, %v1447
      %v1758 = vsel %vm1739, %v1725, %v1449
      %v1759 = vsel %vm1739, %v1726, %v1451
      %v1760 = vsel %vm1739, %v1727, %v1453
      %v1761 = vsel %vm1739, %v1728, %v1455
      %v1762 = vsel %vm1739, %v1729, %v1457
      %v1763 = vsel %vm1739, %v1730, %v1459
      %v1764 = vsel %vm1739, %v1731, %v1461
      %v1765 = vsel %vm1739, %v1732, %v1463
      %v1766 = vsel %vm1739, %v1733, %v1465
      %v1767 = vsel %vm1739, %v1734, %v1467
      %v1768 = vsel %vm1739, %v1735, %v1469
      %v1769 = vsel %vm1739, %v1736, %v1471
      %v1770 = vsel %vm1739, %v1737, %v1473
      %v1771 = vsel %vm1739, %v1738, %v1475
      %v1772 = vld [vmem:[%s3] sm:$0xff]
      %v1773 = vld [vmem:[%s3 + $0x8] sm:$0xff]
      %v1774 = vld [vmem:[%s3 + $0x10] sm:$0xff]
      %v1775 = vld [vmem:[%s3 + $0x18] sm:$0xff]
      %v1776 = vld [vmem:[%s3 + $0x20] sm:$0xf]
      %vm1777 = vcmask 293888
      %v1779 = vsel %vm1777, %v1740, 0
      %v1782 = vsel %vm1777, %v1741, 0
      %v1785 = vsel %vm1777, %v1742, 0
      %v1788 = vsel %vm1777, %v1743, 0
      %v1791 = vsel %vm1777, %v1744, 0
      %v1794 = vsel %vm1777, %v1745, 0
      %v1797 = vsel %vm1777, %v1746, 0
      %v1800 = vsel %vm1777, %v1747, 0
      %v1803 = vsel %vm1777, %v1748, 0
      %v1806 = vsel %vm1777, %v1749, 0
      %v1809 = vsel %vm1777, %v1750, 0
      %v1812 = vsel %vm1777, %v1751, 0
      %v1815 = vsel %vm1777, %v1752, 0
      %v1818 = vsel %vm1777, %v1753, 0
      %v1821 = vsel %vm1777, %v1754, 0
      %v1824 = vsel %vm1777, %v1755, 0
      %v1827 = vsel %vm1777, %v1756, 0
      %v1830 = vsel %vm1777, %v1757, 0
      %v1833 = vsel %vm1777, %v1758, 0
      %v1836 = vsel %vm1777, %v1759, 0
      %v1839 = vsel %vm1777, %v1760, 0
      %v1842 = vsel %vm1777, %v1761, 0
      %v1845 = vsel %vm1777, %v1762, 0
      %v1848 = vsel %vm1777, %v1763, 0
      %v1851 = vsel %vm1777, %v1764, 0
      %v1854 = vsel %vm1777, %v1765, 0
      %v1857 = vsel %vm1777, %v1766, 0
      %v1860 = vsel %vm1777, %v1767, 0
      %v1863 = vsel %vm1777, %v1768, 0
      %v1866 = vsel %vm1777, %v1769, 0
      %v1869 = vsel %vm1777, %v1770, 0
      %v1872 = vsel %vm1777, %v1771, 0
      %vm1874 = vcmask 1043456
      %v1876 = vsel %vm1874, %v1776, 0
      %1878 = vmatprep.subr.mxu0 0.0
      %1879 = vmatpush1.msra.mxu0 0.0
      %1880 = vmatprep.subr.mxu0 0.0
      %1881 = vmatpush1.msra.mxu0 0.0
      %1882 = vmatprep.subr.mxu0 0.0
      %1883 = vmatpush1.msra.mxu0 0.0
      %1884 = vmatprep.subr.mxu0 0.0
      %1885 = vmatpush1.msra.mxu0 0.0
      %1886 = vmatprep.subr.mxu0 0.0
      %1887 = vmatpush1.msra.mxu0 0.0
      %1888 = vmatprep.subr.mxu0 0.0
      %1889 = vmatpush1.msra.mxu0 0.0
      %1890 = vmatprep.subr.mxu0 0.0
      %1891 = vmatpush1.msra.mxu0 0.0
      %1892 = vmatprep.subr.mxu0 0.0
      %1893 = vmatpush1.msra.mxu0 0.0
      %1894 = vmatprep.subr.mxu0 0.0
      %1895 = vmatpush1.msra.mxu0 0.0
      %1896 = vmatprep.subr.mxu0 0.0
      %1897 = vmatpush1.msra.mxu0 0.0
      %1898 = vmatprep.subr.mxu0 0.0
      %1899 = vmatpush1.msra.mxu0 0.0
      %1900 = vmatprep.subr.mxu0 0.0
      %1901 = vmatpush1.msra.mxu0 %v1876
      %1902 = vmatprep.subr.mxu0 0.0
      %1903 = vmatpush1.msra.mxu0 %v1775
      %1904 = vmatprep.subr.mxu0 0.0
      %1905 = vmatpush1.msra.mxu0 %v1774
      %1906 = vmatprep.subr.mxu0 0.0
      %1907 = vmatpush1.msra.mxu0 %v1773
      %1908 = vmatprep.subr.mxu0 0.0
      %1909 = vmatpush1.msra.mxu0 %v1772
      %1910 = vmatprep.subr.mxu0 0.0
      %1911 = vmatpush2.msra.mxu0 0.0
      %1912 = vmatprep.subr.mxu0 0.0
      %1913 = vmatpush2.msra.mxu0 0.0
      %1914 = vmatprep.subr.mxu0 0.0
      %1915 = vmatpush2.msra.mxu0 0.0
      %1916 = vmatprep.subr.mxu0 0.0
      %1917 = vmatpush2.msra.mxu0 0.0
      %1918 = vmatprep.subr.mxu0 0.0
      %1919 = vmatpush2.msra.mxu0 0.0
      %1920 = vmatprep.subr.mxu0 0.0
      %1921 = vmatpush2.msra.mxu0 0.0
      %1922 = vmatprep.subr.mxu0 0.0
      %1923 = vmatpush2.msra.mxu0 0.0
      %1924 = vmatprep.subr.mxu0 0.0
      %1925 = vmatpush2.msra.mxu0 0.0
      %1926 = vmatprep.subr.mxu0 0.0
      %1927 = vmatpush2.msra.mxu0 0.0
      %1928 = vmatprep.subr.mxu0 0.0
      %1929 = vmatpush2.msra.mxu0 0.0
      %1930 = vmatprep.subr.mxu0 0.0
      %1931 = vmatpush2.msra.mxu0 0.0
      %1932 = vmatprep.subr.mxu0 0.0
      %1933 = vmatpush2.msra.mxu0 0.0
      %1934 = vmatprep.subr.mxu0 0.0
      %1935 = vmatpush2.msra.mxu0 0.0
      %1936 = vmatprep.subr.mxu0 0.0
      %1937 = vmatpush2.msra.mxu0 0.0
      %1938 = vmatprep.subr.mxu0 0.0
      %1939 = vmatpush2.msra.mxu0 0.0
      %1940 = vmatprep.subr.mxu0 0.0
      %1941 = vmatpush2.msra.mxu0 0.0
      %1942 = vmatprep.mubr.f32.mxu0 0.0
      %1943 = vmatmul.mubr.f32.gmra.mxu0 %v1779
      %v1944 = vpop.f32.mrf.mxu0
      %v1945 = vadd.f32 0.0, %v1944
      %v1946 = vpop.f32.mrf.mxu0
      %1947 = vmatprep.mubr.f32.mxu0 0.0
      %1948 = vmatmul.mubr.f32.gmra.mxu0 %v1782
      %v1949 = vpop.f32.mrf.mxu0
      %v1950 = vadd.f32 0.0, %v1949
      %v1951 = vpop.f32.mrf.mxu0
      %1952 = vmatprep.mubr.f32.mxu0 0.0
      %1953 = vmatmul.mubr.f32.gmra.mxu0 %v1785
      %v1954 = vpop.f32.mrf.mxu0
      %v1955 = vadd.f32 0.0, %v1954
      %v1956 = vpop.f32.mrf.mxu0
      %1957 = vmatprep.mubr.f32.mxu0 0.0
      %1958 = vmatmul.mubr.f32.gmra.mxu0 %v1788
      %v1959 = vpop.f32.mrf.mxu0
      %v1960 = vadd.f32 0.0, %v1959
      %v1961 = vpop.f32.mrf.mxu0
      %1962 = vmatprep.mubr.f32.mxu0 0.0
      %1963 = vmatmul.mubr.f32.gmra.mxu0 %v1791
      %v1964 = vpop.f32.mrf.mxu0
      %v1965 = vadd.f32 0.0, %v1964
      %v1966 = vpop.f32.mrf.mxu0
      %1967 = vmatprep.mubr.f32.mxu0 0.0
      %1968 = vmatmul.mubr.f32.gmra.mxu0 %v1794
      %v1969 = vpop.f32.mrf.mxu0
      %v1970 = vadd.f32 0.0, %v1969
      %v1971 = vpop.f32.mrf.mxu0
      %1972 = vmatprep.mubr.f32.mxu0 0.0
      %1973 = vmatmul.mubr.f32.gmra.mxu0 %v1797
      %v1974 = vpop.f32.mrf.mxu0
      %v1975 = vadd.f32 0.0, %v1974
      %v1976 = vpop.f32.mrf.mxu0
      %1977 = vmatprep.mubr.f32.mxu0 0.0
      %1978 = vmatmul.mubr.f32.gmra.mxu0 %v1800
      %v1979 = vpop.f32.mrf.mxu0
      %v1980 = vadd.f32 0.0, %v1979
      %v1981 = vpop.f32.mrf.mxu0
      %1982 = vmatprep.mubr.f32.mxu0 0.0
      %1983 = vmatmul.mubr.f32.gmra.mxu0 %v1803
      %v1984 = vpop.f32.mrf.mxu0
      %v1985 = vadd.f32 0.0, %v1984
      %v1986 = vpop.f32.mrf.mxu0
      %1987 = vmatprep.mubr.f32.mxu0 0.0
      %1988 = vmatmul.mubr.f32.gmra.mxu0 %v1806
      %v1989 = vpop.f32.mrf.mxu0
      %v1990 = vadd.f32 0.0, %v1989
      %v1991 = vpop.f32.mrf.mxu0
      %1992 = vmatprep.mubr.f32.mxu0 0.0
      %1993 = vmatmul.mubr.f32.gmra.mxu0 %v1809
      %v1994 = vpop.f32.mrf.mxu0
      %v1995 = vadd.f32 0.0, %v1994
      %v1996 = vpop.f32.mrf.mxu0
      %1997 = vmatprep.mubr.f32.mxu0 0.0
      %1998 = vmatmul.mubr.f32.gmra.mxu0 %v1812
      %v1999 = vpop.f32.mrf.mxu0
      %v2000 = vadd.f32 0.0, %v1999
      %v2001 = vpop.f32.mrf.mxu0
      %2002 = vmatprep.mubr.f32.mxu0 0.0
      %2003 = vmatmul.mubr.f32.gmra.mxu0 %v1815
      %v2004 = vpop.f32.mrf.mxu0
      %v2005 = vadd.f32 0.0, %v2004
      %v2006 = vpop.f32.mrf.mxu0
      %2007 = vmatprep.mubr.f32.mxu0 0.0
      %2008 = vmatmul.mubr.f32.gmra.mxu0 %v1818
      %v2009 = vpop.f32.mrf.mxu0
      %v2010 = vadd.f32 0.0, %v2009
      %v2011 = vpop.f32.mrf.mxu0
      %2012 = vmatprep.mubr.f32.mxu0 0.0
      %2013 = vmatmul.mubr.f32.gmra.mxu0 %v1821
      %v2014 = vpop.f32.mrf.mxu0
      %v2015 = vadd.f32 0.0, %v2014
      %v2016 = vpop.f32.mrf.mxu0
      %2017 = vmatprep.mubr.f32.mxu0 0.0
      %2018 = vmatmul.mubr.f32.gmra.mxu0 %v1824
      %v2019 = vpop.f32.mrf.mxu0
      %v2020 = vadd.f32 0.0, %v2019
      %v2021 = vpop.f32.mrf.mxu0
      %2022 = vmatprep.mubr.f32.mxu0 0.0
      %2023 = vmatmul.mubr.f32.gmra.mxu0 %v1827
      %v2024 = vpop.f32.mrf.mxu0
      %v2025 = vadd.f32 0.0, %v2024
      %v2026 = vpop.f32.mrf.mxu0
      %2027 = vmatprep.mubr.f32.mxu0 0.0
      %2028 = vmatmul.mubr.f32.gmra.mxu0 %v1830
      %v2029 = vpop.f32.mrf.mxu0
      %v2030 = vadd.f32 0.0, %v2029
      %v2031 = vpop.f32.mrf.mxu0
      %2032 = vmatprep.mubr.f32.mxu0 0.0
      %2033 = vmatmul.mubr.f32.gmra.mxu0 %v1833
      %v2034 = vpop.f32.mrf.mxu0
      %v2035 = vadd.f32 0.0, %v2034
      %v2036 = vpop.f32.mrf.mxu0
      %2037 = vmatprep.mubr.f32.mxu0 0.0
      %2038 = vmatmul.mubr.f32.gmra.mxu0 %v1836
      %v2039 = vpop.f32.mrf.mxu0
      %v2040 = vadd.f32 0.0, %v2039
      %v2041 = vpop.f32.mrf.mxu0
      %2042 = vmatprep.mubr.f32.mxu0 0.0
      %2043 = vmatmul.mubr.f32.gmra.mxu0 %v1839
      %v2044 = vpop.f32.mrf.mxu0
      %v2045 = vadd.f32 0.0, %v2044
      %v2046 = vpop.f32.mrf.mxu0
      %2047 = vmatprep.mubr.f32.mxu0 0.0
      %2048 = vmatmul.mubr.f32.gmra.mxu0 %v1842
      %v2049 = vpop.f32.mrf.mxu0
      %v2050 = vadd.f32 0.0, %v2049
      %v2051 = vpop.f32.mrf.mxu0
      %2052 = vmatprep.mubr.f32.mxu0 0.0
      %2053 = vmatmul.mubr.f32.gmra.mxu0 %v1845
      %v2054 = vpop.f32.mrf.mxu0
      %v2055 = vadd.f32 0.0, %v2054
      %v2056 = vpop.f32.mrf.mxu0
      %2057 = vmatprep.mubr.f32.mxu0 0.0
      %2058 = vmatmul.mubr.f32.gmra.mxu0 %v1848
      %v2059 = vpop.f32.mrf.mxu0
      %v2060 = vadd.f32 0.0, %v2059
      %v2061 = vpop.f32.mrf.mxu0
      %2062 = vmatprep.mubr.f32.mxu0 0.0
      %2063 = vmatmul.mubr.f32.gmra.mxu0 %v1851
      %v2064 = vpop.f32.mrf.mxu0
      %v2065 = vadd.f32 0.0, %v2064
      %v2066 = vpop.f32.mrf.mxu0
      %2067 = vmatprep.mubr.f32.mxu0 0.0
      %2068 = vmatmul.mubr.f32.gmra.mxu0 %v1854
      %v2069 = vpop.f32.mrf.mxu0
      %v2070 = vadd.f32 0.0, %v2069
      %v2071 = vpop.f32.mrf.mxu0
      %2072 = vmatprep.mubr.f32.mxu0 0.0
      %2073 = vmatmul.mubr.f32.gmra.mxu0 %v1857
      %v2074 = vpop.f32.mrf.mxu0
      %v2075 = vadd.f32 0.0, %v2074
      %v2076 = vpop.f32.mrf.mxu0
      %2077 = vmatprep.mubr.f32.mxu0 0.0
      %2078 = vmatmul.mubr.f32.gmra.mxu0 %v1860
      %v2079 = vpop.f32.mrf.mxu0
      %v2080 = vadd.f32 0.0, %v2079
      %v2081 = vpop.f32.mrf.mxu0
      %2082 = vmatprep.mubr.f32.mxu0 0.0
      %2083 = vmatmul.mubr.f32.gmra.mxu0 %v1863
      %v2084 = vpop.f32.mrf.mxu0
      %v2085 = vadd.f32 0.0, %v2084
      %v2086 = vpop.f32.mrf.mxu0
      %2087 = vmatprep.mubr.f32.mxu0 0.0
      %2088 = vmatmul.mubr.f32.gmra.mxu0 %v1866
      %v2089 = vpop.f32.mrf.mxu0
      %v2090 = vadd.f32 0.0, %v2089
      %v2091 = vpop.f32.mrf.mxu0
      %2092 = vmatprep.mubr.f32.mxu0 0.0
      %2093 = vmatmul.mubr.f32.gmra.mxu0 %v1869
      %v2094 = vpop.f32.mrf.mxu0
      %v2095 = vadd.f32 0.0, %v2094
      %v2096 = vpop.f32.mrf.mxu0
      %2097 = vmatprep.mubr.f32.mxu0 0.0
      %2098 = vmatmul.mubr.f32.gmra.mxu0 %v1872
      %v2099 = vpop.f32.mrf.mxu0
      %v2100 = vadd.f32 0.0, %v2099
      %v2101 = vpop.f32.mrf.mxu0
      %2102 = vdwg.mxu0
      %2103 = vst.msk [vmem:[%s435] sm:$0xff] %vm1541, %v1945
      %2104 = vst.msk [vmem:[%s435 + $0x8] sm:$0xff] %vm1541, %v1950
      %2105 = vst.msk [vmem:[%s435 + $0x10] sm:$0xff] %vm1541, %v1955
      %2106 = vst.msk [vmem:[%s435 + $0x18] sm:$0xff] %vm1541, %v1960
      %2107 = vst.msk [vmem:[%s435 + $0x20] sm:$0xff] %vm1541, %v1965
      %2108 = vst.msk [vmem:[%s435 + $0x28] sm:$0xff] %vm1541, %v1970
      %2109 = vst.msk [vmem:[%s435 + $0x30] sm:$0xff] %vm1541, %v1975
      %2110 = vst.msk [vmem:[%s435 + $0x38] sm:$0xff] %vm1541, %v1980
      %2111 = vst.msk [vmem:[%s435 + $0x40] sm:$0xff] %vm1541, %v1985
      %2112 = vst.msk [vmem:[%s435 + $0x48] sm:$0xff] %vm1541, %v1990
      %2113 = vst.msk [vmem:[%s435 + $0x50] sm:$0xff] %vm1541, %v1995
      %2114 = vst.msk [vmem:[%s435 + $0x58] sm:$0xff] %vm1541, %v2000
      %2115 = vst.msk [vmem:[%s435 + $0x60] sm:$0xff] %vm1541, %v2005
      %2116 = vst.msk [vmem:[%s435 + $0x68] sm:$0xff] %vm1541, %v2010
      %2117 = vst.msk [vmem:[%s435 + $0x70] sm:$0xff] %vm1541, %v2015
      %2118 = vst.msk [vmem:[%s435 + $0x78] sm:$0xff] %vm1541, %v2020
      %2119 = vst.msk [vmem:[%s435 + $0x80] sm:$0xff] %vm1541, %v2025
      %2120 = vst.msk [vmem:[%s435 + $0x88] sm:$0xff] %vm1541, %v2030
      %2121 = vst.msk [vmem:[%s435 + $0x90] sm:$0xff] %vm1541, %v2035
      %2122 = vst.msk [vmem:[%s435 + $0x98] sm:$0xff] %vm1541, %v2040
      %2123 = vst.msk [vmem:[%s435 + $0xa0] sm:$0xff] %vm1541, %v2045
      %2124 = vst.msk [vmem:[%s435 + $0xa8] sm:$0xff] %vm1541, %v2050
      %2125 = vst.msk [vmem:[%s435 + $0xb0] sm:$0xff] %vm1541, %v2055
      %2126 = vst.msk [vmem:[%s435 + $0xb8] sm:$0xff] %vm1541, %v2060
      %2127 = vst.msk [vmem:[%s435 + $0xc0] sm:$0xff] %vm1541, %v2065
      %2128 = vst.msk [vmem:[%s435 + $0xc8] sm:$0xff] %vm1541, %v2070
      %2129 = vst.msk [vmem:[%s435 + $0xd0] sm:$0xff] %vm1541, %v2075
      %2130 = vst.msk [vmem:[%s435 + $0xd8] sm:$0xff] %vm1541, %v2080
      %2131 = vst.msk [vmem:[%s435 + $0xe0] sm:$0xff] %vm1541, %v2085
      %2132 = vst.msk [vmem:[%s435 + $0xe8] sm:$0xff] %vm1541, %v2090
      %2133 = vst.msk [vmem:[%s435 + $0xf0] sm:$0xff] %vm1541, %v2095
      %2134 = vst.msk [vmem:[%s435 + $0xf8] sm:$0xff] %vm1541, %v2100
      %v2135 = vsel %vm1541, %v1945, 0.0
      %v2136 = vsel %vm1541, %v1950, 0.0
      %v2137 = vadd.f32 %v2135, %v2136
      %v2138 = vsel %vm1541, %v1955, 0.0
      %v2139 = vadd.f32 %v2137, %v2138
      %v2140 = vsel %vm1541, %v1960, 0.0
      %v2141 = vadd.f32 %v2139, %v2140
      %v2142 = vsel %vm1541, %v1965, 0.0
      %v2143 = vadd.f32 %v2141, %v2142
      %v2144 = vsel %vm1541, %v1970, 0.0
      %v2145 = vadd.f32 %v2143, %v2144
      %v2146 = vsel %vm1541, %v1975, 0.0
      %v2147 = vadd.f32 %v2145, %v2146
      %v2148 = vsel %vm1541, %v1980, 0.0
      %v2149 = vadd.f32 %v2147, %v2148
      %v2150 = vsel %vm1541, %v1985, 0.0
      %v2151 = vadd.f32 %v2149, %v2150
      %v2152 = vsel %vm1541, %v1990, 0.0
      %v2153 = vadd.f32 %v2151, %v2152
      %v2154 = vsel %vm1541, %v1995, 0.0
      %v2155 = vadd.f32 %v2153, %v2154
      %v2156 = vsel %vm1541, %v2000, 0.0
      %v2157 = vadd.f32 %v2155, %v2156
      %v2158 = vsel %vm1541, %v2005, 0.0
      %v2159 = vadd.f32 %v2157, %v2158
      %v2160 = vsel %vm1541, %v2010, 0.0
      %v2161 = vadd.f32 %v2159, %v2160
      %v2162 = vsel %vm1541, %v2015, 0.0
      %v2163 = vadd.f32 %v2161, %v2162
      %v2164 = vsel %vm1541, %v2020, 0.0
      %v2165 = vadd.f32 %v2163, %v2164
      %v2166 = vsel %vm1541, %v2025, 0.0
      %v2167 = vadd.f32 %v2165, %v2166
      %v2168 = vsel %vm1541, %v2030, 0.0
      %v2169 = vadd.f32 %v2167, %v2168
      %v2170 = vsel %vm1541, %v2035, 0.0
      %v2171 = vadd.f32 %v2169, %v2170
      %v2172 = vsel %vm1541, %v2040, 0.0
      %v2173 = vadd.f32 %v2171, %v2172
      %v2174 = vsel %vm1541, %v2045, 0.0
      %v2175 = vadd.f32 %v2173, %v2174
      %v2176 = vsel %vm1541, %v2050, 0.0
      %v2177 = vadd.f32 %v2175, %v2176
      %v2178 = vsel %vm1541, %v2055, 0.0
      %v2179 = vadd.f32 %v2177, %v2178
      %v2180 = vsel %vm1541, %v2060, 0.0
      %v2181 = vadd.f32 %v2179, %v2180
      %v2182 = vsel %vm1541, %v2065, 0.0
      %v2183 = vadd.f32 %v2181, %v2182
      %v2184 = vsel %vm1541, %v2070, 0.0
      %v2185 = vadd.f32 %v2183, %v2184
      %v2186 = vsel %vm1541, %v2075, 0.0
      %v2187 = vadd.f32 %v2185, %v2186
      %v2188 = vsel %vm1541, %v2080, 0.0
      %v2189 = vadd.f32 %v2187, %v2188
      %v2190 = vsel %vm1541, %v2085, 0.0
      %v2191 = vadd.f32 %v2189, %v2190
      %v2192 = vsel %vm1541, %v2090, 0.0
      %v2193 = vadd.f32 %v2191, %v2192
      %v2194 = vsel %vm1541, %v2095, 0.0
      %v2195 = vadd.f32 %v2193, %v2194
      %v2196 = vsel %vm1541, %v2100, 0.0
      %v2197 = vadd.f32 %v2195, %v2196
      %v2198 = vrot.slane %v2197, 4
      %v2199 = vadd.f32 %v2197, %v2198
      %v2200 = vrot.slane %v2199, 2
      %v2201 = vadd.f32 %v2199, %v2200
      %v2202 = vrot.slane %v2201, 1
      %v2203 = vadd.f32 %v2201, %v2202
      %vm2204 = vcmask 57344
      %2205 = vst.msk [vmem:[%s443] sm:$0x1] %vm2204, %v2203
      %v2206 = vmul.f32 %v1945, %v1945
      %v2207 = vmul.f32 %v1950, %v1950
      %v2208 = vmul.f32 %v1955, %v1955
      %v2209 = vmul.f32 %v1960, %v1960
      %v2210 = vmul.f32 %v1965, %v1965
      %v2211 = vmul.f32 %v1970, %v1970
      %v2212 = vmul.f32 %v1975, %v1975
      %v2213 = vmul.f32 %v1980, %v1980
      %v2214 = vmul.f32 %v1985, %v1985
      %v2215 = vmul.f32 %v1990, %v1990
      %v2216 = vmul.f32 %v1995, %v1995
      %v2217 = vmul.f32 %v2000, %v2000
      %v2218 = vmul.f32 %v2005, %v2005
      %v2219 = vmul.f32 %v2010, %v2010
      %v2220 = vmul.f32 %v2015, %v2015
      %v2221 = vmul.f32 %v2020, %v2020
      %v2222 = vmul.f32 %v2025, %v2025
      %v2223 = vmul.f32 %v2030, %v2030
      %v2224 = vmul.f32 %v2035, %v2035
      %v2225 = vmul.f32 %v2040, %v2040
      %v2226 = vmul.f32 %v2045, %v2045
      %v2227 = vmul.f32 %v2050, %v2050
      %v2228 = vmul.f32 %v2055, %v2055
      %v2229 = vmul.f32 %v2060, %v2060
      %v2230 = vmul.f32 %v2065, %v2065
      %v2231 = vmul.f32 %v2070, %v2070
      %v2232 = vmul.f32 %v2075, %v2075
      %v2233 = vmul.f32 %v2080, %v2080
      %v2234 = vmul.f32 %v2085, %v2085
      %v2235 = vmul.f32 %v2090, %v2090
      %v2236 = vmul.f32 %v2095, %v2095
      %v2237 = vmul.f32 %v2100, %v2100
      %v2238 = vsel %vm1541, %v2206, 0.0
      %v2239 = vsel %vm1541, %v2207, 0.0
      %v2240 = vadd.f32 %v2238, %v2239
      %v2241 = vsel %vm1541, %v2208, 0.0
      %v2242 = vadd.f32 %v2240, %v2241
      %v2243 = vsel %vm1541, %v2209, 0.0
      %v2244 = vadd.f32 %v2242, %v2243
      %v2245 = vsel %vm1541, %v2210, 0.0
      %v2246 = vadd.f32 %v2244, %v2245
      %v2247 = vsel %vm1541, %v2211, 0.0
      %v2248 = vadd.f32 %v2246, %v2247
      %v2249 = vsel %vm1541, %v2212, 0.0
      %v2250 = vadd.f32 %v2248, %v2249
      %v2251 = vsel %vm1541, %v2213, 0.0
      %v2252 = vadd.f32 %v2250, %v2251
      %v2253 = vsel %vm1541, %v2214, 0.0
      %v2254 = vadd.f32 %v2252, %v2253
      %v2255 = vsel %vm1541, %v2215, 0.0
      %v2256 = vadd.f32 %v2254, %v2255
      %v2257 = vsel %vm1541, %v2216, 0.0
      %v2258 = vadd.f32 %v2256, %v2257
      %v2259 = vsel %vm1541, %v2217, 0.0
      %v2260 = vadd.f32 %v2258, %v2259
      %v2261 = vsel %vm1541, %v2218, 0.0
      %v2262 = vadd.f32 %v2260, %v2261
      %v2263 = vsel %vm1541, %v2219, 0.0
      %v2264 = vadd.f32 %v2262, %v2263
      %v2265 = vsel %vm1541, %v2220, 0.0
      %v2266 = vadd.f32 %v2264, %v2265
      %v2267 = vsel %vm1541, %v2221, 0.0
      %v2268 = vadd.f32 %v2266, %v2267
      %v2269 = vsel %vm1541, %v2222, 0.0
      %v2270 = vadd.f32 %v2268, %v2269
      %v2271 = vsel %vm1541, %v2223, 0.0
      %v2272 = vadd.f32 %v2270, %v2271
      %v2273 = vsel %vm1541, %v2224, 0.0
      %v2274 = vadd.f32 %v2272, %v2273
      %v2275 = vsel %vm1541, %v2225, 0.0
      %v2276 = vadd.f32 %v2274, %v2275
      %v2277 = vsel %vm1541, %v2226, 0.0
      %v2278 = vadd.f32 %v2276, %v2277
      %v2279 = vsel %vm1541, %v2227, 0.0
      %v2280 = vadd.f32 %v2278, %v2279
      %v2281 = vsel %vm1541, %v2228, 0.0
      %v2282 = vadd.f32 %v2280, %v2281
      %v2283 = vsel %vm1541, %v2229, 0.0
      %v2284 = vadd.f32 %v2282, %v2283
      %v2285 = vsel %vm1541, %v2230, 0.0
      %v2286 = vadd.f32 %v2284, %v2285
      %v2287 = vsel %vm1541, %v2231, 0.0
      %v2288 = vadd.f32 %v2286, %v2287
      %v2289 = vsel %vm1541, %v2232, 0.0
      %v2290 = vadd.f32 %v2288, %v2289
      %v2291 = vsel %vm1541, %v2233, 0.0
      %v2292 = vadd.f32 %v2290, %v2291
      %v2293 = vsel %vm1541, %v2234, 0.0
      %v2294 = vadd.f32 %v2292, %v2293
      %v2295 = vsel %vm1541, %v2235, 0.0
      %v2296 = vadd.f32 %v2294, %v2295
      %v2297 = vsel %vm1541, %v2236, 0.0
      %v2298 = vadd.f32 %v2296, %v2297
      %v2299 = vsel %vm1541, %v2237, 0.0
      %v2300 = vadd.f32 %v2298, %v2299
      %v2301 = vrot.slane %v2300, 4
      %v2302 = vadd.f32 %v2300, %v2301
      %v2303 = vrot.slane %v2302, 2
      %v2304 = vadd.f32 %v2302, %v2303
      %v2305 = vrot.slane %v2304, 1
      %v2306 = vadd.f32 %v2304, %v2305
      %2307 = vst.msk [vmem:[%s449] sm:$0x1] %vm2204, %v2306
      %s2308 = sadd.s32 %s22, %s23
      %s2309 = smul.u32 32, %s2308
      %p2310 = scmp.lt.s32.totalorder %s2309, 63
      %s2311 = scalar_select %p2310, %s2309, 63
      %s2312 = smul.addr %s2311, 8
      %s2313 = scalar_lea.vmem %s4, %s2312
      %p2314 = scmp.lt.s32.totalorder %s22, 1
      %s2315 = scalar_select %p2314, %s22, 1
      %p2316 = scmp.lt.s32.totalorder %s23, 0
      %s2317 = scalar_select %p2316, %s23, 0
      %s2318 = sadd.s32 %s2317, %s2315
      %s2319 = scalar_lea.vmem %s5, %s2318
      %p2320 = scmp.lt.s32.totalorder %s22, 1
      %s2321 = scalar_select %p2320, %s22, 1
      %p2322 = scmp.lt.s32.totalorder %s23, 0
      %s2323 = scalar_select %p2322, %s23, 0
      %s2324 = sadd.s32 %s2323, %s2321
      %s2325 = scalar_lea.vmem %s6, %s2324
      // Predicated region
      $region37: #{_forward_impl.6} parent=35 // pred_check
        %p2326 = pneg %p165
      $region38: #{_forward_impl.6} parent=35 // pred_check_branch
        %2328 = sbr.rel (%p2326) target = $region40
      $region39: #{_forward_impl.6} parent=35 // pred_region
        %s2329 = sadd.s32 %s22, %s23
        %s2330 = smul.u32 32, %s2329
      $region40: #{_forward_impl.6} parent=35 // pred_fallthru
        _
      // Predicated region
      $region41: #{_forward_impl.6} parent=35 // pred_check
        %p2331 = pneg %p193
      $region42: #{_forward_impl.6} parent=35 // pred_check_branch
        %2333 = sbr.rel (%p2331) target = $region44
      $region43: #{_forward_impl.6} parent=35 // pred_region
        _
      $region44: #{_forward_impl.6} parent=35 // pred_fallthru
        _
      // Predicated region
      $region45: #{_forward_impl.6} parent=35 // pred_check
        %p2334 = pneg %p221
      $region46: #{_forward_impl.6} parent=35 // pred_check_branch
        %2336 = sbr.rel (%p2334) target = $region48
      $region47: #{_forward_impl.6} parent=35 // pred_region
        _
      $region48: #{_forward_impl.6} parent=35 // pred_fallthru
        _
    $region36: #{_forward_impl.6} parent=5 // pred_fallthru
      _
    %p2337 = scmp.le.s32.totalorder 2, %s13
    // Predicated region
    $region49: #{_forward_impl.6} parent=5 // pred_check
      %p2338 = pneg %p2337
    $region50: #{_forward_impl.6} parent=5 // pred_check_branch
      %2340 = sbr.rel (%p2338) target = $region52
    $region51: #{_forward_impl.6} parent=5 // pred_region
      %s2341 = ssub.s32 %s13, 2
      // Predicated region
      $region53: #{_forward_impl.6} parent=51 // pred_check
        %p2342 = pneg %p171
      $region54: #{_forward_impl.6} parent=51 // pred_check_branch
        %2344 = sbr.rel (%p2342) target = $region56
      $region55: #{_forward_impl.6} parent=51 // pred_region
        %s2345 = sadd.s32 %s24, %s25
        %s2346 = smul.u32 32, %s2345
        %p2347 = scmp.lt.s32.totalorder %s2346, 63
        %s2348 = scalar_select %p2347, %s2346, 63
        %s2349 = smul.addr %s2348, 8
        %s2350 = scalar_lea.vmem %s4, %s2349
      $region56: #{_forward_impl.6} parent=51 // pred_fallthru
        _
      // Predicated region
      $region57: #{_forward_impl.6} parent=51 // pred_check
        %p2351 = pneg %p199
      $region58: #{_forward_impl.6} parent=51 // pred_check_branch
        %2353 = sbr.rel (%p2351) target = $region60
      $region59: #{_forward_impl.6} parent=51 // pred_region
        %p2354 = scmp.lt.s32.totalorder %s24, 1
        %s2355 = scalar_select %p2354, %s24, 1
        %p2356 = scmp.lt.s32.totalorder %s25, 0
        %s2357 = scalar_select %p2356, %s25, 0
        %s2358 = sadd.s32 %s2357, %s2355
        %s2359 = scalar_lea.vmem %s5, %s2358
      $region60: #{_forward_impl.6} parent=51 // pred_fallthru
        _
      // Predicated region
      $region61: #{_forward_impl.6} parent=51 // pred_check
        %p2360 = pneg %p227
      $region62: #{_forward_impl.6} parent=51 // pred_check_branch
        %2362 = sbr.rel (%p2360) target = $region64
      $region63: #{_forward_impl.6} parent=51 // pred_region
        %p2363 = scmp.lt.s32.totalorder %s24, 1
        %s2364 = scalar_select %p2363, %s24, 1
        %p2365 = scmp.lt.s32.totalorder %s25, 0
        %s2366 = scalar_select %p2365, %s25, 0
        %s2367 = sadd.s32 %s2366, %s2364
        %s2368 = scalar_lea.vmem %s6, %s2367
      $region64: #{_forward_impl.6} parent=51 // pred_fallthru
        _
    $region52: #{_forward_impl.6} parent=5 // pred_fallthru
      _
  $region6: #{_forward_impl.6} parent=0 // loop_footer
    %s17 = sadd.s32 1, %s13
  $region7: #{_forward_impl.6} parent=0 // loop_footer_branch
    %12 = sbr.rel target = $region3
  $region8: #{_forward_impl.6} parent=0 // loop_exit
    _

// kernel: _forward_impl.8
$region0: #{_forward_impl.8}
  #allocation0 [shape = 'u32[]', space=smem, size = 0x4, offset = 0x4, fixed_abs, tag = 'smem constant byte address 0x4 - core index']
  #allocation1 [shape = 'u32[144,128]{1,0:T(1,128)}', space=vmem, size = 0x12000, scoped, tag = 'internal scratch']
  %s0 = inlined_call_operand.vmem [shape: f32[2,18,18,8], index: 0, kind: input, shape index: {}, may-alias: {0,1,2}]
  %s1 = inlined_call_operand.vmem [shape: f32[2,18,18,8], index: 1, kind: input, shape index: {}, may-alias: {0,1,2}]
  %s2 = inlined_call_operand.vmem [shape: f32[2,18,18,8], index: 2, kind: input, shape index: {}, may-alias: {0,1,2}]
  %s3 = inlined_call_operand.vmem [shape: f32[72,8], index: 3, kind: input, shape index: {}]
  %s4 = inlined_call_operand.vmem [shape: f32[512,8], index: 4, kind: output, shape index: {0}]
  %s5 = inlined_call_operand.vmem [shape: f32[2,1,1,8], index: 5, kind: output, shape index: {1}]
  %s6 = inlined_call_operand.vmem [shape: f32[2,1,1,8], index: 6, kind: output, shape index: {2}]
  %7 = xla_tuple %s4, %s5, %s6
  %s8 = sld [smem:[#allocation0]]
  $region65: #{_forward_impl.8} parent=0
    _
  %s10 = ssub.s32 1, %s8
  %s11 = scalar_select 0, %s10, %s8
  loop: start=0, step=1, limit=4
  $region2: #{_forward_impl.8} parent=0 // loop_pre_header
    _
  $region3: #{_forward_impl.8} parent=0 // loop_header
    %s13 = sphi 0, %s17
    %p14 = scmp.ge.s32.totalorder %s13, 4
    %s20 = sphi 0, %s32
    %s21 = sphi 0, %s28
    %s22 = sphi 0, %s20
    %s23 = sphi 0, %s21
    %s24 = sphi 0, %s22
    %s25 = sphi 0, %s23
    %s37 = sphi 0, %s39
    %s40 = sphi 0, %s37
    %s41 = sphi 0, %s40
    %s57 = sphi 0, %s41
    %s69 = sphi 0, %s71
    %s72 = sphi 0, %s69
    %s73 = sphi 0, %s72
    %s89 = sphi 0, %s73
    %s103 = sphi 0, %s105
    %s106 = sphi 0, %s103
    %s107 = sphi 0, %s106
    %s123 = sphi 0, %s107
    %s127 = sphi 0, %s127
    %s129 = sphi 0, %s127
    %s130 = sphi 0, %s129
    %s144 = sphi 0, %s130
    %s152 = sphi 0, %s154
    %s155 = sphi 0, %s152
    %s156 = sphi 0, %s155
    %s172 = sphi 0, %s156
    %s180 = sphi 0, %s182
    %s183 = sphi 0, %s180
    %s184 = sphi 0, %s183
    %s200 = sphi 0, %s184
    %s208 = sphi 0, %s210
    %s211 = sphi 0, %s208
    %s212 = sphi 0, %s211
    %s228 = sphi 0, %s212
  $region4: #{_forward_impl.8} parent=0 // loop_header_branch
    %16 = sbr.rel (%p14) target = $region8
  $region5: #{_forward_impl.8} parent=0 // loop_body
    %s18 = ssub.s32 %s13, 1
    %s19 = ssub.s32 %s13, 2
    %s26 = sadd.s32 1, %s21
    %p27 = scmp.ge.s32.totalorder %s26, 1
    %s28 = scalar_select %p27, 0, %s26
    %s29 = sadd.s32 1, %s20
    %s30 = scalar_select %p27, %s29, %s20
    %p31 = scmp.ge.s32.totalorder %s30, 2
    %s32 = scalar_select %p31, 0, %s30
    %s33 = ssub.s32 %s20, %s32
    %s34 = ssub.s32 %s21, %s28
    %s35 = sor.u32 %s33, %s34
    %p36 = scmp.eq.s32.totalorder %s35, 0
    %s38 = sadd.s32 %s37, 1
    %s39 = scalar_select %p36, %s37, %s38
    %p42 = pneg %p36
    %p43 = scmp.eq.s32.totalorder %s13, 1
    %p44 = por %p42, %p43
    %p45 = scmp.ne.s32.totalorder %s37, %s40
    %p46 = scmp.eq.s32.totalorder %s13, 0
    %p47 = por %p45, %p46
    %p48 = scmp.ne.s32.totalorder %s37, %s40
    %p49 = scmp.eq.s32.totalorder %s18, 1
    %p50 = por %p48, %p49
    %p51 = scmp.ne.s32.totalorder %s40, %s41
    %p52 = scmp.eq.s32.totalorder %s18, 0
    %p53 = por %p51, %p52
    %p54 = scmp.ne.s32.totalorder %s40, %s41
    %p55 = scmp.eq.s32.totalorder %s19, 1
    %p56 = por %p54, %p55
    %p58 = scmp.ne.s32.totalorder %s41, %s57
    %p59 = scmp.eq.s32.totalorder %s19, 0
    %p60 = por %p58, %p59
    %s61 = sadd.s32 %s21, 1
    %s62 = smul.u32 %s61, 16
    %s63 = sadd.s32 %s28, 1
    %s64 = smul.u32 %s63, 16
    %s65 = ssub.s32 %s20, %s32
    %s66 = ssub.s32 %s62, %s64
    %s67 = sor.u32 %s65, %s66
    %p68 = scmp.eq.s32.totalorder %s67, 0
    %s70 = sadd.s32 %s69, 1
    %s71 = scalar_select %p68, %s69, %s70
    %p74 = pneg %p68
    %p75 = scmp.eq.s32.totalorder %s13, 1
    %p76 = por %p74, %p75
    %p77 = scmp.ne.s32.totalorder %s69, %s72
    %p78 = scmp.eq.s32.totalorder %s13, 0
    %p79 = por %p77, %p78
    %p80 = scmp.ne.s32.totalorder %s69, %s72
    %p81 = scmp.eq.s32.totalorder %s18, 1
    %p82 = por %p80, %p81
    %p83 = scmp.ne.s32.totalorder %s72, %s73
    %p84 = scmp.eq.s32.totalorder %s18, 0
    %p85 = por %p83, %p84
    %p86 = scmp.ne.s32.totalorder %s72, %s73
    %p87 = scmp.eq.s32.totalorder %s19, 1
    %p88 = por %p86, %p87
    %p90 = scmp.ne.s32.totalorder %s73, %s89
    %p91 = scmp.eq.s32.totalorder %s19, 0
    %p92 = por %p90, %p91
    %s93 = sadd.s32 %s21, 1
    %s94 = smul.u32 %s93, 16
    %s95 = sadd.s32 %s94, 1
    %s96 = sadd.s32 %s28, 1
    %s97 = smul.u32 %s96, 16
    %s98 = sadd.s32 %s97, 1
    %s99 = ssub.s32 %s20, %s32
    %s100 = ssub.s32 %s95, %s98
    %s101 = sor.u32 %s99, %s100
    %p102 = scmp.eq.s32.totalorder %s101, 0
    %s104 = sadd.s32 %s103, 1
    %s105 = scalar_select %p102, %s103, %s104
    %p108 = pneg %p102
    %p109 = scmp.eq.s32.totalorder %s13, 1
    %p110 = por %p108, %p109
    %p111 = scmp.ne.s32.totalorder %s103, %s106
    %p112 = scmp.eq.s32.totalorder %s13, 0
    %p113 = por %p111, %p112
    %p114 = scmp.ne.s32.totalorder %s103, %s106
    %p115 = scmp.eq.s32.totalorder %s18, 1
    %p116 = por %p114, %p115
    %p117 = scmp.ne.s32.totalorder %s106, %s107
    %p118 = scmp.eq.s32.totalorder %s18, 0
    %p119 = por %p117, %p118
    %p120 = scmp.ne.s32.totalorder %s106, %s107
    %p121 = scmp.eq.s32.totalorder %s19, 1
    %p122 = por %p120, %p121
    %p124 = scmp.ne.s32.totalorder %s107, %s123
    %p125 = scmp.eq.s32.totalorder %s19, 0
    %p126 = por %p124, %p125
    %s128 = sadd.s32 %s127, 1
    %p131 = scmp.eq.s32.totalorder %s13, 1
    %p132 = scmp.ne.s32.totalorder %s127, %s129
    %p133 = scmp.eq.s32.totalorder %s13, 0
    %p134 = por %p132, %p133
    %p135 = scmp.ne.s32.totalorder %s127, %s129
    %p136 = scmp.eq.s32.totalorder %s18, 1
    %p137 = por %p135, %p136
    %p138 = scmp.ne.s32.totalorder %s129, %s130
    %p139 = scmp.eq.s32.totalorder %s18, 0
    %p140 = por %p138, %p139
    %p141 = scmp.ne.s32.totalorder %s129, %s130
    %p142 = scmp.eq.s32.totalorder %s19, 1
    %p143 = por %p141, %p142
    %p145 = scmp.ne.s32.totalorder %s130, %s144
    %p146 = scmp.eq.s32.totalorder %s19, 0
    %p147 = por %p145, %p146
    %s148 = sadd.s32 %s20, %s21
    %s149 = sadd.s32 %s32, %s28
    %s150 = ssub.s32 %s148, %s149
    %p151 = scmp.eq.s32.totalorder %s150, 0
    %s153 = sadd.s32 %s152, 1
    %s154 = scalar_select %p151, %s152, %s153
    %p157 = pneg %p151
    %p158 = scmp.eq.s32.totalorder %s13, 1
    %p159 = por %p157, %p158
    %p160 = scmp.ne.s32.totalorder %s152, %s155
    %p161 = scmp.eq.s32.totalorder %s13, 0
    %p162 = por %p160, %p161
    %p163 = scmp.ne.s32.totalorder %s152, %s155
    %p164 = scmp.eq.s32.totalorder %s18, 1
    %p165 = por %p163, %p164
    %p166 = scmp.ne.s32.totalorder %s155, %s156
    %p167 = scmp.eq.s32.totalorder %s18, 0
    %p168 = por %p166, %p167
    %p169 = scmp.ne.s32.totalorder %s155, %s156
    %p170 = scmp.eq.s32.totalorder %s19, 1
    %p171 = por %p169, %p170
    %p173 = scmp.ne.s32.totalorder %s156, %s172
    %p174 = scmp.eq.s32.totalorder %s19, 0
    %p175 = por %p173, %p174
    %s176 = ssub.s32 %s20, %s32
    %s177 = ssub.s32 %s21, %s28
    %s178 = sor.u32 %s176, %s177
    %p179 = scmp.eq.s32.totalorder %s178, 0
    %s181 = sadd.s32 %s180, 1
    %s182 = scalar_select %p179, %s180, %s181
    %p185 = pneg %p179
    %p186 = scmp.eq.s32.totalorder %s13, 1
    %p187 = por %p185, %p186
    %p188 = scmp.ne.s32.totalorder %s180, %s183
    %p189 = scmp.eq.s32.totalorder %s13, 0
    %p190 = por %p188, %p189
    %p191 = scmp.ne.s32.totalorder %s180, %s183
    %p192 = scmp.eq.s32.totalorder %s18, 1
    %p193 = por %p191, %p192
    %p194 = scmp.ne.s32.totalorder %s183, %s184
    %p195 = scmp.eq.s32.totalorder %s18, 0
    %p196 = por %p194, %p195
    %p197 = scmp.ne.s32.totalorder %s183, %s184
    %p198 = scmp.eq.s32.totalorder %s19, 1
    %p199 = por %p197, %p198
    %p201 = scmp.ne.s32.totalorder %s184, %s200
    %p202 = scmp.eq.s32.totalorder %s19, 0
    %p203 = por %p201, %p202
    %s204 = ssub.s32 %s20, %s32
    %s205 = ssub.s32 %s21, %s28
    %s206 = sor.u32 %s204, %s205
    %p207 = scmp.eq.s32.totalorder %s206, 0
    %s209 = sadd.s32 %s208, 1
    %s210 = scalar_select %p207, %s208, %s209
    %p213 = pneg %p207
    %p214 = scmp.eq.s32.totalorder %s13, 1
    %p215 = por %p213, %p214
    %p216 = scmp.ne.s32.totalorder %s208, %s211
    %p217 = scmp.eq.s32.totalorder %s13, 0
    %p218 = por %p216, %p217
    %p219 = scmp.ne.s32.totalorder %s208, %s211
    %p220 = scmp.eq.s32.totalorder %s18, 1
    %p221 = por %p219, %p220
    %p222 = scmp.ne.s32.totalorder %s211, %s212
    %p223 = scmp.eq.s32.totalorder %s18, 0
    %p224 = por %p222, %p223
    %p225 = scmp.ne.s32.totalorder %s211, %s212
    %p226 = scmp.eq.s32.totalorder %s19, 1
    %p227 = por %p225, %p226
    %p229 = scmp.ne.s32.totalorder %s212, %s228
    %p230 = scmp.eq.s32.totalorder %s19, 0
    %p231 = por %p229, %p230
    %p232 = scmp.le.s32.totalorder 1, %s13
    %p233 = scmp.lt.s32.totalorder %s13, 3
    %p234 = pnand %p232, %p233
    %p235 = pneg %p234
    // Predicated region
    $region9: #{_forward_impl.8} parent=5 // pred_check
      _
    $region10: #{_forward_impl.8} parent=5 // pred_check_branch
      %237 = sbr.rel (%p234) target = $region12
    $region11: #{_forward_impl.8} parent=5 // pred_region
      %s238 = ssub.s32 %s13, 1
      // Predicated region
      $region13: #{_forward_impl.8} parent=11 // pred_check
        %p239 = pneg %p140
      $region14: #{_forward_impl.8} parent=11 // pred_check_branch
        %241 = sbr.rel (%p239) target = $region16
      $region15: #{_forward_impl.8} parent=11 // pred_region
        _
      $region16: #{_forward_impl.8} parent=11 // pred_fallthru
        _
    $region12: #{_forward_impl.8} parent=5 // pred_fallthru
      _
    %p242 = scmp.lt.s32.totalorder %s13, 2
    // Predicated region
    $region17: #{_forward_impl.8} parent=5 // pred_check
      %p243 = pneg %p242
    $region18: #{_forward_impl.8} parent=5 // pred_check_branch
      %245 = sbr.rel (%p243) target = $region20
    $region19: #{_forward_impl.8} parent=5 // pred_region
      // Predicated region
      $region21: #{_forward_impl.8} parent=19 // pred_check
        %p246 = pneg %p47
      $region22: #{_forward_impl.8} parent=19 // pred_check_branch
        %248 = sbr.rel (%p246) target = $region24
      $region23: #{_forward_impl.8} parent=19 // pred_region
        %s249 = smul.u32 16, %s21
        %s250 = ssub.s32 18, %s249
        %p251 = scmp.lt.s32.totalorder %s250, 16
        %s252 = scalar_select %p251, %s250, 16
        %s253 = smul.u32 128, %s252
        %s254 = smul.u32 %s253, 3
        %p255 = scmp.lt.s32.totalorder %s20, 1
        %s256 = scalar_select %p255, %s20, 1
        %p257 = scmp.lt.s32.totalorder %s249, 17
        %s258 = scalar_select %p257, %s249, 17
        %s259 = smul.addr %s258, 3
        %s260 = smul.addr %s256, 54
        %s261 = sadd.s32 %s259, %s260
        %s262 = smul.addr %s261, 8
        %s263 = scalar_lea.vmem %s0, %s262
        %s264 = smul.u32 16, %s21
        %s265 = ssub.s32 18, %s264
        %p266 = scmp.lt.s32.totalorder %s265, 16
        %s267 = scalar_select %p266, %s265, 16
        %s268 = smul.u32 128, %s267
        %s269 = smul.u32 %s268, 3
      $region24: #{_forward_impl.8} parent=19 // pred_fallthru
        _
      // Predicated region
      $region25: #{_forward_impl.8} parent=19 // pred_check
        %p270 = pneg %p79
      $region26: #{_forward_impl.8} parent=19 // pred_check_branch
        %272 = sbr.rel (%p270) target = $region28
      $region27: #{_forward_impl.8} parent=19 // pred_region
        %s273 = sadd.s32 %s21, 1
        %s274 = smul.u32 %s273, 16
        %p275 = scmp.lt.s32.totalorder %s20, 1
        %s276 = scalar_select %p275, %s20, 1
        %p277 = scmp.lt.s32.totalorder %s274, 17
        %s278 = scalar_select %p277, %s274, 17
        %s279 = smul.addr %s278, 3
        %s280 = smul.addr %s276, 54
        %s281 = sadd.s32 %s279, %s280
        %s282 = smul.addr %s281, 8
        %s283 = scalar_lea.vmem %s1, %s282
        %s284 = sadd.s32 %s21, 1
        %s285 = smul.u32 %s284, 16
      $region28: #{_forward_impl.8} parent=19 // pred_fallthru
        _
      // Predicated region
      $region29: #{_forward_impl.8} parent=19 // pred_check
        %p286 = pneg %p113
      $region30: #{_forward_impl.8} parent=19 // pred_check_branch
        %288 = sbr.rel (%p286) target = $region32
      $region31: #{_forward_impl.8} parent=19 // pred_region
        %s289 = sadd.s32 %s21, 1
        %s290 = smul.u32 %s289, 16
        %s291 = sadd.s32 %s290, 1
        %p292 = scmp.lt.s32.totalorder %s20, 1
        %s293 = scalar_select %p292, %s20, 1
        %p294 = scmp.lt.s32.totalorder %s291, 17
        %s295 = scalar_select %p294, %s291, 17
        %s296 = smul.addr %s295, 3
        %s297 = smul.addr %s293, 54
        %s298 = sadd.s32 %s296, %s297
        %s299 = smul.addr %s298, 8
        %s300 = scalar_lea.vmem %s2, %s299
        %s301 = sadd.s32 %s21, 1
        %s302 = smul.u32 %s301, 16
        %s303 = sadd.s32 %s302, 1
      $region32: #{_forward_impl.8} parent=19 // pred_fallthru
        _
    $region20: #{_forward_impl.8} parent=5 // pred_fallthru
      _
    %p304 = scmp.le.s32.totalorder 1, %s13
    %p305 = scmp.lt.s32.totalorder %s13, 3
    %p306 = pnand %p304, %p305
    %p307 = pneg %p306
    // Predicated region
    $region33: #{_forward_impl.8} parent=5 // pred_check
      _
    $region34: #{_forward_impl.8} parent=5 // pred_check_branch
      %309 = sbr.rel (%p306) target = $region36
    $region35: #{_forward_impl.8} parent=5 // pred_region
      %s310 = ssub.s32 %s13, 1
      %s311 = smul.u32 16, %s23
      %s312 = ssub.s32 18, %s311
      %p313 = scmp.lt.s32.totalorder %s312, 16
      %s314 = scalar_select %p313, %s312, 16
      %s315 = smul.u32 128, %s314
      %s316 = smul.u32 %s315, 3
      %p317 = scmp.lt.s32.totalorder %s22, 1
      %s318 = scalar_select %p317, %s22, 1
      %p319 = scmp.lt.s32.totalorder %s311, 17
      %s320 = scalar_select %p319, %s311, 17
      %s321 = smul.addr %s320, 3
      %s322 = smul.addr %s318, 54
      %s323 = sadd.s32 %s321, %s322
      %s324 = smul.addr %s323, 8
      %s325 = scalar_lea.vmem %s0, %s324
      %p326 = pneg %p53
      %p327 = pneg %p50
      %s328 = sadd.s32 %s23, 1
      %s329 = smul.u32 %s328, 16
      %p330 = scmp.lt.s32.totalorder %s22, 1
      %s331 = scalar_select %p330, %s22, 1
      %p332 = scmp.lt.s32.totalorder %s329, 17
      %s333 = scalar_select %p332, %s329, 17
      %s334 = smul.addr %s333, 3
      %s335 = smul.addr %s331, 54
      %s336 = sadd.s32 %s334, %s335
      %s337 = smul.addr %s336, 8
      %s338 = scalar_lea.vmem %s1, %s337
      %p339 = pneg %p85
      %p340 = pneg %p82
      %s341 = sadd.s32 %s23, 1
      %s342 = smul.u32 %s341, 16
      %s343 = sadd.s32 %s342, 1
      %p344 = scmp.lt.s32.totalorder %s22, 1
      %s345 = scalar_select %p344, %s22, 1
      %p346 = scmp.lt.s32.totalorder %s343, 17
      %s347 = scalar_select %p346, %s343, 17
      %s348 = smul.addr %s347, 3
      %s349 = smul.addr %s345, 54
      %s350 = sadd.s32 %s348, %s349
      %s351 = smul.addr %s350, 8
      %s352 = scalar_lea.vmem %s2, %s351
      %p353 = pneg %p119
      %p354 = pneg %p116
      %p355 = pneg %p140
      %p356 = pneg %p137
      %p357 = pneg %p168
      %p358 = pneg %p165
      %s359 = sadd.s32 %s22, %s23
      %s360 = smul.u32 32, %s359
      %p361 = scmp.lt.s32.totalorder %s360, 63
      %s362 = scalar_select %p361, %s360, 63
      %s363 = smul.addr %s362, 8
      %s364 = scalar_lea.vmem %s4, %s363
      %p365 = pneg %p196
      %p366 = pneg %p193
      %p367 = scmp.lt.s32.totalorder %s22, 1
      %s368 = scalar_select %p367, %s22, 1
      %p369 = scmp.lt.s32.totalorder %s23, 0
      %s370 = scalar_select %p369, %s23, 0
      %s371 = sadd.s32 %s370, %s368
      %s372 = scalar_lea.vmem %s5, %s371
      %p373 = pneg %p224
      %p374 = pneg %p221
      %p375 = scmp.lt.s32.totalorder %s22, 1
      %s376 = scalar_select %p375, %s22, 1
      %p377 = scmp.lt.s32.totalorder %s23, 0
      %s378 = scalar_select %p377, %s23, 0
      %s379 = sadd.s32 %s378, %s376
      %s380 = scalar_lea.vmem %s6, %s379
      %s381 = smul.u32 16, %s23
      %s382 = ssub.s32 18, %s381
      %p383 = scmp.lt.s32.totalorder %s382, 16
      %s384 = scalar_select %p383, %s382, 16
      %s385 = smul.u32 128, %s384
      %s386 = smul.u32 %s385, 3
      %p387 = scmp.lt.s32.totalorder %s22, 1
      %s388 = scalar_select %p387, %s22, 1
      %p389 = scmp.lt.s32.totalorder %s381, 17
      %s390 = scalar_select %p389, %s381, 17
      %s391 = smul.addr %s390, 3
      %s392 = smul.addr %s388, 54
      %s393 = sadd.s32 %s391, %s392
      %s394 = smul.addr %s393, 8
      %s395 = scalar_lea.vmem %s0, %s394
      %s396 = smul.u32 16, %s23
      %s397 = ssub.s32 18, %s396
      %p398 = scmp.lt.s32.totalorder %s397, 16
      %s399 = scalar_select %p398, %s397, 16
      %s400 = smul.u32 128, %s399
      %s401 = smul.u32 %s400, 3
      %s402 = sadd.s32 %s23, 1
      %s403 = smul.u32 %s402, 16
      %p404 = scmp.lt.s32.totalorder %s22, 1
      %s405 = scalar_select %p404, %s22, 1
      %p406 = scmp.lt.s32.totalorder %s403, 17
      %s407 = scalar_select %p406, %s403, 17
      %s408 = smul.addr %s407, 3
      %s409 = smul.addr %s405, 54
      %s410 = sadd.s32 %s408, %s409
      %s411 = smul.addr %s410, 8
      %s412 = scalar_lea.vmem %s1, %s411
      %s413 = sadd.s32 %s23, 1
      %s414 = smul.u32 %s413, 16
      %s415 = sadd.s32 %s23, 1
      %s416 = smul.u32 %s415, 16
      %s417 = sadd.s32 %s416, 1
      %p418 = scmp.lt.s32.totalorder %s22, 1
      %s419 = scalar_select %p418, %s22, 1
      %p420 = scmp.lt.s32.totalorder %s417, 17
      %s421 = scalar_select %p420, %s417, 17
      %s422 = smul.addr %s421, 3
      %s423 = smul.addr %s419, 54
      %s424 = sadd.s32 %s422, %s423
      %s425 = smul.addr %s424, 8
      %s426 = scalar_lea.vmem %s2, %s425
      %s427 = sadd.s32 %s23, 1
      %s428 = smul.u32 %s427, 16
      %s429 = sadd.s32 %s428, 1
      %s430 = sadd.s32 %s22, %s23
      %s431 = smul.u32 32, %s430
      %p432 = scmp.lt.s32.totalorder %s431, 63
      %s433 = scalar_select %p432, %s431, 63
      %s434 = smul.addr %s433, 8
      %s435 = scalar_lea.vmem %s4, %s434
      %s436 = sadd.s32 %s22, %s23
      %s437 = smul.u32 32, %s436
      %p438 = scmp.lt.s32.totalorder %s22, 1
      %s439 = scalar_select %p438, %s22, 1
      %p440 = scmp.lt.s32.totalorder %s23, 0
      %s441 = scalar_select %p440, %s23, 0
      %s442 = sadd.s32 %s441, %s439
      %s443 = scalar_lea.vmem %s5, %s442
      %p444 = scmp.lt.s32.totalorder %s22, 1
      %s445 = scalar_select %p444, %s22, 1
      %p446 = scmp.lt.s32.totalorder %s23, 0
      %s447 = scalar_select %p446, %s23, 0
      %s448 = sadd.s32 %s447, %s445
      %s449 = scalar_lea.vmem %s6, %s448
      %v450 = vld [vmem:[%s395] sm:$0xff]
      %v451 = vld [vmem:[%s395 + $0x8] sm:$0xff]
      %v452 = vld [vmem:[%s395 + $0x10] sm:$0x3]
      %v453 = vld [vmem:[%s395 + $0x18] sm:$0xff]
      %v454 = vld [vmem:[%s395 + $0x20] sm:$0xff]
      %v455 = vld [vmem:[%s395 + $0x28] sm:$0x3]
      %v456 = vld [vmem:[%s395 + $0x30] sm:$0xff]
      %v457 = vld [vmem:[%s395 + $0x38] sm:$0xff]
      %v458 = vld [vmem:[%s395 + $0x40] sm:$0x3]
      %v459 = vld [vmem:[%s395 + $0x48] sm:$0xff]
      %v460 = vld [vmem:[%s395 + $0x50] sm:$0xff]
      %v461 = vld [vmem:[%s395 + $0x58] sm:$0x3]
      %v462 = vld [vmem:[%s395 + $0x60] sm:$0xff]
      %v463 = vld [vmem:[%s395 + $0x68] sm:$0xff]
      %v464 = vld [vmem:[%s395 + $0x70] sm:$0x3]
      %v465 = vld [vmem:[%s395 + $0x78] sm:$0xff]
      %v466 = vld [vmem:[%s395 + $0x80] sm:$0xff]
      %v467 = vld [vmem:[%s395 + $0x88] sm:$0x3]
      %v468 = vld [vmem:[%s395 + $0x90] sm:$0xff]
      %v469 = vld [vmem:[%s395 + $0x98] sm:$0xff]
      %v470 = vld [vmem:[%s395 + $0xa0] sm:$0x3]
      %v471 = vld [vmem:[%s395 + $0xa8] sm:$0xff]
      %v472 = vld [vmem:[%s395 + $0xb0] sm:$0xff]
      %v473 = vld [vmem:[%s395 + $0xb8] sm:$0x3]
      %v474 = vld [vmem:[%s395 + $0xc0] sm:$0xff]
      %v475 = vld [vmem:[%s395 + $0xc8] sm:$0xff]
      %v476 = vld [vmem:[%s395 + $0xd0] sm:$0x3]
      %v477 = vld [vmem:[%s395 + $0xd8] sm:$0xff]
      %v478 = vld [vmem:[%s395 + $0xe0] sm:$0xff]
      %v479 = vld [vmem:[%s395 + $0xe8] sm:$0x3]
      %v480 = vld [vmem:[%s395 + $0xf0] sm:$0xff]
      %v481 = vld [vmem:[%s395 + $0xf8] sm:$0xff]
      %v482 = vld [vmem:[%s395 + $0x100] sm:$0x3]
      %v483 = vld [vmem:[%s395 + $0x108] sm:$0xff]
      %v484 = vld [vmem:[%s395 + $0x110] sm:$0xff]
      %v485 = vld [vmem:[%s395 + $0x118] sm:$0x3]
      %v486 = vld [vmem:[%s395 + $0x120] sm:$0xff]
      %v487 = vld [vmem:[%s395 + $0x128] sm:$0xff]
      %v488 = vld [vmem:[%s395 + $0x130] sm:$0x3]
      %v489 = vld [vmem:[%s395 + $0x138] sm:$0xff]
      %v490 = vld [vmem:[%s395 + $0x140] sm:$0xff]
      %v491 = vld [vmem:[%s395 + $0x148] sm:$0x3]
      %v492 = vld [vmem:[%s395 + $0x150] sm:$0xff]
      %v493 = vld [vmem:[%s395 + $0x158] sm:$0xff]
      %v494 = vld [vmem:[%s395 + $0x160] sm:$0x3]
      %v495 = vld [vmem:[%s395 + $0x168] sm:$0xff]
      %v496 = vld [vmem:[%s395 + $0x170] sm:$0xff]
      %v497 = vld [vmem:[%s395 + $0x178] sm:$0x3]
      %v498 = vld [vmem:[%s412] sm:$0xff]
      %v499 = vld [vmem:[%s412 + $0x8] sm:$0xff]
      %v500 = vld [vmem:[%s412 + $0x10] sm:$0x3]
      %v501 = vld [vmem:[%s426] sm:$0xff]
      %v502 = vld [vmem:[%s426 + $0x8] sm:$0xff]
      %v503 = vld [vmem:[%s426 + $0x10] sm:$0x3]
      %vm552 = vcmask 1046528
      %v553 = vrot.slane %v450, 1
      %v554 = vrot.slane %v451, 1
      %v555 = vsel %vm552, %v553, %v554
      %v556 = vrot.slane %v452, 1
      %v557 = vsel %vm552, %v554, %v556
      %v558 = vrot.slane %v453, 1
      %v559 = vrot.slane %v454, 1
      %v560 = vsel %vm552, %v558, %v559
      %v561 = vrot.slane %v455, 1
      %v562 = vsel %vm552, %v559, %v561
      %v563 = vrot.slane %v456, 1
      %v564 = vrot.slane %v457, 1
      %v565 = vsel %vm552, %v563, %v564
      %v566 = vrot.slane %v458, 1
      %v567 = vsel %vm552, %v564, %v566
      %v568 = vrot.slane %v459, 1
      %v569 = vrot.slane %v460, 1
      %v570 = vsel %vm552, %v568, %v569
      %v571 = vrot.slane %v461, 1
      %v572 = vsel %vm552, %v569, %v571
      %v573 = vrot.slane %v462, 1
      %v574 = vrot.slane %v463, 1
      %v575 = vsel %vm552, %v573, %v574
      %v576 = vrot.slane %v464, 1
      %v577 = vsel %vm552, %v574, %v576
      %v578 = vrot.slane %v465, 1
      %v579 = vrot.slane %v466, 1
      %v580 = vsel %vm552, %v578, %v579
      %v581 = vrot.slane %v467, 1
      %v582 = vsel %vm552, %v579, %v581
      %v583 = vrot.slane %v468, 1
      %v584 = vrot.slane %v469, 1
      %v585 = vsel %vm552, %v583, %v584
      %v586 = vrot.slane %v470, 1
      %v587 = vsel %vm552, %v584, %v586
      %v588 = vrot.slane %v471, 1
      %v589 = vrot.slane %v472, 1
      %v590 = vsel %vm552, %v588, %v589
      %v591 = vrot.slane %v473, 1
      %v592 = vsel %vm552, %v589, %v591
      %v593 = vrot.slane %v474, 1
      %v594 = vrot.slane %v475, 1
      %v595 = vsel %vm552, %v593, %v594
      %v596 = vrot.slane %v476, 1
      %v597 = vsel %vm552, %v594, %v596
      %v598 = vrot.slane %v477, 1
      %v599 = vrot.slane %v478, 1
      %v600 = vsel %vm552, %v598, %v599
      %v601 = vrot.slane %v479, 1
      %v602 = vsel %vm552, %v599, %v601
      %v603 = vrot.slane %v480, 1
      %v604 = vrot.slane %v481, 1
      %v605 = vsel %vm552, %v603, %v604
      %v606 = vrot.slane %v482, 1
      %v607 = vsel %vm552, %v604, %v606
      %v608 = vrot.slane %v483, 1
      %v609 = vrot.slane %v484, 1
      %v610 = vsel %vm552, %v608, %v609
      %v611 = vrot.slane %v485, 1
      %v612 = vsel %vm552, %v609, %v611
      %v613 = vrot.slane %v486, 1
      %v614 = vrot.slane %v487, 1
      %v615 = vsel %vm552, %v613, %v614
      %v616 = vrot.slane %v488, 1
      %v617 = vsel %vm552, %v614, %v616
      %v618 = vrot.slane %v489, 1
      %v619 = vrot.slane %v490, 1
      %v620 = vsel %vm552, %v618, %v619
      %v621 = vrot.slane %v491, 1
      %v622 = vsel %vm552, %v619, %v621
      %v623 = vrot.slane %v492, 1
      %v624 = vrot.slane %v493, 1
      %v625 = vsel %vm552, %v623, %v624
      %v626 = vrot.slane %v494, 1
      %v627 = vsel %vm552, %v624, %v626
      %v628 = vrot.slane %v495, 1
      %v629 = vrot.slane %v496, 1
      %v630 = vsel %vm552, %v628, %v629
      %v631 = vrot.slane %v497, 1
      %v632 = vsel %vm552, %v629, %v631
      %vm633 = vcmask 1045504
      %v634 = vrot.slane %v450, 2
      %v635 = vrot.slane %v451, 2
      %v636 = vsel %vm633, %v634, %v635
      %v637 = vrot.slane %v452, 2
      %v638 = vsel %vm633, %v635, %v637
      %v639 = vrot.slane %v453, 2
      %v640 = vrot.slane %v454, 2
      %v641 = vsel %vm633, %v639, %v640
      %v642 = vrot.slane %v455, 2
      %v643 = vsel %vm633, %v640, %v642
      %v644 = vrot.slane %v456, 2
      %v645 = vrot.slane %v457, 2
      %v646 = vsel %vm633, %v644, %v645
      %v647 = vrot.slane %v458, 2
      %v648 = vsel %vm633, %v645, %v647
      %v649 = vrot.slane %v459, 2
      %v650 = vrot.slane %v460, 2
      %v651 = vsel %vm633, %v649, %v650
      %v652 = vrot.slane %v461, 2
      %v653 = vsel %vm633, %v650, %v652
      %v654 = vrot.slane %v462, 2
      %v655 = vrot.slane %v463, 2
      %v656 = vsel %vm633, %v654, %v655
      %v657 = vrot.slane %v464, 2
      %v658 = vsel %vm633, %v655, %v657
      %v659 = vrot.slane %v465, 2
      %v660 = vrot.slane %v466, 2
      %v661 = vsel %vm633, %v659, %v660
      %v662 = vrot.slane %v467, 2
      %v663 = vsel %vm633, %v660, %v662
      %v664 = vrot.slane %v468, 2
      %v665 = vrot.slane %v469, 2
      %v666 = vsel %vm633, %v664, %v665
      %v667 = vrot.slane %v470, 2
      %v668 = vsel %vm633, %v665, %v667
      %v669 = vrot.slane %v471, 2
      %v670 = vrot.slane %v472, 2
      %v671 = vsel %vm633, %v669, %v670
      %v672 = vrot.slane %v473, 2
      %v673 = vsel %vm633, %v670, %v672
      %v674 = vrot.slane %v474, 2
      %v675 = vrot.slane %v475, 2
      %v676 = vsel %vm633, %v674, %v675
      %v677 = vrot.slane %v476, 2
      %v678 = vsel %vm633, %v675, %v677
      %v679 = vrot.slane %v477, 2
      %v680 = vrot.slane %v478, 2
      %v681 = vsel %vm633, %v679, %v680
      %v682 = vrot.slane %v479, 2
      %v683 = vsel %vm633, %v680, %v682
      %v684 = vrot.slane %v480, 2
      %v685 = vrot.slane %v481, 2
      %v686 = vsel %vm633, %v684, %v685
      %v687 = vrot.slane %v482, 2
      %v688 = vsel %vm633, %v685, %v687
      %v689 = vrot.slane %v483, 2
      %v690 = vrot.slane %v484, 2
      %v691 = vsel %vm633, %v689, %v690
      %v692 = vrot.slane %v485, 2
      %v693 = vsel %vm633, %v690, %v692
      %v694 = vrot.slane %v486, 2
      %v695 = vrot.slane %v487, 2
      %v696 = vsel %vm633, %v694, %v695
      %v697 = vrot.slane %v488, 2
      %v698 = vsel %vm633, %v695, %v697
      %v699 = vrot.slane %v489, 2
      %v700 = vrot.slane %v490, 2
      %v701 = vsel %vm633, %v699, %v700
      %v702 = vrot.slane %v491, 2
      %v703 = vsel %vm633, %v700, %v702
      %v704 = vrot.slane %v492, 2
      %v705 = vrot.slane %v493, 2
      %v706 = vsel %vm633, %v704, %v705
      %v707 = vrot.slane %v494, 2
      %v708 = vsel %vm633, %v705, %v707
      %v709 = vrot.slane %v495, 2
      %v710 = vrot.slane %v496, 2
      %v711 = vsel %vm633, %v709, %v710
      %v712 = vrot.slane %v497, 2
      %v713 = vsel %vm633, %v710, %v712
      %v717 = vrot.slane %v498, 1
      %v718 = vrot.slane %v499, 1
      %v719 = vsel %vm552, %v717, %v718
      %v720 = vrot.slane %v500, 1
      %v721 = vsel %vm552, %v718, %v720
      %v722 = vrot.slane %v498, 2
      %v723 = vrot.slane %v499, 2
      %v724 = vsel %vm633, %v722, %v723
      %v725 = vrot.slane %v500, 2
      %v726 = vsel %vm633, %v723, %v725
      %v730 = vrot.slane %v501, 1
      %v731 = vrot.slane %v502, 1
      %v732 = vsel %vm552, %v730, %v731
      %v733 = vrot.slane %v503, 1
      %v734 = vsel %vm552, %v731, %v733
      %v735 = vrot.slane %v501, 2
      %v736 = vrot.slane %v502, 2
      %v737 = vsel %vm633, %v735, %v736
      %v738 = vrot.slane %v503, 2
      %v739 = vsel %vm633, %v736, %v738
      %740 = vrot.lane.b32.xlu0 %v555, 8
      %v741 = vpop.permute.xlu0 %740
      %742 = vrot.lane.b32.xlu0 %v557, 8
      %v743 = vpop.permute.xlu0 %742
      %744 = vrot.lane.b32.xlu0 %v560, 8
      %v745 = vpop.permute.xlu0 %744
      %746 = vrot.lane.b32.xlu0 %v562, 8
      %v747 = vpop.permute.xlu0 %746
      %748 = vrot.lane.b32.xlu0 %v565, 8
      %v749 = vpop.permute.xlu0 %748
      %750 = vrot.lane.b32.xlu0 %v567, 8
      %v751 = vpop.permute.xlu0 %750
      %752 = vrot.lane.b32.xlu0 %v570, 8
      %v753 = vpop.permute.xlu0 %752
      %754 = vrot.lane.b32.xlu0 %v572, 8
      %v755 = vpop.permute.xlu0 %754
      %756 = vrot.lane.b32.xlu0 %v575, 8
      %v757 = vpop.permute.xlu0 %756
      %758 = vrot.lane.b32.xlu0 %v577, 8
      %v759 = vpop.permute.xlu0 %758
      %760 = vrot.lane.b32.xlu0 %v580, 8
      %v761 = vpop.permute.xlu0 %760
      %762 = vrot.lane.b32.xlu0 %v582, 8
      %v763 = vpop.permute.xlu0 %762
      %764 = vrot.lane.b32.xlu0 %v585, 8
      %v765 = vpop.permute.xlu0 %764
      %766 = vrot.lane.b32.xlu0 %v587, 8
      %v767 = vpop.permute.xlu0 %766
      %768 = vrot.lane.b32.xlu0 %v590, 8
      %v769 = vpop.permute.xlu0 %768
      %770 = vrot.lane.b32.xlu0 %v592, 8
      %v771 = vpop.permute.xlu0 %770
      %772 = vrot.lane.b32.xlu0 %v595, 8
      %v773 = vpop.permute.xlu0 %772
      %774 = vrot.lane.b32.xlu0 %v597, 8
      %v775 = vpop.permute.xlu0 %774
      %776 = vrot.lane.b32.xlu0 %v600, 8
      %v777 = vpop.permute.xlu0 %776
      %778 = vrot.lane.b32.xlu0 %v602, 8
      %v779 = vpop.permute.xlu0 %778
      %780 = vrot.lane.b32.xlu0 %v605, 8
      %v781 = vpop.permute.xlu0 %780
      %782 = vrot.lane.b32.xlu0 %v607, 8
      %v783 = vpop.permute.xlu0 %782
      %784 = vrot.lane.b32.xlu0 %v610, 8
      %v785 = vpop.permute.xlu0 %784
      %786 = vrot.lane.b32.xlu0 %v612, 8
      %v787 = vpop.permute.xlu0 %786
      %788 = vrot.lane.b32.xlu0 %v615, 8
      %v789 = vpop.permute.xlu0 %788
      %790 = vrot.lane.b32.xlu0 %v617, 8
      %v791 = vpop.permute.xlu0 %790
      %792 = vrot.lane.b32.xlu0 %v620, 8
      %v793 = vpop.permute.xlu0 %792
      %794 = vrot.lane.b32.xlu0 %v622, 8
      %v795 = vpop.permute.xlu0 %794
      %796 = vrot.lane.b32.xlu0 %v625, 8
      %v797 = vpop.permute.xlu0 %796
      %798 = vrot.lane.b32.xlu0 %v627, 8
      %v799 = vpop.permute.xlu0 %798
      %800 = vrot.lane.b32.xlu0 %v630, 8
      %v801 = vpop.permute.xlu0 %800
      %802 = vrot.lane.b32.xlu0 %v632, 8
      %v803 = vpop.permute.xlu0 %802
      %836 = vrot.lane.b32.xlu0 %v636, 16
      %v837 = vpop.permute.xlu0 %836
      %838 = vrot.lane.b32.xlu0 %v638, 16
      %v839 = vpop.permute.xlu0 %838
      %840 = vrot.lane.b32.xlu0 %v641, 16
      %v841 = vpop.permute.xlu0 %840
      %842 = vrot.lane.b32.xlu0 %v643, 16
      %v843 = vpop.permute.xlu0 %842
      %844 = vrot.lane.b32.xlu0 %v646, 16
      %v845 = vpop.permute.xlu0 %844
      %846 = vrot.lane.b32.xlu0 %v648, 16
      %v847 = vpop.permute.xlu0 %846
      %848 = vrot.lane.b32.xlu0 %v651, 16
      %v849 = vpop.permute.xlu0 %848
      %850 = vrot.lane.b32.xlu0 %v653, 16
      %v851 = vpop.permute.xlu0 %850
      %852 = vrot.lane.b32.xlu0 %v656, 16
      %v853 = vpop.permute.xlu0 %852
      %854 = vrot.lane.b32.xlu0 %v658, 16
      %v855 = vpop.permute.xlu0 %854
      %856 = vrot.lane.b32.xlu0 %v661, 16
      %v857 = vpop.permute.xlu0 %856
      %858 = vrot.lane.b32.xlu0 %v663, 16
      %v859 = vpop.permute.xlu0 %858
      %860 = vrot.lane.b32.xlu0 %v666, 16
      %v861 = vpop.permute.xlu0 %860
      %862 = vrot.lane.b32.xlu0 %v668, 16
      %v863 = vpop.permute.xlu0 %862
      %864 = vrot.lane.b32.xlu0 %v671, 16
      %v865 = vpop.permute.xlu0 %864
      %866 = vrot.lane.b32.xlu0 %v673, 16
      %v867 = vpop.permute.xlu0 %866
      %868 = vrot.lane.b32.xlu0 %v676, 16
      %v869 = vpop.permute.xlu0 %868
      %870 = vrot.lane.b32.xlu0 %v678, 16
      %v871 = vpop.permute.xlu0 %870
      %872 = vrot.lane.b32.xlu0 %v681, 16
      %v873 = vpop.permute.xlu0 %872
      %874 = vrot.lane.b32.xlu0 %v683, 16
      %v875 = vpop.permute.xlu0 %874
      %876 = vrot.lane.b32.xlu0 %v686, 16
      %v877 = vpop.permute.xlu0 %876
      %878 = vrot.lane.b32.xlu0 %v688, 16
      %v879 = vpop.permute.xlu0 %878
      %880 = vrot.lane.b32.xlu0 %v691, 16
      %v881 = vpop.permute.xlu0 %880
      %882 = vrot.lane.b32.xlu0 %v693, 16
      %v883 = vpop.permute.xlu0 %882
      %884 = vrot.lane.b32.xlu0 %v696, 16
      %v885 = vpop.permute.xlu0 %884
      %886 = vrot.lane.b32.xlu0 %v698, 16
      %v887 = vpop.permute.xlu0 %886
      %888 = vrot.lane.b32.xlu0 %v701, 16
      %v889 = vpop.permute.xlu0 %888
      %890 = vrot.lane.b32.xlu0 %v703, 16
      %v891 = vpop.permute.xlu0 %890
      %892 = vrot.lane.b32.xlu0 %v706, 16
      %v893 = vpop.permute.xlu0 %892
      %894 = vrot.lane.b32.xlu0 %v708, 16
      %v895 = vpop.permute.xlu0 %894
      %896 = vrot.lane.b32.xlu0 %v711, 16
      %v897 = vpop.permute.xlu0 %896
      %898 = vrot.lane.b32.xlu0 %v713, 16
      %v899 = vpop.permute.xlu0 %898
      %932 = vrot.lane.b32.xlu0 %v453, 24
      %v933 = vpop.permute.xlu0 %932
      %934 = vrot.lane.b32.xlu0 %v454, 24
      %v935 = vpop.permute.xlu0 %934
      %936 = vrot.lane.b32.xlu0 %v456, 24
      %v937 = vpop.permute.xlu0 %936
      %938 = vrot.lane.b32.xlu0 %v457, 24
      %v939 = vpop.permute.xlu0 %938
      %940 = vrot.lane.b32.xlu0 %v459, 24
      %v941 = vpop.permute.xlu0 %940
      %942 = vrot.lane.b32.xlu0 %v460, 24
      %v943 = vpop.permute.xlu0 %942
      %944 = vrot.lane.b32.xlu0 %v462, 24
      %v945 = vpop.permute.xlu0 %944
      %946 = vrot.lane.b32.xlu0 %v463, 24
      %v947 = vpop.permute.xlu0 %946
      %948 = vrot.lane.b32.xlu0 %v465, 24
      %v949 = vpop.permute.xlu0 %948
      %950 = vrot.lane.b32.xlu0 %v466, 24
      %v951 = vpop.permute.xlu0 %950
      %952 = vrot.lane.b32.xlu0 %v468, 24
      %v953 = vpop.permute.xlu0 %952
      %954 = vrot.lane.b32.xlu0 %v469, 24
      %v955 = vpop.permute.xlu0 %954
      %956 = vrot.lane.b32.xlu0 %v471, 24
      %v957 = vpop.permute.xlu0 %956
      %958 = vrot.lane.b32.xlu0 %v472, 24
      %v959 = vpop.permute.xlu0 %958
      %960 = vrot.lane.b32.xlu0 %v474, 24
      %v961 = vpop.permute.xlu0 %960
      %962 = vrot.lane.b32.xlu0 %v475, 24
      %v963 = vpop.permute.xlu0 %962
      %964 = vrot.lane.b32.xlu0 %v477, 24
      %v965 = vpop.permute.xlu0 %964
      %966 = vrot.lane.b32.xlu0 %v478, 24
      %v967 = vpop.permute.xlu0 %966
      %968 = vrot.lane.b32.xlu0 %v480, 24
      %v969 = vpop.permute.xlu0 %968
      %970 = vrot.lane.b32.xlu0 %v481, 24
      %v971 = vpop.permute.xlu0 %970
      %972 = vrot.lane.b32.xlu0 %v483, 24
      %v973 = vpop.permute.xlu0 %972
      %974 = vrot.lane.b32.xlu0 %v484, 24
      %v975 = vpop.permute.xlu0 %974
      %976 = vrot.lane.b32.xlu0 %v486, 24
      %v977 = vpop.permute.xlu0 %976
      %978 = vrot.lane.b32.xlu0 %v487, 24
      %v979 = vpop.permute.xlu0 %978
      %980 = vrot.lane.b32.xlu0 %v489, 24
      %v981 = vpop.permute.xlu0 %980
      %982 = vrot.lane.b32.xlu0 %v490, 24
      %v983 = vpop.permute.xlu0 %982
      %984 = vrot.lane.b32.xlu0 %v492, 24
      %v985 = vpop.permute.xlu0 %984
      %986 = vrot.lane.b32.xlu0 %v493, 24
      %v987 = vpop.permute.xlu0 %986
      %988 = vrot.lane.b32.xlu0 %v495, 24
      %v989 = vpop.permute.xlu0 %988
      %990 = vrot.lane.b32.xlu0 %v496, 24
      %v991 = vpop.permute.xlu0 %990
      %992 = vrot.lane.b32.xlu0 %v498, 24
      %v993 = vpop.permute.xlu0 %992
      %994 = vrot.lane.b32.xlu0 %v499, 24
      %v995 = vpop.permute.xlu0 %994
      %1028 = vrot.lane.b32.xlu0 %v560, 32
      %v1029 = vpop.permute.xlu0 %1028
      %1030 = vrot.lane.b32.xlu0 %v562, 32
      %v1031 = vpop.permute.xlu0 %1030
      %1032 = vrot.lane.b32.xlu0 %v565, 32
      %v1033 = vpop.permute.xlu0 %1032
      %1034 = vrot.lane.b32.xlu0 %v567, 32
      %v1035 = vpop.permute.xlu0 %1034
      %1036 = vrot.lane.b32.xlu0 %v570, 32
      %v1037 = vpop.permute.xlu0 %1036
      %1038 = vrot.lane.b32.xlu0 %v572, 32
      %v1039 = vpop.permute.xlu0 %1038
      %1040 = vrot.lane.b32.xlu0 %v575, 32
      %v1041 = vpop.permute.xlu0 %1040
      %1042 = vrot.lane.b32.xlu0 %v577, 32
      %v1043 = vpop.permute.xlu0 %1042
      %1044 = vrot.lane.b32.xlu0 %v580, 32
      %v1045 = vpop.permute.xlu0 %1044
      %1046 = vrot.lane.b32.xlu0 %v582, 32
      %v1047 = vpop.permute.xlu0 %1046
      %1048 = vrot.lane.b32.xlu0 %v585, 32
      %v1049 = vpop.permute.xlu0 %1048
      %1050 = vrot.lane.b32.xlu0 %v587, 32
      %v1051 = vpop.permute.xlu0 %1050
      %1052 = vrot.lane.b32.xlu0 %v590, 32
      %v1053 = vpop.permute.xlu0 %1052
      %1054 = vrot.lane.b32.xlu0 %v592, 32
      %v1055 = vpop.permute.xlu0 %1054
      %1056 = vrot.lane.b32.xlu0 %v595, 32
      %v1057 = vpop.permute.xlu0 %1056
      %1058 = vrot.lane.b32.xlu0 %v597, 32
      %v1059 = vpop.permute.xlu0 %1058
      %1060 = vrot.lane.b32.xlu0 %v600, 32
      %v1061 = vpop.permute.xlu0 %1060
      %1062 = vrot.lane.b32.xlu0 %v602, 32
      %v1063 = vpop.permute.xlu0 %1062
      %1064 = vrot.lane.b32.xlu0 %v605, 32
      %v1065 = vpop.permute.xlu0 %1064
      %1066 = vrot.lane.b32.xlu0 %v607, 32
      %v1067 = vpop.permute.xlu0 %1066
      %1068 = vrot.lane.b32.xlu0 %v610, 32
      %v1069 = vpop.permute.xlu0 %1068
      %1070 = vrot.lane.b32.xlu0 %v612, 32
      %v1071 = vpop.permute.xlu0 %1070
      %1072 = vrot.lane.b32.xlu0 %v615, 32
      %v1073 = vpop.permute.xlu0 %1072
      %1074 = vrot.lane.b32.xlu0 %v617, 32
      %v1075 = vpop.permute.xlu0 %1074
      %1076 = vrot.lane.b32.xlu0 %v620, 32
      %v1077 = vpop.permute.xlu0 %1076
      %1078 = vrot.lane.b32.xlu0 %v622, 32
      %v1079 = vpop.permute.xlu0 %1078
      %1080 = vrot.lane.b32.xlu0 %v625, 32
      %v1081 = vpop.permute.xlu0 %1080
      %1082 = vrot.lane.b32.xlu0 %v627, 32
      %v1083 = vpop.permute.xlu0 %1082
      %1084 = vrot.lane.b32.xlu0 %v630, 32
      %v1085 = vpop.permute.xlu0 %1084
      %1086 = vrot.lane.b32.xlu0 %v632, 32
      %v1087 = vpop.permute.xlu0 %1086
      %1088 = vrot.lane.b32.xlu0 %v719, 32
      %v1089 = vpop.permute.xlu0 %1088
      %1090 = vrot.lane.b32.xlu0 %v721, 32
      %v1091 = vpop.permute.xlu0 %1090
      %1124 = vrot.lane.b32.xlu0 %v641, 40
      %v1125 = vpop.permute.xlu0 %1124
      %1126 = vrot.lane.b32.xlu0 %v643, 40
      %v1127 = vpop.permute.xlu0 %1126
      %1128 = vrot.lane.b32.xlu0 %v646, 40
      %v1129 = vpop.permute.xlu0 %1128
      %1130 = vrot.lane.b32.xlu0 %v648, 40
      %v1131 = vpop.permute.xlu0 %1130
      %1132 = vrot.lane.b32.xlu0 %v651, 40
      %v1133 = vpop.permute.xlu0 %1132
      %1134 = vrot.lane.b32.xlu0 %v653, 40
      %v1135 = vpop.permute.xlu0 %1134
      %1136 = vrot.lane.b32.xlu0 %v656, 40
      %v1137 = vpop.permute.xlu0 %1136
      %1138 = vrot.lane.b32.xlu0 %v658, 40
      %v1139 = vpop.permute.xlu0 %1138
      %1140 = vrot.lane.b32.xlu0 %v661, 40
      %v1141 = vpop.permute.xlu0 %1140
      %1142 = vrot.lane.b32.xlu0 %v663, 40
      %v1143 = vpop.permute.xlu0 %1142
      %1144 = vrot.lane.b32.xlu0 %v666, 40
      %v1145 = vpop.permute.xlu0 %1144
      %1146 = vrot.lane.b32.xlu0 %v668, 40
      %v1147 = vpop.permute.xlu0 %1146
      %1148 = vrot.lane.b32.xlu0 %v671, 40
      %v1149 = vpop.permute.xlu0 %1148
      %1150 = vrot.lane.b32.xlu0 %v673, 40
      %v1151 = vpop.permute.xlu0 %1150
      %1152 = vrot.lane.b32.xlu0 %v676, 40
      %v1153 = vpop.permute.xlu0 %1152
      %1154 = vrot.lane.b32.xlu0 %v678, 40
      %v1155 = vpop.permute.xlu0 %1154
      %1156 = vrot.lane.b32.xlu0 %v681, 40
      %v1157 = vpop.permute.xlu0 %1156
      %1158 = vrot.lane.b32.xlu0 %v683, 40
      %v1159 = vpop.permute.xlu0 %1158
      %1160 = vrot.lane.b32.xlu0 %v686, 40
      %v1161 = vpop.permute.xlu0 %1160
      %1162 = vrot.lane.b32.xlu0 %v688, 40
      %v1163 = vpop.permute.xlu0 %1162
      %1164 = vrot.lane.b32.xlu0 %v691, 40
      %v1165 = vpop.permute.xlu0 %1164
      %1166 = vrot.lane.b32.xlu0 %v693, 40
      %v1167 = vpop.permute.xlu0 %1166
      %1168 = vrot.lane.b32.xlu0 %v696, 40
      %v1169 = vpop.permute.xlu0 %1168
      %1170 = vrot.lane.b32.xlu0 %v698, 40
      %v1171 = vpop.permute.xlu0 %1170
      %1172 = vrot.lane.b32.xlu0 %v701, 40
      %v1173 = vpop.permute.xlu0 %1172
      %1174 = vrot.lane.b32.xlu0 %v703, 40
      %v1175 = vpop.permute.xlu0 %1174
      %1176 = vrot.lane.b32.xlu0 %v706, 40
      %v1177 = vpop.permute.xlu0 %1176
      %1178 = vrot.lane.b32.xlu0 %v708, 40
      %v1179 = vpop.permute.xlu0 %1178
      %1180 = vrot.lane.b32.xlu0 %v711, 40
      %v1181 = vpop.permute.xlu0 %1180
      %1182 = vrot.lane.b32.xlu0 %v713, 40
      %v1183 = vpop.permute.xlu0 %1182
      %1184 = vrot.lane.b32.xlu0 %v724, 40
      %v1185 = vpop.permute.xlu0 %1184
      %1186 = vrot.lane.b32.xlu0 %v726, 40
      %v1187 = vpop.permute.xlu0 %1186
      %1220 = vrot.lane.b32.xlu0 %v456, 48
      %v1221 = vpop.permute.xlu0 %1220
      %1222 = vrot.lane.b32.xlu0 %v457, 48
      %v1223 = vpop.permute.xlu0 %1222
      %1224 = vrot.lane.b32.xlu0 %v459, 48
      %v1225 = vpop.permute.xlu0 %1224
      %1226 = vrot.lane.b32.xlu0 %v460, 48
      %v1227 = vpop.permute.xlu0 %1226
      %1228 = vrot.lane.b32.xlu0 %v462, 48
      %v1229 = vpop.permute.xlu0 %1228
      %1230 = vrot.lane.b32.xlu0 %v463, 48
      %v1231 = vpop.permute.xlu0 %1230
      %1232 = vrot.lane.b32.xlu0 %v465, 48
      %v1233 = vpop.permute.xlu0 %1232
      %1234 = vrot.lane.b32.xlu0 %v466, 48
      %v1235 = vpop.permute.xlu0 %1234
      %1236 = vrot.lane.b32.xlu0 %v468, 48
      %v1237 = vpop.permute.xlu0 %1236
      %1238 = vrot.lane.b32.xlu0 %v469, 48
      %v1239 = vpop.permute.xlu0 %1238
      %1240 = vrot.lane.b32.xlu0 %v471, 48
      %v1241 = vpop.permute.xlu0 %1240
      %1242 = vrot.lane.b32.xlu0 %v472, 48
      %v1243 = vpop.permute.xlu0 %1242
      %1244 = vrot.lane.b32.xlu0 %v474, 48
      %v1245 = vpop.permute.xlu0 %1244
      %1246 = vrot.lane.b32.xlu0 %v475, 48
      %v1247 = vpop.permute.xlu0 %1246
      %1248 = vrot.lane.b32.xlu0 %v477, 48
      %v1249 = vpop.permute.xlu0 %1248
      %1250 = vrot.lane.b32.xlu0 %v478, 48
      %v1251 = vpop.permute.xlu0 %1250
      %1252 = vrot.lane.b32.xlu0 %v480, 48
      %v1253 = vpop.permute.xlu0 %1252
      %1254 = vrot.lane.b32.xlu0 %v481, 48
      %v1255 = vpop.permute.xlu0 %1254
      %1256 = vrot.lane.b32.xlu0 %v483, 48
      %v1257 = vpop.permute.xlu0 %1256
      %1258 = vrot.lane.b32.xlu0 %v484, 48
      %v1259 = vpop.permute.xlu0 %1258
      %1260 = vrot.lane.b32.xlu0 %v486, 48
      %v1261 = vpop.permute.xlu0 %1260
      %1262 = vrot.lane.b32.xlu0 %v487, 48
      %v1263 = vpop.permute.xlu0 %1262
      %1264 = vrot.lane.b32.xlu0 %v489, 48
      %v1265 = vpop.permute.xlu0 %1264
      %1266 = vrot.lane.b32.xlu0 %v490, 48
      %v1267 = vpop.permute.xlu0 %1266
      %1268 = vrot.lane.b32.xlu0 %v492, 48
      %v1269 = vpop.permute.xlu0 %1268
      %1270 = vrot.lane.b32.xlu0 %v493, 48
      %v1271 = vpop.permute.xlu0 %1270
      %1272 = vrot.lane.b32.xlu0 %v495, 48
      %v1273 = vpop.permute.xlu0 %1272
      %1274 = vrot.lane.b32.xlu0 %v496, 48
      %v1275 = vpop.permute.xlu0 %1274
      %1276 = vrot.lane.b32.xlu0 %v498, 48
      %v1277 = vpop.permute.xlu0 %1276
      %1278 = vrot.lane.b32.xlu0 %v499, 48
      %v1279 = vpop.permute.xlu0 %1278
      %1280 = vrot.lane.b32.xlu0 %v501, 48
      %v1281 = vpop.permute.xlu0 %1280
      %1282 = vrot.lane.b32.xlu0 %v502, 48
      %v1283 = vpop.permute.xlu0 %1282
      %1316 = vrot.lane.b32.xlu0 %v565, 56
      %v1317 = vpop.permute.xlu0 %1316
      %1318 = vrot.lane.b32.xlu0 %v567, 56
      %v1319 = vpop.permute.xlu0 %1318
      %1320 = vrot.lane.b32.xlu0 %v570, 56
      %v1321 = vpop.permute.xlu0 %1320
      %1322 = vrot.lane.b32.xlu0 %v572, 56
      %v1323 = vpop.permute.xlu0 %1322
      %1324 = vrot.lane.b32.xlu0 %v575, 56
      %v1325 = vpop.permute.xlu0 %1324
      %1326 = vrot.lane.b32.xlu0 %v577, 56
      %v1327 = vpop.permute.xlu0 %1326
      %1328 = vrot.lane.b32.xlu0 %v580, 56
      %v1329 = vpop.permute.xlu0 %1328
      %1330 = vrot.lane.b32.xlu0 %v582, 56
      %v1331 = vpop.permute.xlu0 %1330
      %1332 = vrot.lane.b32.xlu0 %v585, 56
      %v1333 = vpop.permute.xlu0 %1332
      %1334 = vrot.lane.b32.xlu0 %v587, 56
      %v1335 = vpop.permute.xlu0 %1334
      %1336 = vrot.lane.b32.xlu0 %v590, 56
      %v1337 = vpop.permute.xlu0 %1336
      %1338 = vrot.lane.b32.xlu0 %v592, 56
      %v1339 = vpop.permute.xlu0 %1338
      %1340 = vrot.lane.b32.xlu0 %v595, 56
      %v1341 = vpop.permute.xlu0 %1340
      %1342 = vrot.lane.b32.xlu0 %v597, 56
      %v1343 = vpop.permute.xlu0 %1342
      %1344 = vrot.lane.b32.xlu0 %v600, 56
      %v1345 = vpop.permute.xlu0 %1344
      %1346 = vrot.lane.b32.xlu0 %v602, 56
      %v1347 = vpop.permute.xlu0 %1346
      %1348 = vrot.lane.b32.xlu0 %v605, 56
      %v1349 = vpop.permute.xlu0 %1348
      %1350 = vrot.lane.b32.xlu0 %v607, 56
      %v1351 = vpop.permute.xlu0 %1350
      %1352 = vrot.lane.b32.xlu0 %v610, 56
      %v1353 = vpop.permute.xlu0 %1352
      %1354 = vrot.lane.b32.xlu0 %v612, 56
      %v1355 = vpop.permute.xlu0 %1354
      %1356 = vrot.lane.b32.xlu0 %v615, 56
      %v1357 = vpop.permute.xlu0 %1356
      %1358 = vrot.lane.b32.xlu0 %v617, 56
      %v1359 = vpop.permute.xlu0 %1358
      %1360 = vrot.lane.b32.xlu0 %v620, 56
      %v1361 = vpop.permute.xlu0 %1360
      %1362 = vrot.lane.b32.xlu0 %v622, 56
      %v1363 = vpop.permute.xlu0 %1362
      %1364 = vrot.lane.b32.xlu0 %v625, 56
      %v1365 = vpop.permute.xlu0 %1364
      %1366 = vrot.lane.b32.xlu0 %v627, 56
      %v1367 = vpop.permute.xlu0 %1366
      %1368 = vrot.lane.b32.xlu0 %v630, 56
      %v1369 = vpop.permute.xlu0 %1368
      %1370 = vrot.lane.b32.xlu0 %v632, 56
      %v1371 = vpop.permute.xlu0 %1370
      %1372 = vrot.lane.b32.xlu0 %v719, 56
      %v1373 = vpop.permute.xlu0 %1372
      %1374 = vrot.lane.b32.xlu0 %v721, 56
      %v1375 = vpop.permute.xlu0 %1374
      %1376 = vrot.lane.b32.xlu0 %v732, 56
      %v1377 = vpop.permute.xlu0 %1376
      %1378 = vrot.lane.b32.xlu0 %v734, 56
      %v1379 = vpop.permute.xlu0 %1378
      %1412 = vrot.lane.b32.xlu0 %v646, 64
      %v1413 = vpop.permute.xlu0 %1412
      %1414 = vrot.lane.b32.xlu0 %v648, 64
      %v1415 = vpop.permute.xlu0 %1414
      %1416 = vrot.lane.b32.xlu0 %v651, 64
      %v1417 = vpop.permute.xlu0 %1416
      %1418 = vrot.lane.b32.xlu0 %v653, 64
      %v1419 = vpop.permute.xlu0 %1418
      %1420 = vrot.lane.b32.xlu0 %v656, 64
      %v1421 = vpop.permute.xlu0 %1420
      %1422 = vrot.lane.b32.xlu0 %v658, 64
      %v1423 = vpop.permute.xlu0 %1422
      %1424 = vrot.lane.b32.xlu0 %v661, 64
      %v1425 = vpop.permute.xlu0 %1424
      %1426 = vrot.lane.b32.xlu0 %v663, 64
      %v1427 = vpop.permute.xlu0 %1426
      %1428 = vrot.lane.b32.xlu0 %v666, 64
      %v1429 = vpop.permute.xlu0 %1428
      %1430 = vrot.lane.b32.xlu0 %v668, 64
      %v1431 = vpop.permute.xlu0 %1430
      %1432 = vrot.lane.b32.xlu0 %v671, 64
      %v1433 = vpop.permute.xlu0 %1432
      %1434 = vrot.lane.b32.xlu0 %v673, 64
      %v1435 = vpop.permute.xlu0 %1434
      %1436 = vrot.lane.b32.xlu0 %v676, 64
      %v1437 = vpop.permute.xlu0 %1436
      %1438 = vrot.lane.b32.xlu0 %v678, 64
      %v1439 = vpop.permute.xlu0 %1438
      %1440 = vrot.lane.b32.xlu0 %v681, 64
      %v1441 = vpop.permute.xlu0 %1440
      %1442 = vrot.lane.b32.xlu0 %v683, 64
      %v1443 = vpop.permute.xlu0 %1442
      %1444 = vrot.lane.b32.xlu0 %v686, 64
      %v1445 = vpop.permute.xlu0 %1444
      %1446 = vrot.lane.b32.xlu0 %v688, 64
      %v1447 = vpop.permute.xlu0 %1446
      %1448 = vrot.lane.b32.xlu0 %v691, 64
      %v1449 = vpop.permute.xlu0 %1448
      %1450 = vrot.lane.b32.xlu0 %v693, 64
      %v1451 = vpop.permute.xlu0 %1450
      %1452 = vrot.lane.b32.xlu0 %v696, 64
      %v1453 = vpop.permute.xlu0 %1452
      %1454 = vrot.lane.b32.xlu0 %v698, 64
      %v1455 = vpop.permute.xlu0 %1454
      %1456 = vrot.lane.b32.xlu0 %v701, 64
      %v1457 = vpop.permute.xlu0 %1456
      %1458 = vrot.lane.b32.xlu0 %v703, 64
      %v1459 = vpop.permute.xlu0 %1458
      %1460 = vrot.lane.b32.xlu0 %v706, 64
      %v1461 = vpop.permute.xlu0 %1460
      %1462 = vrot.lane.b32.xlu0 %v708, 64
      %v1463 = vpop.permute.xlu0 %1462
      %1464 = vrot.lane.b32.xlu0 %v711, 64
      %v1465 = vpop.permute.xlu0 %1464
      %1466 = vrot.lane.b32.xlu0 %v713, 64
      %v1467 = vpop.permute.xlu0 %1466
      %1468 = vrot.lane.b32.xlu0 %v724, 64
      %v1469 = vpop.permute.xlu0 %1468
      %1470 = vrot.lane.b32.xlu0 %v726, 64
      %v1471 = vpop.permute.xlu0 %1470
      %1472 = vrot.lane.b32.xlu0 %v737, 64
      %v1473 = vpop.permute.xlu0 %1472
      %1474 = vrot.lane.b32.xlu0 %v739, 64
      %v1475 = vpop.permute.xlu0 %1474
      %vm1508 = vcmask 64512
      %v1509 = vsel %vm1508, %v450, %v741
      %v1510 = vsel %vm1508, %v451, %v743
      %v1511 = vsel %vm1508, %v453, %v745
      %v1512 = vsel %vm1508, %v454, %v747
      %v1513 = vsel %vm1508, %v456, %v749
      %v1514 = vsel %vm1508, %v457, %v751
      %v1515 = vsel %vm1508, %v459, %v753
      %v1516 = vsel %vm1508, %v460, %v755
      %v1517 = vsel %vm1508, %v462, %v757
      %v1518 = vsel %vm1508, %v463, %v759
      %v1519 = vsel %vm1508, %v465, %v761
      %v1520 = vsel %vm1508, %v466, %v763
      %v1521 = vsel %vm1508, %v468, %v765
      %v1522 = vsel %vm1508, %v469, %v767
      %v1523 = vsel %vm1508, %v471, %v769
      %v1524 = vsel %vm1508, %v472, %v771
      %v1525 = vsel %vm1508, %v474, %v773
      %v1526 = vsel %vm1508, %v475, %v775
      %v1527 = vsel %vm1508, %v477, %v777
      %v1528 = vsel %vm1508, %v478, %v779
      %v1529 = vsel %vm1508, %v480, %v781
      %v1530 = vsel %vm1508, %v481, %v783
      %v1531 = vsel %vm1508, %v483, %v785
      %v1532 = vsel %vm1508, %v484, %v787
      %v1533 = vsel %vm1508, %v486, %v789
      %v1534 = vsel %vm1508, %v487, %v791
      %v1535 = vsel %vm1508, %v489, %v793
      %v1536 = vsel %vm1508, %v490, %v795
      %v1537 = vsel %vm1508, %v492, %v797
      %v1538 = vsel %vm1508, %v493, %v799
      %v1539 = vsel %vm1508, %v495, %v801
      %v1540 = vsel %vm1508, %v496, %v803
      %vm1541 = vcmask 130048
      %v1542 = vsel %vm1541, %v1509, %v837
      %v1543 = vsel %vm1541, %v1510, %v839
      %v1544 = vsel %vm1541, %v1511, %v841
      %v1545 = vsel %vm1541, %v1512, %v843
      %v1546 = vsel %vm1541, %v1513, %v845
      %v1547 = vsel %vm1541, %v1514, %v847
      %v1548 = vsel %vm1541, %v1515, %v849
      %v1549 = vsel %vm1541, %v1516, %v851
      %v1550 = vsel %vm1541, %v1517, %v853
      %v1551 = vsel %vm1541, %v1518, %v855
      %v1552 = vsel %vm1541, %v1519, %v857
      %v1553 = vsel %vm1541, %v1520, %v859
      %v1554 = vsel %vm1541, %v1521, %v861
      %v1555 = vsel %vm1541, %v1522, %v863
      %v1556 = vsel %vm1541, %v1523, %v865
      %v1557 = vsel %vm1541, %v1524, %v867
      %v1558 = vsel %vm1541, %v1525, %v869
      %v1559 = vsel %vm1541, %v1526, %v871
      %v1560 = vsel %vm1541, %v1527, %v873
      %v1561 = vsel %vm1541, %v1528, %v875
      %v1562 = vsel %vm1541, %v1529, %v877
      %v1563 = vsel %vm1541, %v1530, %v879
      %v1564 = vsel %vm1541, %v1531, %v881
      %v1565 = vsel %vm1541, %v1532, %v883
      %v1566 = vsel %vm1541, %v1533, %v885
      %v1567 = vsel %vm1541, %v1534, %v887
      %v1568 = vsel %vm1541, %v1535, %v889
      %v1569 = vsel %vm1541, %v1536, %v891
      %v1570 = vsel %vm1541, %v1537, %v893
      %v1571 = vsel %vm1541, %v1538, %v895
      %v1572 = vsel %vm1541, %v1539, %v897
      %v1573 = vsel %vm1541, %v1540, %v899
      %vm1574 = vcmask 195584
      %v1575 = vsel %vm1574, %v1542, %v933
      %v1576 = vsel %vm1574, %v1543, %v935
      %v1577 = vsel %vm1574, %v1544, %v937
      %v1578 = vsel %vm1574, %v1545, %v939
      %v1579 = vsel %vm1574, %v1546, %v941
      %v1580 = vsel %vm1574, %v1547, %v943
      %v1581 = vsel %vm1574, %v1548, %v945
      %v1582 = vsel %vm1574, %v1549, %v947
      %v1583 = vsel %vm1574, %v1550, %v949
      %v1584 = vsel %vm1574, %v1551, %v951
      %v1585 = vsel %vm1574, %v1552, %v953
      %v1586 = vsel %vm1574, %v1553, %v955
      %v1587 = vsel %vm1574, %v1554, %v957
      %v1588 = vsel %vm1574, %v1555, %v959
      %v1589 = vsel %vm1574, %v1556, %v961
      %v1590 = vsel %vm1574, %v1557, %v963
      %v1591 = vsel %vm1574, %v1558, %v965
      %v1592 = vsel %vm1574, %v1559, %v967
      %v1593 = vsel %vm1574, %v1560, %v969
      %v1594 = vsel %vm1574, %v1561, %v971
      %v1595 = vsel %vm1574, %v1562, %v973
      %v1596 = vsel %vm1574, %v1563, %v975
      %v1597 = vsel %vm1574, %v1564, %v977
      %v1598 = vsel %vm1574, %v1565, %v979
      %v1599 = vsel %vm1574, %v1566, %v981
      %v1600 = vsel %vm1574, %v1567, %v983
      %v1601 = vsel %vm1574, %v1568, %v985
      %v1602 = vsel %vm1574, %v1569, %v987
      %v1603 = vsel %vm1574, %v1570, %v989
      %v1604 = vsel %vm1574, %v1571, %v991
      %v1605 = vsel %vm1574, %v1572, %v993
      %v1606 = vsel %vm1574, %v1573, %v995
      %vm1607 = vcmask 261120
      %v1608 = vsel %vm1607, %v1575, %v1029
      %v1609 = vsel %vm1607, %v1576, %v1031
      %v1610 = vsel %vm1607, %v1577, %v1033
      %v1611 = vsel %vm1607, %v1578, %v1035
      %v1612 = vsel %vm1607, %v1579, %v1037
      %v1613 = vsel %vm1607, %v1580, %v1039
      %v1614 = vsel %vm1607, %v1581, %v1041
      %v1615 = vsel %vm1607, %v1582, %v1043
      %v1616 = vsel %vm1607, %v1583, %v1045
      %v1617 = vsel %vm1607, %v1584, %v1047
      %v1618 = vsel %vm1607, %v1585, %v1049
      %v1619 = vsel %vm1607, %v1586, %v1051
      %v1620 = vsel %vm1607, %v1587, %v1053
      %v1621 = vsel %vm1607, %v1588, %v1055
      %v1622 = vsel %vm1607, %v1589, %v1057
      %v1623 = vsel %vm1607, %v1590, %v1059
      %v1624 = vsel %vm1607, %v1591, %v1061
      %v1625 = vsel %vm1607, %v1592, %v1063
      %v1626 = vsel %vm1607, %v1593, %v1065
      %v1627 = vsel %vm1607, %v1594, %v1067
      %v1628 = vsel %vm1607, %v1595, %v1069
      %v1629 = vsel %vm1607, %v1596, %v1071
      %v1630 = vsel %vm1607, %v1597, %v1073
      %v1631 = vsel %vm1607, %v1598, %v1075
      %v1632 = vsel %vm1607, %v1599, %v1077
      %v1633 = vsel %vm1607, %v1600, %v1079
      %v1634 = vsel %vm1607, %v1601, %v1081
      %v1635 = vsel %vm1607, %v1602, %v1083
      %v1636 = vsel %vm1607, %v1603, %v1085
      %v1637 = vsel %vm1607, %v1604, %v1087
      %v1638 = vsel %vm1607, %v1605, %v1089
      %v1639 = vsel %vm1607, %v1606, %v1091
      %vm1640 = vcmask 326656
      %v1641 = vsel %vm1640, %v1608, %v1125
      %v1642 = vsel %vm1640, %v1609, %v1127
      %v1643 = vsel %vm1640, %v1610, %v1129
      %v1644 = vsel %vm1640, %v1611, %v1131
      %v1645 = vsel %vm1640, %v1612, %v1133
      %v1646 = vsel %vm1640, %v1613, %v1135
      %v1647 = vsel %vm1640, %v1614, %v1137
      %v1648 = vsel %vm1640, %v1615, %v1139
      %v1649 = vsel %vm1640, %v1616, %v1141
      %v1650 = vsel %vm1640, %v1617, %v1143
      %v1651 = vsel %vm1640, %v1618, %v1145
      %v1652 = vsel %vm1640, %v1619, %v1147
      %v1653 = vsel %vm1640, %v1620, %v1149
      %v1654 = vsel %vm1640, %v1621, %v1151
      %v1655 = vsel %vm1640, %v1622, %v1153
      %v1656 = vsel %vm1640, %v1623, %v1155
      %v1657 = vsel %vm1640, %v1624, %v1157
      %v1658 = vsel %vm1640, %v1625, %v1159
      %v1659 = vsel %vm1640, %v1626, %v1161
      %v1660 = vsel %vm1640, %v1627, %v1163
      %v1661 = vsel %vm1640, %v1628, %v1165
      %v1662 = vsel %vm1640, %v1629, %v1167
      %v1663 = vsel %vm1640, %v1630, %v1169
      %v1664 = vsel %vm1640, %v1631, %v1171
      %v1665 = vsel %vm1640, %v1632, %v1173
      %v1666 = vsel %vm1640, %v1633, %v1175
      %v1667 = vsel %vm1640, %v1634, %v1177
      %v1668 = vsel %vm1640, %v1635, %v1179
      %v1669 = vsel %vm1640, %v1636, %v1181
      %v1670 = vsel %vm1640, %v1637, %v1183
      %v1671 = vsel %vm1640, %v1638, %v1185
      %v1672 = vsel %vm1640, %v1639, %v1187
      %vm1673 = vcmask 392192
      %v1674 = vsel %vm1673, %v1641, %v1221
      %v1675 = vsel %vm1673, %v1642, %v1223
      %v1676 = vsel %vm1673, %v1643, %v1225
      %v1677 = vsel %vm1673, %v1644, %v1227
      %v1678 = vsel %vm1673, %v1645, %v1229
      %v1679 = vsel %vm1673, %v1646, %v1231
      %v1680 = vsel %vm1673, %v1647, %v1233
      %v1681 = vsel %vm1673, %v1648, %v1235
      %v1682 = vsel %vm1673, %v1649, %v1237
      %v1683 = vsel %vm1673, %v1650, %v1239
      %v1684 = vsel %vm1673, %v1651, %v1241
      %v1685 = vsel %vm1673, %v1652, %v1243
      %v1686 = vsel %vm1673, %v1653, %v1245
      %v1687 = vsel %vm1673, %v1654, %v1247
      %v1688 = vsel %vm1673, %v1655, %v1249
      %v1689 = vsel %vm1673, %v1656, %v1251
      %v1690 = vsel %vm1673, %v1657, %v1253
      %v1691 = vsel %vm1673, %v1658, %v1255
      %v1692 = vsel %vm1673, %v1659, %v1257
      %v1693 = vsel %vm1673, %v1660, %v1259
      %v1694 = vsel %vm1673, %v1661, %v1261
      %v1695 = vsel %vm1673, %v1662, %v1263
      %v1696 = vsel %vm1673, %v1663, %v1265
      %v1697 = vsel %vm1673, %v1664, %v1267
      %v1698 = vsel %vm1673, %v1665, %v1269
      %v1699 = vsel %vm1673, %v1666, %v1271
      %v1700 = vsel %vm1673, %v1667, %v1273
      %v1701 = vsel %vm1673, %v1668, %v1275
      %v1702 = vsel %vm1673, %v1669, %v1277
      %v1703 = vsel %vm1673, %v1670, %v1279
      %v1704 = vsel %vm1673, %v1671, %v1281
      %v1705 = vsel %vm1673, %v1672, %v1283
      %vm1706 = vcmask 457728
      %v1707 = vsel %vm1706, %v1674, %v1317
      %v1708 = vsel %vm1706, %v1675, %v1319
      %v1709 = vsel %vm1706, %v1676, %v1321
      %v1710 = vsel %vm1706, %v1677, %v1323
      %v1711 = vsel %vm1706, %v1678, %v1325
      %v1712 = vsel %vm1706, %v1679, %v1327
      %v1713 = vsel %vm1706, %v1680, %v1329
      %v1714 = vsel %vm1706, %v1681, %v1331
      %v1715 = vsel %vm1706, %v1682, %v1333
      %v1716 = vsel %vm1706, %v1683, %v1335
      %v1717 = vsel %vm1706, %v1684, %v1337
      %v1718 = vsel %vm1706, %v1685, %v1339
      %v1719 = vsel %vm1706, %v1686, %v1341
      %v1720 = vsel %vm1706, %v1687, %v1343
      %v1721 = vsel %vm1706, %v1688, %v1345
      %v1722 = vsel %vm1706, %v1689, %v1347
      %v1723 = vsel %vm1706, %v1690, %v1349
      %v1724 = vsel %vm1706, %v1691, %v1351
      %v1725 = vsel %vm1706, %v1692, %v1353
      %v1726 = vsel %vm1706, %v1693, %v1355
      %v1727 = vsel %vm1706, %v1694, %v1357
      %v1728 = vsel %vm1706, %v1695, %v1359
      %v1729 = vsel %vm1706, %v1696, %v1361
      %v1730 = vsel %vm1706, %v1697, %v1363
      %v1731 = vsel %vm1706, %v1698, %v1365
      %v1732 = vsel %vm1706, %v1699, %v1367
      %v1733 = vsel %vm1706, %v1700, %v1369
      %v1734 = vsel %vm1706, %v1701, %v1371
      %v1735 = vsel %vm1706, %v1702, %v1373
      %v1736 = vsel %vm1706, %v1703, %v1375
      %v1737 = vsel %vm1706, %v1704, %v1377
      %v1738 = vsel %vm1706, %v1705, %v1379
      %vm1739 = vcmask 523264
      %v1740 = vsel %vm1739, %v1707, %v1413
      %v1741 = vsel %vm1739, %v1708, %v1415
      %v1742 = vsel %vm1739, %v1709, %v1417
      %v1743 = vsel %vm1739, %v1710, %v1419
      %v1744 = vsel %vm1739, %v1711, %v1421
      %v1745 = vsel %vm1739, %v1712, %v1423
      %v1746 = vsel %vm1739, %v1713, %v1425
      %v1747 = vsel %vm1739, %v1714, %v1427
      %v1748 = vsel %vm1739, %v1715, %v1429
      %v1749 = vsel %vm1739, %v1716, %v1431
      %v1750 = vsel %vm1739, %v1717, %v1433
      %v1751 = vsel %vm1739, %v1718, %v1435
      %v1752 = vsel %vm1739, %v1719, %v1437
      %v1753 = vsel %vm1739, %v1720, %v1439
      %v1754 = vsel %vm1739, %v1721, %v1441
      %v1755 = vsel %vm1739, %v1722, %v1443
      %v1756 = vsel %vm1739, %v1723, %v1445
      %v1757 = vsel %vm1739, %v1724, %v1447
      %v1758 = vsel %vm1739, %v1725, %v1449
      %v1759 = vsel %vm1739, %v1726, %v1451
      %v1760 = vsel %vm1739, %v1727, %v1453
      %v1761 = vsel %vm1739, %v1728, %v1455
      %v1762 = vsel %vm1739, %v1729, %v1457
      %v1763 = vsel %vm1739, %v1730, %v1459
      %v1764 = vsel %vm1739, %v1731, %v1461
      %v1765 = vsel %vm1739, %v1732, %v1463
      %v1766 = vsel %vm1739, %v1733, %v1465
      %v1767 = vsel %vm1739, %v1734, %v1467
      %v1768 = vsel %vm1739, %v1735, %v1469
      %v1769 = vsel %vm1739, %v1736, %v1471
      %v1770 = vsel %vm1739, %v1737, %v1473
      %v1771 = vsel %vm1739, %v1738, %v1475
      %v1772 = vld [vmem:[%s3] sm:$0xff]
      %v1773 = vld [vmem:[%s3 + $0x8] sm:$0xff]
      %v1774 = vld [vmem:[%s3 + $0x10] sm:$0xff]
      %v1775 = vld [vmem:[%s3 + $0x18] sm:$0xff]
      %v1776 = vld [vmem:[%s3 + $0x20] sm:$0xff]
      %v1777 = vld [vmem:[%s3 + $0x28] sm:$0xff]
      %v1778 = vld [vmem:[%s3 + $0x30] sm:$0xff]
      %v1779 = vld [vmem:[%s3 + $0x38] sm:$0xff]
      %v1780 = vld [vmem:[%s3 + $0x40] sm:$0xff]
      %vm1781 = vcmask 588800
      %v1783 = vsel %vm1781, %v1740, 0
      %v1786 = vsel %vm1781, %v1741, 0
      %v1789 = vsel %vm1781, %v1742, 0
      %v1792 = vsel %vm1781, %v1743, 0
      %v1795 = vsel %vm1781, %v1744, 0
      %v1798 = vsel %vm1781, %v1745, 0
      %v1801 = vsel %vm1781, %v1746, 0
      %v1804 = vsel %vm1781, %v1747, 0
      %v1807 = vsel %vm1781, %v1748, 0
      %v1810 = vsel %vm1781, %v1749, 0
      %v1813 = vsel %vm1781, %v1750, 0
      %v1816 = vsel %vm1781, %v1751, 0
      %v1819 = vsel %vm1781, %v1752, 0
      %v1822 = vsel %vm1781, %v1753, 0
      %v1825 = vsel %vm1781, %v1754, 0
      %v1828 = vsel %vm1781, %v1755, 0
      %v1831 = vsel %vm1781, %v1756, 0
      %v1834 = vsel %vm1781, %v1757, 0
      %v1837 = vsel %vm1781, %v1758, 0
      %v1840 = vsel %vm1781, %v1759, 0
      %v1843 = vsel %vm1781, %v1760, 0
      %v1846 = vsel %vm1781, %v1761, 0
      %v1849 = vsel %vm1781, %v1762, 0
      %v1852 = vsel %vm1781, %v1763, 0
      %v1855 = vsel %vm1781, %v1764, 0
      %v1858 = vsel %vm1781, %v1765, 0
      %v1861 = vsel %vm1781, %v1766, 0
      %v1864 = vsel %vm1781, %v1767, 0
      %v1867 = vsel %vm1781, %v1768, 0
      %v1870 = vsel %vm1781, %v1769, 0
      %v1873 = vsel %vm1781, %v1770, 0
      %v1876 = vsel %vm1781, %v1771, 0
      %1878 = vmatprep.subr.mxu0 0.0
      %1879 = vmatpush1.msra.mxu0 0.0
      %1880 = vmatprep.subr.mxu0 0.0
      %1881 = vmatpush1.msra.mxu0 0.0
      %1882 = vmatprep.subr.mxu0 0.0
      %1883 = vmatpush1.msra.mxu0 0.0
      %1884 = vmatprep.subr.mxu0 0.0
      %1885 = vmatpush1.msra.mxu0 0.0
      %1886 = vmatprep.subr.mxu0 0.0
      %1887 = vmatpush1.msra.mxu0 0.0
      %1888 = vmatprep.subr.mxu0 0.0
      %1889 = vmatpush1.msra.mxu0 0.0
      %1890 = vmatprep.subr.mxu0 0.0
      %1891 = vmatpush1.msra.mxu0 0.0
      %1892 = vmatprep.subr.mxu0 0.0
      %1893 = vmatpush1.msra.mxu0 %v1780
      %1894 = vmatprep.subr.mxu0 0.0
      %1895 = vmatpush1.msra.mxu0 %v1779
      %1896 = vmatprep.subr.mxu0 0.0
      %1897 = vmatpush1.msra.mxu0 %v1778
      %1898 = vmatprep.subr.mxu0 0.0
      %1899 = vmatpush1.msra.mxu0 %v1777
      %1900 = vmatprep.subr.mxu0 0.0
      %1901 = vmatpush1.msra.mxu0 %v1776
      %1902 = vmatprep.subr.mxu0 0.0
      %1903 = vmatpush1.msra.mxu0 %v1775
      %1904 = vmatprep.subr.mxu0 0.0
      %1905 = vmatpush1.msra.mxu0 %v1774
      %1906 = vmatprep.subr.mxu0 0.0
      %1907 = vmatpush1.msra.mxu0 %v1773
      %1908 = vmatprep.subr.mxu0 0.0
      %1909 = vmatpush1.msra.mxu0 %v1772
      %1910 = vmatprep.subr.mxu0 0.0
      %1911 = vmatpush2.msra.mxu0 0.0
      %1912 = vmatprep.subr.mxu0 0.0
      %1913 = vmatpush2.msra.mxu0 0.0
      %1914 = vmatprep.subr.mxu0 0.0
      %1915 = vmatpush2.msra.mxu0 0.0
      %1916 = vmatprep.subr.mxu0 0.0
      %1917 = vmatpush2.msra.mxu0 0.0
      %1918 = vmatprep.subr.mxu0 0.0
      %1919 = vmatpush2.msra.mxu0 0.0
      %1920 = vmatprep.subr.mxu0 0.0
      %1921 = vmatpush2.msra.mxu0 0.0
      %1922 = vmatprep.subr.mxu0 0.0
      %1923 = vmatpush2.msra.mxu0 0.0
      %1924 = vmatprep.subr.mxu0 0.0
      %1925 = vmatpush2.msra.mxu0 0.0
      %1926 = vmatprep.subr.mxu0 0.0
      %1927 = vmatpush2.msra.mxu0 0.0
      %1928 = vmatprep.subr.mxu0 0.0
      %1929 = vmatpush2.msra.mxu0 0.0
      %1930 = vmatprep.subr.mxu0 0.0
      %1931 = vmatpush2.msra.mxu0 0.0
      %1932 = vmatprep.subr.mxu0 0.0
      %1933 = vmatpush2.msra.mxu0 0.0
      %1934 = vmatprep.subr.mxu0 0.0
      %1935 = vmatpush2.msra.mxu0 0.0
      %1936 = vmatprep.subr.mxu0 0.0
      %1937 = vmatpush2.msra.mxu0 0.0
      %1938 = vmatprep.subr.mxu0 0.0
      %1939 = vmatpush2.msra.mxu0 0.0
      %1940 = vmatprep.subr.mxu0 0.0
      %1941 = vmatpush2.msra.mxu0 0.0
      %1942 = vmatprep.mubr.f32.mxu0 0.0
      %1943 = vmatmul.mubr.f32.gmra.mxu0 %v1783
      %v1944 = vpop.f32.mrf.mxu0
      %v1945 = vadd.f32 0.0, %v1944
      %v1946 = vpop.f32.mrf.mxu0
      %1947 = vmatprep.mubr.f32.mxu0 0.0
      %1948 = vmatmul.mubr.f32.gmra.mxu0 %v1786
      %v1949 = vpop.f32.mrf.mxu0
      %v1950 = vadd.f32 0.0, %v1949
      %v1951 = vpop.f32.mrf.mxu0
      %1952 = vmatprep.mubr.f32.mxu0 0.0
      %1953 = vmatmul.mubr.f32.gmra.mxu0 %v1789
      %v1954 = vpop.f32.mrf.mxu0
      %v1955 = vadd.f32 0.0, %v1954
      %v1956 = vpop.f32.mrf.mxu0
      %1957 = vmatprep.mubr.f32.mxu0 0.0
      %1958 = vmatmul.mubr.f32.gmra.mxu0 %v1792
      %v1959 = vpop.f32.mrf.mxu0
      %v1960 = vadd.f32 0.0, %v1959
      %v1961 = vpop.f32.mrf.mxu0
      %1962 = vmatprep.mubr.f32.mxu0 0.0
      %1963 = vmatmul.mubr.f32.gmra.mxu0 %v1795
      %v1964 = vpop.f32.mrf.mxu0
      %v1965 = vadd.f32 0.0, %v1964
      %v1966 = vpop.f32.mrf.mxu0
      %1967 = vmatprep.mubr.f32.mxu0 0.0
      %1968 = vmatmul.mubr.f32.gmra.mxu0 %v1798
      %v1969 = vpop.f32.mrf.mxu0
      %v1970 = vadd.f32 0.0, %v1969
      %v1971 = vpop.f32.mrf.mxu0
      %1972 = vmatprep.mubr.f32.mxu0 0.0
      %1973 = vmatmul.mubr.f32.gmra.mxu0 %v1801
      %v1974 = vpop.f32.mrf.mxu0
      %v1975 = vadd.f32 0.0, %v1974
      %v1976 = vpop.f32.mrf.mxu0
      %1977 = vmatprep.mubr.f32.mxu0 0.0
      %1978 = vmatmul.mubr.f32.gmra.mxu0 %v1804
      %v1979 = vpop.f32.mrf.mxu0
      %v1980 = vadd.f32 0.0, %v1979
      %v1981 = vpop.f32.mrf.mxu0
      %1982 = vmatprep.mubr.f32.mxu0 0.0
      %1983 = vmatmul.mubr.f32.gmra.mxu0 %v1807
      %v1984 = vpop.f32.mrf.mxu0
      %v1985 = vadd.f32 0.0, %v1984
      %v1986 = vpop.f32.mrf.mxu0
      %1987 = vmatprep.mubr.f32.mxu0 0.0
      %1988 = vmatmul.mubr.f32.gmra.mxu0 %v1810
      %v1989 = vpop.f32.mrf.mxu0
      %v1990 = vadd.f32 0.0, %v1989
      %v1991 = vpop.f32.mrf.mxu0
      %1992 = vmatprep.mubr.f32.mxu0 0.0
      %1993 = vmatmul.mubr.f32.gmra.mxu0 %v1813
      %v1994 = vpop.f32.mrf.mxu0
      %v1995 = vadd.f32 0.0, %v1994
      %v1996 = vpop.f32.mrf.mxu0
      %1997 = vmatprep.mubr.f32.mxu0 0.0
      %1998 = vmatmul.mubr.f32.gmra.mxu0 %v1816
      %v1999 = vpop.f32.mrf.mxu0
      %v2000 = vadd.f32 0.0, %v1999
      %v2001 = vpop.f32.mrf.mxu0
      %2002 = vmatprep.mubr.f32.mxu0 0.0
      %2003 = vmatmul.mubr.f32.gmra.mxu0 %v1819
      %v2004 = vpop.f32.mrf.mxu0
      %v2005 = vadd.f32 0.0, %v2004
      %v2006 = vpop.f32.mrf.mxu0
      %2007 = vmatprep.mubr.f32.mxu0 0.0
      %2008 = vmatmul.mubr.f32.gmra.mxu0 %v1822
      %v2009 = vpop.f32.mrf.mxu0
      %v2010 = vadd.f32 0.0, %v2009
      %v2011 = vpop.f32.mrf.mxu0
      %2012 = vmatprep.mubr.f32.mxu0 0.0
      %2013 = vmatmul.mubr.f32.gmra.mxu0 %v1825
      %v2014 = vpop.f32.mrf.mxu0
      %v2015 = vadd.f32 0.0, %v2014
      %v2016 = vpop.f32.mrf.mxu0
      %2017 = vmatprep.mubr.f32.mxu0 0.0
      %2018 = vmatmul.mubr.f32.gmra.mxu0 %v1828
      %v2019 = vpop.f32.mrf.mxu0
      %v2020 = vadd.f32 0.0, %v2019
      %v2021 = vpop.f32.mrf.mxu0
      %2022 = vmatprep.mubr.f32.mxu0 0.0
      %2023 = vmatmul.mubr.f32.gmra.mxu0 %v1831
      %v2024 = vpop.f32.mrf.mxu0
      %v2025 = vadd.f32 0.0, %v2024
      %v2026 = vpop.f32.mrf.mxu0
      %2027 = vmatprep.mubr.f32.mxu0 0.0
      %2028 = vmatmul.mubr.f32.gmra.mxu0 %v1834
      %v2029 = vpop.f32.mrf.mxu0
      %v2030 = vadd.f32 0.0, %v2029
      %v2031 = vpop.f32.mrf.mxu0
      %2032 = vmatprep.mubr.f32.mxu0 0.0
      %2033 = vmatmul.mubr.f32.gmra.mxu0 %v1837
      %v2034 = vpop.f32.mrf.mxu0
      %v2035 = vadd.f32 0.0, %v2034
      %v2036 = vpop.f32.mrf.mxu0
      %2037 = vmatprep.mubr.f32.mxu0 0.0
      %2038 = vmatmul.mubr.f32.gmra.mxu0 %v1840
      %v2039 = vpop.f32.mrf.mxu0
      %v2040 = vadd.f32 0.0, %v2039
      %v2041 = vpop.f32.mrf.mxu0
      %2042 = vmatprep.mubr.f32.mxu0 0.0
      %2043 = vmatmul.mubr.f32.gmra.mxu0 %v1843
      %v2044 = vpop.f32.mrf.mxu0
      %v2045 = vadd.f32 0.0, %v2044
      %v2046 = vpop.f32.mrf.mxu0
      %2047 = vmatprep.mubr.f32.mxu0 0.0
      %2048 = vmatmul.mubr.f32.gmra.mxu0 %v1846
      %v2049 = vpop.f32.mrf.mxu0
      %v2050 = vadd.f32 0.0, %v2049
      %v2051 = vpop.f32.mrf.mxu0
      %2052 = vmatprep.mubr.f32.mxu0 0.0
      %2053 = vmatmul.mubr.f32.gmra.mxu0 %v1849
      %v2054 = vpop.f32.mrf.mxu0
      %v2055 = vadd.f32 0.0, %v2054
      %v2056 = vpop.f32.mrf.mxu0
      %2057 = vmatprep.mubr.f32.mxu0 0.0
      %2058 = vmatmul.mubr.f32.gmra.mxu0 %v1852
      %v2059 = vpop.f32.mrf.mxu0
      %v2060 = vadd.f32 0.0, %v2059
      %v2061 = vpop.f32.mrf.mxu0
      %2062 = vmatprep.mubr.f32.mxu0 0.0
      %2063 = vmatmul.mubr.f32.gmra.mxu0 %v1855
      %v2064 = vpop.f32.mrf.mxu0
      %v2065 = vadd.f32 0.0, %v2064
      %v2066 = vpop.f32.mrf.mxu0
      %2067 = vmatprep.mubr.f32.mxu0 0.0
      %2068 = vmatmul.mubr.f32.gmra.mxu0 %v1858
      %v2069 = vpop.f32.mrf.mxu0
      %v2070 = vadd.f32 0.0, %v2069
      %v2071 = vpop.f32.mrf.mxu0
      %2072 = vmatprep.mubr.f32.mxu0 0.0
      %2073 = vmatmul.mubr.f32.gmra.mxu0 %v1861
      %v2074 = vpop.f32.mrf.mxu0
      %v2075 = vadd.f32 0.0, %v2074
      %v2076 = vpop.f32.mrf.mxu0
      %2077 = vmatprep.mubr.f32.mxu0 0.0
      %2078 = vmatmul.mubr.f32.gmra.mxu0 %v1864
      %v2079 = vpop.f32.mrf.mxu0
      %v2080 = vadd.f32 0.0, %v2079
      %v2081 = vpop.f32.mrf.mxu0
      %2082 = vmatprep.mubr.f32.mxu0 0.0
      %2083 = vmatmul.mubr.f32.gmra.mxu0 %v1867
      %v2084 = vpop.f32.mrf.mxu0
      %v2085 = vadd.f32 0.0, %v2084
      %v2086 = vpop.f32.mrf.mxu0
      %2087 = vmatprep.mubr.f32.mxu0 0.0
      %2088 = vmatmul.mubr.f32.gmra.mxu0 %v1870
      %v2089 = vpop.f32.mrf.mxu0
      %v2090 = vadd.f32 0.0, %v2089
      %v2091 = vpop.f32.mrf.mxu0
      %2092 = vmatprep.mubr.f32.mxu0 0.0
      %2093 = vmatmul.mubr.f32.gmra.mxu0 %v1873
      %v2094 = vpop.f32.mrf.mxu0
      %v2095 = vadd.f32 0.0, %v2094
      %v2096 = vpop.f32.mrf.mxu0
      %2097 = vmatprep.mubr.f32.mxu0 0.0
      %2098 = vmatmul.mubr.f32.gmra.mxu0 %v1876
      %v2099 = vpop.f32.mrf.mxu0
      %v2100 = vadd.f32 0.0, %v2099
      %v2101 = vpop.f32.mrf.mxu0
      %2102 = vdwg.mxu0
      %2103 = vst.msk [vmem:[%s435] sm:$0xff] %vm1508, %v1945
      %2104 = vst.msk [vmem:[%s435 + $0x8] sm:$0xff] %vm1508, %v1950
      %2105 = vst.msk [vmem:[%s435 + $0x10] sm:$0xff] %vm1508, %v1955
      %2106 = vst.msk [vmem:[%s435 + $0x18] sm:$0xff] %vm1508, %v1960
      %2107 = vst.msk [vmem:[%s435 + $0x20] sm:$0xff] %vm1508, %v1965
      %2108 = vst.msk [vmem:[%s435 + $0x28] sm:$0xff] %vm1508, %v1970
      %2109 = vst.msk [vmem:[%s435 + $0x30] sm:$0xff] %vm1508, %v1975
      %2110 = vst.msk [vmem:[%s435 + $0x38] sm:$0xff] %vm1508, %v1980
      %2111 = vst.msk [vmem:[%s435 + $0x40] sm:$0xff] %vm1508, %v1985
      %2112 = vst.msk [vmem:[%s435 + $0x48] sm:$0xff] %vm1508, %v1990
      %2113 = vst.msk [vmem:[%s435 + $0x50] sm:$0xff] %vm1508, %v1995
      %2114 = vst.msk [vmem:[%s435 + $0x58] sm:$0xff] %vm1508, %v2000
      %2115 = vst.msk [vmem:[%s435 + $0x60] sm:$0xff] %vm1508, %v2005
      %2116 = vst.msk [vmem:[%s435 + $0x68] sm:$0xff] %vm1508, %v2010
      %2117 = vst.msk [vmem:[%s435 + $0x70] sm:$0xff] %vm1508, %v2015
      %2118 = vst.msk [vmem:[%s435 + $0x78] sm:$0xff] %vm1508, %v2020
      %2119 = vst.msk [vmem:[%s435 + $0x80] sm:$0xff] %vm1508, %v2025
      %2120 = vst.msk [vmem:[%s435 + $0x88] sm:$0xff] %vm1508, %v2030
      %2121 = vst.msk [vmem:[%s435 + $0x90] sm:$0xff] %vm1508, %v2035
      %2122 = vst.msk [vmem:[%s435 + $0x98] sm:$0xff] %vm1508, %v2040
      %2123 = vst.msk [vmem:[%s435 + $0xa0] sm:$0xff] %vm1508, %v2045
      %2124 = vst.msk [vmem:[%s435 + $0xa8] sm:$0xff] %vm1508, %v2050
      %2125 = vst.msk [vmem:[%s435 + $0xb0] sm:$0xff] %vm1508, %v2055
      %2126 = vst.msk [vmem:[%s435 + $0xb8] sm:$0xff] %vm1508, %v2060
      %2127 = vst.msk [vmem:[%s435 + $0xc0] sm:$0xff] %vm1508, %v2065
      %2128 = vst.msk [vmem:[%s435 + $0xc8] sm:$0xff] %vm1508, %v2070
      %2129 = vst.msk [vmem:[%s435 + $0xd0] sm:$0xff] %vm1508, %v2075
      %2130 = vst.msk [vmem:[%s435 + $0xd8] sm:$0xff] %vm1508, %v2080
      %2131 = vst.msk [vmem:[%s435 + $0xe0] sm:$0xff] %vm1508, %v2085
      %2132 = vst.msk [vmem:[%s435 + $0xe8] sm:$0xff] %vm1508, %v2090
      %2133 = vst.msk [vmem:[%s435 + $0xf0] sm:$0xff] %vm1508, %v2095
      %2134 = vst.msk [vmem:[%s435 + $0xf8] sm:$0xff] %vm1508, %v2100
      %v2135 = vsel %vm1508, %v1945, 0.0
      %v2136 = vsel %vm1508, %v1950, 0.0
      %v2137 = vadd.f32 %v2135, %v2136
      %v2138 = vsel %vm1508, %v1955, 0.0
      %v2139 = vadd.f32 %v2137, %v2138
      %v2140 = vsel %vm1508, %v1960, 0.0
      %v2141 = vadd.f32 %v2139, %v2140
      %v2142 = vsel %vm1508, %v1965, 0.0
      %v2143 = vadd.f32 %v2141, %v2142
      %v2144 = vsel %vm1508, %v1970, 0.0
      %v2145 = vadd.f32 %v2143, %v2144
      %v2146 = vsel %vm1508, %v1975, 0.0
      %v2147 = vadd.f32 %v2145, %v2146
      %v2148 = vsel %vm1508, %v1980, 0.0
      %v2149 = vadd.f32 %v2147, %v2148
      %v2150 = vsel %vm1508, %v1985, 0.0
      %v2151 = vadd.f32 %v2149, %v2150
      %v2152 = vsel %vm1508, %v1990, 0.0
      %v2153 = vadd.f32 %v2151, %v2152
      %v2154 = vsel %vm1508, %v1995, 0.0
      %v2155 = vadd.f32 %v2153, %v2154
      %v2156 = vsel %vm1508, %v2000, 0.0
      %v2157 = vadd.f32 %v2155, %v2156
      %v2158 = vsel %vm1508, %v2005, 0.0
      %v2159 = vadd.f32 %v2157, %v2158
      %v2160 = vsel %vm1508, %v2010, 0.0
      %v2161 = vadd.f32 %v2159, %v2160
      %v2162 = vsel %vm1508, %v2015, 0.0
      %v2163 = vadd.f32 %v2161, %v2162
      %v2164 = vsel %vm1508, %v2020, 0.0
      %v2165 = vadd.f32 %v2163, %v2164
      %v2166 = vsel %vm1508, %v2025, 0.0
      %v2167 = vadd.f32 %v2165, %v2166
      %v2168 = vsel %vm1508, %v2030, 0.0
      %v2169 = vadd.f32 %v2167, %v2168
      %v2170 = vsel %vm1508, %v2035, 0.0
      %v2171 = vadd.f32 %v2169, %v2170
      %v2172 = vsel %vm1508, %v2040, 0.0
      %v2173 = vadd.f32 %v2171, %v2172
      %v2174 = vsel %vm1508, %v2045, 0.0
      %v2175 = vadd.f32 %v2173, %v2174
      %v2176 = vsel %vm1508, %v2050, 0.0
      %v2177 = vadd.f32 %v2175, %v2176
      %v2178 = vsel %vm1508, %v2055, 0.0
      %v2179 = vadd.f32 %v2177, %v2178
      %v2180 = vsel %vm1508, %v2060, 0.0
      %v2181 = vadd.f32 %v2179, %v2180
      %v2182 = vsel %vm1508, %v2065, 0.0
      %v2183 = vadd.f32 %v2181, %v2182
      %v2184 = vsel %vm1508, %v2070, 0.0
      %v2185 = vadd.f32 %v2183, %v2184
      %v2186 = vsel %vm1508, %v2075, 0.0
      %v2187 = vadd.f32 %v2185, %v2186
      %v2188 = vsel %vm1508, %v2080, 0.0
      %v2189 = vadd.f32 %v2187, %v2188
      %v2190 = vsel %vm1508, %v2085, 0.0
      %v2191 = vadd.f32 %v2189, %v2190
      %v2192 = vsel %vm1508, %v2090, 0.0
      %v2193 = vadd.f32 %v2191, %v2192
      %v2194 = vsel %vm1508, %v2095, 0.0
      %v2195 = vadd.f32 %v2193, %v2194
      %v2196 = vsel %vm1508, %v2100, 0.0
      %v2197 = vadd.f32 %v2195, %v2196
      %v2198 = vrot.slane %v2197, 4
      %v2199 = vadd.f32 %v2197, %v2198
      %v2200 = vrot.slane %v2199, 2
      %v2201 = vadd.f32 %v2199, %v2200
      %v2202 = vrot.slane %v2201, 1
      %v2203 = vadd.f32 %v2201, %v2202
      %vm2204 = vcmask 57344
      %2205 = vst.msk [vmem:[%s443] sm:$0x1] %vm2204, %v2203
      %v2206 = vmul.f32 %v1945, %v1945
      %v2207 = vmul.f32 %v1950, %v1950
      %v2208 = vmul.f32 %v1955, %v1955
      %v2209 = vmul.f32 %v1960, %v1960
      %v2210 = vmul.f32 %v1965, %v1965
      %v2211 = vmul.f32 %v1970, %v1970
      %v2212 = vmul.f32 %v1975, %v1975
      %v2213 = vmul.f32 %v1980, %v1980
      %v2214 = vmul.f32 %v1985, %v1985
      %v2215 = vmul.f32 %v1990, %v1990
      %v2216 = vmul.f32 %v1995, %v1995
      %v2217 = vmul.f32 %v2000, %v2000
      %v2218 = vmul.f32 %v2005, %v2005
      %v2219 = vmul.f32 %v2010, %v2010
      %v2220 = vmul.f32 %v2015, %v2015
      %v2221 = vmul.f32 %v2020, %v2020
      %v2222 = vmul.f32 %v2025, %v2025
      %v2223 = vmul.f32 %v2030, %v2030
      %v2224 = vmul.f32 %v2035, %v2035
      %v2225 = vmul.f32 %v2040, %v2040
      %v2226 = vmul.f32 %v2045, %v2045
      %v2227 = vmul.f32 %v2050, %v2050
      %v2228 = vmul.f32 %v2055, %v2055
      %v2229 = vmul.f32 %v2060, %v2060
      %v2230 = vmul.f32 %v2065, %v2065
      %v2231 = vmul.f32 %v2070, %v2070
      %v2232 = vmul.f32 %v2075, %v2075
      %v2233 = vmul.f32 %v2080, %v2080
      %v2234 = vmul.f32 %v2085, %v2085
      %v2235 = vmul.f32 %v2090, %v2090
      %v2236 = vmul.f32 %v2095, %v2095
      %v2237 = vmul.f32 %v2100, %v2100
      %v2238 = vsel %vm1508, %v2206, 0.0
      %v2239 = vsel %vm1508, %v2207, 0.0
      %v2240 = vadd.f32 %v2238, %v2239
      %v2241 = vsel %vm1508, %v2208, 0.0
      %v2242 = vadd.f32 %v2240, %v2241
      %v2243 = vsel %vm1508, %v2209, 0.0
      %v2244 = vadd.f32 %v2242, %v2243
      %v2245 = vsel %vm1508, %v2210, 0.0
      %v2246 = vadd.f32 %v2244, %v2245
      %v2247 = vsel %vm1508, %v2211, 0.0
      %v2248 = vadd.f32 %v2246, %v2247
      %v2249 = vsel %vm1508, %v2212, 0.0
      %v2250 = vadd.f32 %v2248, %v2249
      %v2251 = vsel %vm1508, %v2213, 0.0
      %v2252 = vadd.f32 %v2250, %v2251
      %v2253 = vsel %vm1508, %v2214, 0.0
      %v2254 = vadd.f32 %v2252, %v2253
      %v2255 = vsel %vm1508, %v2215, 0.0
      %v2256 = vadd.f32 %v2254, %v2255
      %v2257 = vsel %vm1508, %v2216, 0.0
      %v2258 = vadd.f32 %v2256, %v2257
      %v2259 = vsel %vm1508, %v2217, 0.0
      %v2260 = vadd.f32 %v2258, %v2259
      %v2261 = vsel %vm1508, %v2218, 0.0
      %v2262 = vadd.f32 %v2260, %v2261
      %v2263 = vsel %vm1508, %v2219, 0.0
      %v2264 = vadd.f32 %v2262, %v2263
      %v2265 = vsel %vm1508, %v2220, 0.0
      %v2266 = vadd.f32 %v2264, %v2265
      %v2267 = vsel %vm1508, %v2221, 0.0
      %v2268 = vadd.f32 %v2266, %v2267
      %v2269 = vsel %vm1508, %v2222, 0.0
      %v2270 = vadd.f32 %v2268, %v2269
      %v2271 = vsel %vm1508, %v2223, 0.0
      %v2272 = vadd.f32 %v2270, %v2271
      %v2273 = vsel %vm1508, %v2224, 0.0
      %v2274 = vadd.f32 %v2272, %v2273
      %v2275 = vsel %vm1508, %v2225, 0.0
      %v2276 = vadd.f32 %v2274, %v2275
      %v2277 = vsel %vm1508, %v2226, 0.0
      %v2278 = vadd.f32 %v2276, %v2277
      %v2279 = vsel %vm1508, %v2227, 0.0
      %v2280 = vadd.f32 %v2278, %v2279
      %v2281 = vsel %vm1508, %v2228, 0.0
      %v2282 = vadd.f32 %v2280, %v2281
      %v2283 = vsel %vm1508, %v2229, 0.0
      %v2284 = vadd.f32 %v2282, %v2283
      %v2285 = vsel %vm1508, %v2230, 0.0
      %v2286 = vadd.f32 %v2284, %v2285
      %v2287 = vsel %vm1508, %v2231, 0.0
      %v2288 = vadd.f32 %v2286, %v2287
      %v2289 = vsel %vm1508, %v2232, 0.0
      %v2290 = vadd.f32 %v2288, %v2289
      %v2291 = vsel %vm1508, %v2233, 0.0
      %v2292 = vadd.f32 %v2290, %v2291
      %v2293 = vsel %vm1508, %v2234, 0.0
      %v2294 = vadd.f32 %v2292, %v2293
      %v2295 = vsel %vm1508, %v2235, 0.0
      %v2296 = vadd.f32 %v2294, %v2295
      %v2297 = vsel %vm1508, %v2236, 0.0
      %v2298 = vadd.f32 %v2296, %v2297
      %v2299 = vsel %vm1508, %v2237, 0.0
      %v2300 = vadd.f32 %v2298, %v2299
      %v2301 = vrot.slane %v2300, 4
      %v2302 = vadd.f32 %v2300, %v2301
      %v2303 = vrot.slane %v2302, 2
      %v2304 = vadd.f32 %v2302, %v2303
      %v2305 = vrot.slane %v2304, 1
      %v2306 = vadd.f32 %v2304, %v2305
      %2307 = vst.msk [vmem:[%s449] sm:$0x1] %vm2204, %v2306
      %s2308 = sadd.s32 %s22, %s23
      %s2309 = smul.u32 32, %s2308
      %p2310 = scmp.lt.s32.totalorder %s2309, 63
      %s2311 = scalar_select %p2310, %s2309, 63
      %s2312 = smul.addr %s2311, 8
      %s2313 = scalar_lea.vmem %s4, %s2312
      %p2314 = scmp.lt.s32.totalorder %s22, 1
      %s2315 = scalar_select %p2314, %s22, 1
      %p2316 = scmp.lt.s32.totalorder %s23, 0
      %s2317 = scalar_select %p2316, %s23, 0
      %s2318 = sadd.s32 %s2317, %s2315
      %s2319 = scalar_lea.vmem %s5, %s2318
      %p2320 = scmp.lt.s32.totalorder %s22, 1
      %s2321 = scalar_select %p2320, %s22, 1
      %p2322 = scmp.lt.s32.totalorder %s23, 0
      %s2323 = scalar_select %p2322, %s23, 0
      %s2324 = sadd.s32 %s2323, %s2321
      %s2325 = scalar_lea.vmem %s6, %s2324
      // Predicated region
      $region37: #{_forward_impl.8} parent=35 // pred_check
        %p2326 = pneg %p165
      $region38: #{_forward_impl.8} parent=35 // pred_check_branch
        %2328 = sbr.rel (%p2326) target = $region40
      $region39: #{_forward_impl.8} parent=35 // pred_region
        %s2329 = sadd.s32 %s22, %s23
        %s2330 = smul.u32 32, %s2329
      $region40: #{_forward_impl.8} parent=35 // pred_fallthru
        _
      // Predicated region
      $region41: #{_forward_impl.8} parent=35 // pred_check
        %p2331 = pneg %p193
      $region42: #{_forward_impl.8} parent=35 // pred_check_branch
        %2333 = sbr.rel (%p2331) target = $region44
      $region43: #{_forward_impl.8} parent=35 // pred_region
        _
      $region44: #{_forward_impl.8} parent=35 // pred_fallthru
        _
      // Predicated region
      $region45: #{_forward_impl.8} parent=35 // pred_check
        %p2334 = pneg %p221
      $region46: #{_forward_impl.8} parent=35 // pred_check_branch
        %2336 = sbr.rel (%p2334) target = $region48
      $region47: #{_forward_impl.8} parent=35 // pred_region
        _
      $region48: #{_forward_impl.8} parent=35 // pred_fallthru
        _
    $region36: #{_forward_impl.8} parent=5 // pred_fallthru
      _
    %p2337 = scmp.le.s32.totalorder 2, %s13
    // Predicated region
    $region49: #{_forward_impl.8} parent=5 // pred_check
      %p2338 = pneg %p2337
    $region50: #{_forward_impl.8} parent=5 // pred_check_branch
      %2340 = sbr.rel (%p2338) target = $region52
    $region51: #{_forward_impl.8} parent=5 // pred_region
      %s2341 = ssub.s32 %s13, 2
      // Predicated region
      $region53: #{_forward_impl.8} parent=51 // pred_check
        %p2342 = pneg %p171
      $region54: #{_forward_impl.8} parent=51 // pred_check_branch
        %2344 = sbr.rel (%p2342) target = $region56
      $region55: #{_forward_impl.8} parent=51 // pred_region
        %s2345 = sadd.s32 %s24, %s25
        %s2346 = smul.u32 32, %s2345
        %p2347 = scmp.lt.s32.totalorder %s2346, 63
        %s2348 = scalar_select %p2347, %s2346, 63
        %s2349 = smul.addr %s2348, 8
        %s2350 = scalar_lea.vmem %s4, %s2349
      $region56: #{_forward_impl.8} parent=51 // pred_fallthru
        _
      // Predicated region
      $region57: #{_forward_impl.8} parent=51 // pred_check
        %p2351 = pneg %p199
      $region58: #{_forward_impl.8} parent=51 // pred_check_branch
        %2353 = sbr.rel (%p2351) target = $region60
      $region59: #{_forward_impl.8} parent=51 // pred_region
        %p2354 = scmp.lt.s32.totalorder %s24, 1
        %s2355 = scalar_select %p2354, %s24, 1
        %p2356 = scmp.lt.s32.totalorder %s25, 0
        %s2357 = scalar_select %p2356, %s25, 0
        %s2358 = sadd.s32 %s2357, %s2355
        %s2359 = scalar_lea.vmem %s5, %s2358
      $region60: #{_forward_impl.8} parent=51 // pred_fallthru
        _
      // Predicated region
      $region61: #{_forward_impl.8} parent=51 // pred_check
        %p2360 = pneg %p227
      $region62: #{_forward_impl.8} parent=51 // pred_check_branch
        %2362 = sbr.rel (%p2360) target = $region64
      $region63: #{_forward_impl.8} parent=51 // pred_region
        %p2363 = scmp.lt.s32.totalorder %s24, 1
        %s2364 = scalar_select %p2363, %s24, 1
        %p2365 = scmp.lt.s32.totalorder %s25, 0
        %s2366 = scalar_select %p2365, %s25, 0
        %s2367 = sadd.s32 %s2366, %s2364
        %s2368 = scalar_lea.vmem %s6, %s2367
      $region64: #{_forward_impl.8} parent=51 // pred_fallthru
        _
    $region52: #{_forward_impl.8} parent=5 // pred_fallthru
      _
  $region6: #{_forward_impl.8} parent=0 // loop_footer
    %s17 = sadd.s32 1, %s13
  $region7: #{_forward_impl.8} parent=0 // loop_footer_branch
    %12 = sbr.rel target = $region3
  $region8: #{_forward_impl.8} parent=0 // loop_exit
    _

</llo_original>
